<compile_context>
chip_gen: v7x
topology: tpu7x:2x2x1
jax: 0.10.0
libtpu: 0.0.40
codegen_flags: <defaults>
</compile_context>

<pallas_src>
import numpy as np
import jax
import jax.numpy as jnp
from jax.experimental import pallas as pl
from jax.experimental.pallas import tpu as pltpu

HIDDEN_SIZE = 50
NUM_LAYERS = 2
OUTPUT_SIZE = 1


def _round_up(x, m):
    return ((x + m - 1) // m) * m


H_PAD = _round_up(HIDDEN_SIZE, 128)   # 128: lane-aligned hidden / gate tiles
O_PAD = _round_up(OUTPUT_SIZE, 128)   # 128: lane-dense FC output store


# ------------------------------ Pallas kernel --------------------------------

def _fused_lstm_fc_kernel(x_ref, wih1_ref, b1_ref, wbig_ref, b2_ref,
                          fcw_ref, fcb_ref, out_ref, pre1_ref):
    """Fused input projection + 2-layer LSTM recurrence + FC head (no grid).

    x_ref:    (T, B, Dp)    time-major, lane-padded input (f32)
    wih1_ref: (Dp, 4*Hp)    layer-1 input->gates weight, pre-transposed, gate-padded (f32)
    b1_ref:   (1, 4*Hp)     layer-1 combined bias (f32)
    wbig_ref: (2*Hp, 8*Hp)  [[W_ih2^T, W_hh1^T], [W_hh2^T, 0]], bf16
    b2_ref:   (1, 4*Hp)     layer-2 combined bias (f32)
    fcw_ref:  (Hp, Op)      FC weight, pre-transposed, zero-padded, bf16
    fcb_ref:  (1, Op)       FC bias (f32)
    out_ref:  (B, Op)       padded output; column 0 holds the real logit
    pre1_ref: (T, B, 4*Hp)  VMEM scratch for the hoisted layer-1 input projection
    """
    T, B, _ = x_ref.shape
    Hp = H_PAD
    G = 4 * Hp

    # Hoisted loop-invariant bias broadcasts (JAX does not CSE broadcast_in_dim).
    b1 = jnp.broadcast_to(b1_ref[...], (B, G))
    b2 = jnp.broadcast_to(b2_ref[...], (B, G))

    # ---- Layer-1 input projection for all T, off the recurrence chain ----
    # (weight ref read at the call site: no long-lived weight SSA value).
    for t in range(T):
        pre1_ref[t] = jnp.dot(x_ref[t], wih1_ref[...],
                              preferred_element_type=jnp.float32) + b1

    def lstm_cell(gates, c):
        # PyTorch gate order: input, forget, cell(g), output. 128-lane-aligned slices.
        i_g = jax.nn.sigmoid(gates[:, 0 * Hp:1 * Hp])
        f_g = jax.nn.sigmoid(gates[:, 1 * Hp:2 * Hp])
        g_g = jnp.tanh(gates[:, 2 * Hp:3 * Hp])
        o_g = jax.nn.sigmoid(gates[:, 3 * Hp:4 * Hp])
        c_new = f_g * c + i_g * g_g
        h_new = o_g * jnp.tanh(c_new)
        return h_new, c_new

    zeros = jnp.zeros((B, Hp), jnp.float32)
    # Step 0, layer 1: h1_{-1} = 0, so the recurrent term vanishes.
    h1, c1 = lstm_cell(pre1_ref[0], zeros)
    h2, c2 = zeros, zeros

    # One fused MXU push per time step on the serial chain:
    #   [h1_t | h2_{t-1}] @ W_big -> cols [0,4Hp)   : layer-2 gates at t
    #                                cols [4Hp,8Hp) : layer-1 recurrent term for t+1
    for t in range(T):
        lhs = jnp.concatenate([h1, h2], axis=1).astype(jnp.bfloat16)
        if t + 1 < T:
            big = jnp.dot(lhs, wbig_ref[...], preferred_element_type=jnp.float32)
            g2 = big[:, :G] + b2
            g1 = big[:, G:] + pre1_ref[t + 1]
            # Independent cell updates -> EUP transcendental chains pipeline.
            h2, c2 = lstm_cell(g2, c2)
            h1, c1 = lstm_cell(g1, c1)
        else:
            # Final step only needs layer-2 gates (lane-aligned ref slice).
            g2 = jnp.dot(lhs, wbig_ref[:, :G],
                         preferred_element_type=jnp.float32) + b2
            h2, c2 = lstm_cell(g2, c2)

    # FC head fused into the same kernel; lane-dense (Op = 128) store.
    out_ref[...] = (jnp.dot(h2.astype(jnp.bfloat16), fcw_ref[...],
                            preferred_element_type=jnp.float32) + fcb_ref[...])


# ------------------------------- wrappers ------------------------------------

def _fused_forward(x_tbd_pad, pp):
    T, B, _ = x_tbd_pad.shape
    vmem = pl.BlockSpec(memory_space=pltpu.MemorySpace.VMEM)
    return pl.pallas_call(
        _fused_lstm_fc_kernel,
        out_shape=jax.ShapeDtypeStruct((B, O_PAD), jnp.float32),
        in_specs=[vmem] * 7,
        out_specs=vmem,
        scratch_shapes=[pltpu.VMEM((T, B, 4 * H_PAD), jnp.float32)],
    )(x_tbd_pad, pp["wih1"], pp["b1"], pp["wbig"], pp["b2"], pp["fcw"], pp["fcb"])


@jax.jit
def lstm_model_forward(x, pp):
    """Equivalent of LSTMModel.forward. x: (B, T, input_size) -> (B, 1)."""
    x = x.astype(jnp.float32)
    B, T, D = x.shape
    Dp = pp["wih1"].shape[0]
    # Tiny (~1 KiB) time-major + lane-pad prologue; all matmuls are in-kernel.
    x_tbd = jnp.swapaxes(x, 0, 1)                              # (T, B, D)
    x_tbd_pad = jnp.pad(x_tbd, ((0, 0), (0, 0), (0, Dp - D)))  # (T, B, Dp)
    out_pad = _fused_forward(x_tbd_pad, pp)
    return out_pad[:, :OUTPUT_SIZE]


# ------------------------ parameter init & padding ----------------------------

def init_params(key, input_size, hidden_size, num_layers, output_size):
    k = 1.0 / np.sqrt(hidden_size)
    layers = []
    keys = jax.random.split(key, num_layers * 4 + 2)
    ki = 0
    for layer in range(num_layers):
        d_in = input_size if layer == 0 else hidden_size
        w_ih = jax.random.uniform(keys[ki], (4 * hidden_size, d_in),
                                  minval=-k, maxval=k, dtype=jnp.float32); ki += 1
        w_hh = jax.random.uniform(keys[ki], (4 * hidden_size, hidden_size),
                                  minval=-k, maxval=k, dtype=jnp.float32); ki += 1
        b_ih = jax.random.uniform(keys[ki], (4 * hidden_size,),
                                  minval=-k, maxval=k, dtype=jnp.float32); ki += 1
        b_hh = jax.random.uniform(keys[ki], (4 * hidden_size,),
                                  minval=-k, maxval=k, dtype=jnp.float32); ki += 1
        layers.append({"w_ih": w_ih, "w_hh": w_hh, "bias": b_ih + b_hh})
    fc_w = jax.random.uniform(keys[ki], (output_size, hidden_size),
                              minval=-k, maxval=k, dtype=jnp.float32); ki += 1
    fc_b = jax.random.uniform(keys[ki], (output_size,),
                              minval=-k, maxval=k, dtype=jnp.float32)
    return {"lstm": layers, "fc_w": fc_w, "fc_b": fc_b}


def _pad_gate_rows(w, H, Hp):
    """PyTorch-layout (4H, K) gate matrix -> (4Hp, K), gate g at rows [g*Hp, g*Hp+H)."""
    K = w.shape[1]
    out = jnp.zeros((4 * Hp, K), w.dtype)
    for g in range(4):
        out = out.at[g * Hp:g * Hp + H, :].set(w[g * H:(g + 1) * H, :])
    return out


def _pad_gate_bias(b, H, Hp):
    out = jnp.zeros((4 * Hp,), b.dtype)
    for g in range(4):
        out = out.at[g * Hp:g * Hp + H].set(b[g * H:(g + 1) * H])
    return out.reshape(1, 4 * Hp)


def prepare_padded_params(params, Hp=H_PAD, Op=O_PAD):
    """Pre-transpose + zero-pad weights; MXU operands cast to bf16.

    Padded gate columns / hidden rows / bias lanes are zero, so the padded hidden and
    cell lanes remain exactly zero through the recurrence (no garbage feedback).
    """
    H = HIDDEN_SIZE
    l1, l2 = params["lstm"]
    d_in = l1["w_ih"].shape[1]
    Dp = _round_up(d_in, 128)

    # Layer-1 input projection (kept f32: tiny, off the recurrence chain).
    wih1 = jnp.zeros((Dp, 4 * Hp), jnp.float32).at[:d_in, :].set(
        _pad_gate_rows(l1["w_ih"], H, Hp).T)                              # (Dp, 4Hp)
    b1 = _pad_gate_bias(l1["bias"], H, Hp)                                # (1, 4Hp)

    # Recurrent weights, pre-transposed and gate/hidden padded.
    whh1T = jnp.pad(_pad_gate_rows(l1["w_hh"], H, Hp), ((0, 0), (0, Hp - H))).T
    wih2T = jnp.pad(_pad_gate_rows(l2["w_ih"], H, Hp), ((0, 0), (0, Hp - H))).T
    whh2T = jnp.pad(_pad_gate_rows(l2["w_hh"], H, Hp), ((0, 0), (0, Hp - H))).T

    # Stacked per-step RHS (bf16 MXU operand): one push yields L2 gates at t and the
    # L1 recurrent gate term for t+1.
    top = jnp.concatenate([wih2T, whh1T], axis=1)                         # (Hp, 8Hp)
    bot = jnp.concatenate([whh2T, jnp.zeros((Hp, 4 * Hp), jnp.float32)], axis=1)
    wbig = jnp.concatenate([top, bot], axis=0).astype(jnp.bfloat16)       # (2Hp, 8Hp)
    b2 = _pad_gate_bias(l2["bias"], H, Hp)                                # (1, 4Hp)

    # FC head.
    fcw = jnp.zeros((Hp, Op), jnp.float32).at[:H, :OUTPUT_SIZE].set(
        params["fc_w"].T).astype(jnp.bfloat16)                            # (Hp, Op)
    fcb = jnp.zeros((1, Op), jnp.float32).at[0, :OUTPUT_SIZE].set(params["fc_b"])

    return {"wih1": wih1, "b1": b1, "wbig": wbig, "b2": b2, "fcw": fcw, "fcb": fcb}


# ---------------------------- pure-JAX reference -------------------------------

def lstm_model_ref(x, params):
    B = x.shape[0]
    H = params["lstm"][0]["w_hh"].shape[1]
    h_in = jnp.swapaxes(x, 0, 1).astype(jnp.float32)  # (T, B, D)
    for layer in params["lstm"]:
        w_ih, w_hh, bias = layer["w_ih"], layer["w_hh"], layer["bias"]

        def step(carry, xt):
            h, c = carry
            g = xt @ w_ih.T + h @ w_hh.T + bias
            i = jax.nn.sigmoid(g[:, 0 * H:1 * H])
            f = jax.nn.sigmoid(g[:, 1 * H:2 * H])
            gg = jnp.tanh(g[:, 2 * H:3 * H])
            o = jax.nn.sigmoid(g[:, 3 * H:4 * H])
            c = f * c + i * gg
            h = o * jnp.tanh(c)
            return (h, c), h

        (_, _), hs = jax.lax.scan(
            step, (jnp.zeros((B, H), jnp.float32), jnp.zeros((B, H), jnp.float32)),
            h_in)
        h_in = hs
    return h_in[-1] @ params["fc_w"].T + params["fc_b"]


# ------------------------------------ main -------------------------------------

if __name__ == "__main__":
    B, T, INPUT_SIZE = 2, 8, 16  # small shapes consistent with (batch, seq, features)

    key = jax.random.PRNGKey(0)
    k_param, k_x = jax.random.split(key)
    params = init_params(k_param, INPUT_SIZE, HIDDEN_SIZE, NUM_LAYERS, OUTPUT_SIZE)
    padded = prepare_padded_params(params)
    x = jax.random.normal(k_x, (B, T, INPUT_SIZE), dtype=jnp.float32)

    out = jax.block_until_ready(lstm_model_forward(x, padded))
    ref = jax.block_until_ready(lstm_model_ref(x, params))

    assert out.shape == (B, OUTPUT_SIZE)
    # bf16 MXU operands (f32 accumulation & f32 cell math) -> relaxed tolerance.
    np.testing.assert_allclose(np.asarray(out), np.asarray(ref), atol=2e-2, rtol=2e-2)

    print("KERNEL_OK")
</pallas_src>

<mosaic_0001>
module attributes {stable_mosaic.version = 11 : i64} {
  func.func @_fused_lstm_fc_kernel(%arg0: memref<8x2x128xf32, #tpu.memory_space<vmem>>, %arg1: memref<128x512xf32, #tpu.memory_space<vmem>>, %arg2: memref<1x512xf32, #tpu.memory_space<vmem>>, %arg3: memref<256x1024xbf16, #tpu.memory_space<vmem>>, %arg4: memref<1x512xf32, #tpu.memory_space<vmem>>, %arg5: memref<128x128xbf16, #tpu.memory_space<vmem>>, %arg6: memref<1x128xf32, #tpu.memory_space<vmem>>, %arg7: memref<2x128xf32, #tpu.memory_space<vmem>>, %arg8: memref<8x2x512xf32, #tpu.memory_space<vmem>>) attributes {dimension_semantics = [], scalar_prefetch = 0 : i64, scratch_operands = 1 : i64, tpu.core_type = #tpu.core_type<tc>} {
    %c0 = arith.constant 0 : index
    %c0_0 = arith.constant 0 : index
    %0 = vector.load %arg2[%c0, %c0_0] : memref<1x512xf32, #tpu.memory_space<vmem>>, vector<1x512xf32>
    %1 = vector.shape_cast %0 : vector<1x512xf32> to vector<1x512xf32>
    %2 = vector.broadcast %1 : vector<1x512xf32> to vector<2x512xf32>
    %c0_1 = arith.constant 0 : index
    %c0_2 = arith.constant 0 : index
    %3 = vector.load %arg4[%c0_1, %c0_2] : memref<1x512xf32, #tpu.memory_space<vmem>>, vector<1x512xf32>
    %4 = vector.shape_cast %3 : vector<1x512xf32> to vector<1x512xf32>
    %5 = vector.broadcast %4 : vector<1x512xf32> to vector<2x512xf32>
    %c0_3 = arith.constant 0 : index
    %c0_4 = arith.constant 0 : index
    %c0_5 = arith.constant 0 : index
    %6 = vector.load %arg0[%c0_3, %c0_4, %c0_5] : memref<8x2x128xf32, #tpu.memory_space<vmem>>, vector<1x2x128xf32>
    %7 = vector.shape_cast %6 : vector<1x2x128xf32> to vector<2x128xf32>
    %c0_6 = arith.constant 0 : index
    %c0_7 = arith.constant 0 : index
    %8 = vector.load %arg1[%c0_6, %c0_7] : memref<128x512xf32, #tpu.memory_space<vmem>>, vector<128x512xf32>
    %cst = arith.constant dense<0.000000e+00> : vector<2x512xf32>
    %9 = tpu.matmul %7, %8, %cst {dimension_numbers = #tpu.dot_dimension_numbers<[1], [0], [0], [1], [0, 0, 1, 1], [], []>} : vector<2x128xf32>, vector<128x512xf32>, vector<2x512xf32> -> vector<2x512xf32>
    %10 = arith.addf %9, %2 : vector<2x512xf32>
    %c0_8 = arith.constant 0 : index
    %c0_9 = arith.constant 0 : index
    %c0_10 = arith.constant 0 : index
    %11 = vector.load %arg8[%c0_8, %c0_9, %c0_10] : memref<8x2x512xf32, #tpu.memory_space<vmem>>, vector<1x2x512xf32>
    %12 = vector.shape_cast %11 : vector<1x2x512xf32> to vector<2x512xf32>
    %13 = vector.shape_cast %10 : vector<2x512xf32> to vector<1x2x512xf32>
    tpu.vector_store %arg8[%c0_8, %c0_9, %c0_10], %13 {strides = array<i32>} : memref<8x2x512xf32, #tpu.memory_space<vmem>>, vector<1x2x512xf32>,
    %c1 = arith.constant 1 : index
    %c0_11 = arith.constant 0 : index
    %c0_12 = arith.constant 0 : index
    %14 = vector.load %arg0[%c1, %c0_11, %c0_12] : memref<8x2x128xf32, #tpu.memory_space<vmem>>, vector<1x2x128xf32>
    %15 = vector.shape_cast %14 : vector<1x2x128xf32> to vector<2x128xf32>
    %c0_13 = arith.constant 0 : index
    %c0_14 = arith.constant 0 : index
    %16 = vector.load %arg1[%c0_13, %c0_14] : memref<128x512xf32, #tpu.memory_space<vmem>>, vector<128x512xf32>
    %cst_15 = arith.constant dense<0.000000e+00> : vector<2x512xf32>
    %17 = tpu.matmul %15, %16, %cst_15 {dimension_numbers = #tpu.dot_dimension_numbers<[1], [0], [0], [1], [0, 0, 1, 1], [], []>} : vector<2x128xf32>, vector<128x512xf32>, vector<2x512xf32> -> vector<2x512xf32>
    %18 = arith.addf %17, %2 : vector<2x512xf32>
    %c1_16 = arith.constant 1 : index
    %c0_17 = arith.constant 0 : index
    %c0_18 = arith.constant 0 : index
    %19 = vector.load %arg8[%c1_16, %c0_17, %c0_18] : memref<8x2x512xf32, #tpu.memory_space<vmem>>, vector<1x2x512xf32>
    %20 = vector.shape_cast %19 : vector<1x2x512xf32> to vector<2x512xf32>
    %21 = vector.shape_cast %18 : vector<2x512xf32> to vector<1x2x512xf32>
    tpu.vector_store %arg8[%c1_16, %c0_17, %c0_18], %21 {strides = array<i32>} : memref<8x2x512xf32, #tpu.memory_space<vmem>>, vector<1x2x512xf32>,
    %c2 = arith.constant 2 : index
    %c0_19 = arith.constant 0 : index
    %c0_20 = arith.constant 0 : index
    %22 = vector.load %arg0[%c2, %c0_19, %c0_20] : memref<8x2x128xf32, #tpu.memory_space<vmem>>, vector<1x2x128xf32>
    %23 = vector.shape_cast %22 : vector<1x2x128xf32> to vector<2x128xf32>
    %c0_21 = arith.constant 0 : index
    %c0_22 = arith.constant 0 : index
    %24 = vector.load %arg1[%c0_21, %c0_22] : memref<128x512xf32, #tpu.memory_space<vmem>>, vector<128x512xf32>
    %cst_23 = arith.constant dense<0.000000e+00> : vector<2x512xf32>
    %25 = tpu.matmul %23, %24, %cst_23 {dimension_numbers = #tpu.dot_dimension_numbers<[1], [0], [0], [1], [0, 0, 1, 1], [], []>} : vector<2x128xf32>, vector<128x512xf32>, vector<2x512xf32> -> vector<2x512xf32>
    %26 = arith.addf %25, %2 : vector<2x512xf32>
    %c2_24 = arith.constant 2 : index
    %c0_25 = arith.constant 0 : index
    %c0_26 = arith.constant 0 : index
    %27 = vector.load %arg8[%c2_24, %c0_25, %c0_26] : memref<8x2x512xf32, #tpu.memory_space<vmem>>, vector<1x2x512xf32>
    %28 = vector.shape_cast %27 : vector<1x2x512xf32> to vector<2x512xf32>
    %29 = vector.shape_cast %26 : vector<2x512xf32> to vector<1x2x512xf32>
    tpu.vector_store %arg8[%c2_24, %c0_25, %c0_26], %29 {strides = array<i32>} : memref<8x2x512xf32, #tpu.memory_space<vmem>>, vector<1x2x512xf32>,
    %c3 = arith.constant 3 : index
    %c0_27 = arith.constant 0 : index
    %c0_28 = arith.constant 0 : index
    %30 = vector.load %arg0[%c3, %c0_27, %c0_28] : memref<8x2x128xf32, #tpu.memory_space<vmem>>, vector<1x2x128xf32>
    %31 = vector.shape_cast %30 : vector<1x2x128xf32> to vector<2x128xf32>
    %c0_29 = arith.constant 0 : index
    %c0_30 = arith.constant 0 : index
    %32 = vector.load %arg1[%c0_29, %c0_30] : memref<128x512xf32, #tpu.memory_space<vmem>>, vector<128x512xf32>
    %cst_31 = arith.constant dense<0.000000e+00> : vector<2x512xf32>
    %33 = tpu.matmul %31, %32, %cst_31 {dimension_numbers = #tpu.dot_dimension_numbers<[1], [0], [0], [1], [0, 0, 1, 1], [], []>} : vector<2x128xf32>, vector<128x512xf32>, vector<2x512xf32> -> vector<2x512xf32>
    %34 = arith.addf %33, %2 : vector<2x512xf32>
    %c3_32 = arith.constant 3 : index
    %c0_33 = arith.constant 0 : index
    %c0_34 = arith.constant 0 : index
    %35 = vector.load %arg8[%c3_32, %c0_33, %c0_34] : memref<8x2x512xf32, #tpu.memory_space<vmem>>, vector<1x2x512xf32>
    %36 = vector.shape_cast %35 : vector<1x2x512xf32> to vector<2x512xf32>
    %37 = vector.shape_cast %34 : vector<2x512xf32> to vector<1x2x512xf32>
    tpu.vector_store %arg8[%c3_32, %c0_33, %c0_34], %37 {strides = array<i32>} : memref<8x2x512xf32, #tpu.memory_space<vmem>>, vector<1x2x512xf32>,
    %c4 = arith.constant 4 : index
    %c0_35 = arith.constant 0 : index
    %c0_36 = arith.constant 0 : index
    %38 = vector.load %arg0[%c4, %c0_35, %c0_36] : memref<8x2x128xf32, #tpu.memory_space<vmem>>, vector<1x2x128xf32>
    %39 = vector.shape_cast %38 : vector<1x2x128xf32> to vector<2x128xf32>
    %c0_37 = arith.constant 0 : index
    %c0_38 = arith.constant 0 : index
    %40 = vector.load %arg1[%c0_37, %c0_38] : memref<128x512xf32, #tpu.memory_space<vmem>>, vector<128x512xf32>
    %cst_39 = arith.constant dense<0.000000e+00> : vector<2x512xf32>
    %41 = tpu.matmul %39, %40, %cst_39 {dimension_numbers = #tpu.dot_dimension_numbers<[1], [0], [0], [1], [0, 0, 1, 1], [], []>} : vector<2x128xf32>, vector<128x512xf32>, vector<2x512xf32> -> vector<2x512xf32>
    %42 = arith.addf %41, %2 : vector<2x512xf32>
    %c4_40 = arith.constant 4 : index
    %c0_41 = arith.constant 0 : index
    %c0_42 = arith.constant 0 : index
    %43 = vector.load %arg8[%c4_40, %c0_41, %c0_42] : memref<8x2x512xf32, #tpu.memory_space<vmem>>, vector<1x2x512xf32>
    %44 = vector.shape_cast %43 : vector<1x2x512xf32> to vector<2x512xf32>
    %45 = vector.shape_cast %42 : vector<2x512xf32> to vector<1x2x512xf32>
    tpu.vector_store %arg8[%c4_40, %c0_41, %c0_42], %45 {strides = array<i32>} : memref<8x2x512xf32, #tpu.memory_space<vmem>>, vector<1x2x512xf32>,
    %c5 = arith.constant 5 : index
    %c0_43 = arith.constant 0 : index
    %c0_44 = arith.constant 0 : index
    %46 = vector.load %arg0[%c5, %c0_43, %c0_44] : memref<8x2x128xf32, #tpu.memory_space<vmem>>, vector<1x2x128xf32>
    %47 = vector.shape_cast %46 : vector<1x2x128xf32> to vector<2x128xf32>
    %c0_45 = arith.constant 0 : index
    %c0_46 = arith.constant 0 : index
    %48 = vector.load %arg1[%c0_45, %c0_46] : memref<128x512xf32, #tpu.memory_space<vmem>>, vector<128x512xf32>
    %cst_47 = arith.constant dense<0.000000e+00> : vector<2x512xf32>
    %49 = tpu.matmul %47, %48, %cst_47 {dimension_numbers = #tpu.dot_dimension_numbers<[1], [0], [0], [1], [0, 0, 1, 1], [], []>} : vector<2x128xf32>, vector<128x512xf32>, vector<2x512xf32> -> vector<2x512xf32>
    %50 = arith.addf %49, %2 : vector<2x512xf32>
    %c5_48 = arith.constant 5 : index
    %c0_49 = arith.constant 0 : index
    %c0_50 = arith.constant 0 : index
    %51 = vector.load %arg8[%c5_48, %c0_49, %c0_50] : memref<8x2x512xf32, #tpu.memory_space<vmem>>, vector<1x2x512xf32>
    %52 = vector.shape_cast %51 : vector<1x2x512xf32> to vector<2x512xf32>
    %53 = vector.shape_cast %50 : vector<2x512xf32> to vector<1x2x512xf32>
    tpu.vector_store %arg8[%c5_48, %c0_49, %c0_50], %53 {strides = array<i32>} : memref<8x2x512xf32, #tpu.memory_space<vmem>>, vector<1x2x512xf32>,
    %c6 = arith.constant 6 : index
    %c0_51 = arith.constant 0 : index
    %c0_52 = arith.constant 0 : index
    %54 = vector.load %arg0[%c6, %c0_51, %c0_52] : memref<8x2x128xf32, #tpu.memory_space<vmem>>, vector<1x2x128xf32>
    %55 = vector.shape_cast %54 : vector<1x2x128xf32> to vector<2x128xf32>
    %c0_53 = arith.constant 0 : index
    %c0_54 = arith.constant 0 : index
    %56 = vector.load %arg1[%c0_53, %c0_54] : memref<128x512xf32, #tpu.memory_space<vmem>>, vector<128x512xf32>
    %cst_55 = arith.constant dense<0.000000e+00> : vector<2x512xf32>
    %57 = tpu.matmul %55, %56, %cst_55 {dimension_numbers = #tpu.dot_dimension_numbers<[1], [0], [0], [1], [0, 0, 1, 1], [], []>} : vector<2x128xf32>, vector<128x512xf32>, vector<2x512xf32> -> vector<2x512xf32>
    %58 = arith.addf %57, %2 : vector<2x512xf32>
    %c6_56 = arith.constant 6 : index
    %c0_57 = arith.constant 0 : index
    %c0_58 = arith.constant 0 : index
    %59 = vector.load %arg8[%c6_56, %c0_57, %c0_58] : memref<8x2x512xf32, #tpu.memory_space<vmem>>, vector<1x2x512xf32>
    %60 = vector.shape_cast %59 : vector<1x2x512xf32> to vector<2x512xf32>
    %61 = vector.shape_cast %58 : vector<2x512xf32> to vector<1x2x512xf32>
    tpu.vector_store %arg8[%c6_56, %c0_57, %c0_58], %61 {strides = array<i32>} : memref<8x2x512xf32, #tpu.memory_space<vmem>>, vector<1x2x512xf32>,
    %c7 = arith.constant 7 : index
    %c0_59 = arith.constant 0 : index
    %c0_60 = arith.constant 0 : index
    %62 = vector.load %arg0[%c7, %c0_59, %c0_60] : memref<8x2x128xf32, #tpu.memory_space<vmem>>, vector<1x2x128xf32>
    %63 = vector.shape_cast %62 : vector<1x2x128xf32> to vector<2x128xf32>
    %c0_61 = arith.constant 0 : index
    %c0_62 = arith.constant 0 : index
    %64 = vector.load %arg1[%c0_61, %c0_62] : memref<128x512xf32, #tpu.memory_space<vmem>>, vector<128x512xf32>
    %cst_63 = arith.constant dense<0.000000e+00> : vector<2x512xf32>
    %65 = tpu.matmul %63, %64, %cst_63 {dimension_numbers = #tpu.dot_dimension_numbers<[1], [0], [0], [1], [0, 0, 1, 1], [], []>} : vector<2x128xf32>, vector<128x512xf32>, vector<2x512xf32> -> vector<2x512xf32>
    %66 = arith.addf %65, %2 : vector<2x512xf32>
    %c7_64 = arith.constant 7 : index
    %c0_65 = arith.constant 0 : index
    %c0_66 = arith.constant 0 : index
    %67 = vector.load %arg8[%c7_64, %c0_65, %c0_66] : memref<8x2x512xf32, #tpu.memory_space<vmem>>, vector<1x2x512xf32>
    %68 = vector.shape_cast %67 : vector<1x2x512xf32> to vector<2x512xf32>
    %69 = vector.shape_cast %66 : vector<2x512xf32> to vector<1x2x512xf32>
    tpu.vector_store %arg8[%c7_64, %c0_65, %c0_66], %69 {strides = array<i32>} : memref<8x2x512xf32, #tpu.memory_space<vmem>>, vector<1x2x512xf32>,
    %cst_67 = arith.constant 0.000000e+00 : f32
    %70 = vector.broadcast %cst_67 : f32 to vector<2x128xf32>
    %c0_68 = arith.constant 0 : index
    %c0_69 = arith.constant 0 : index
    %c0_70 = arith.constant 0 : index
    %71 = vector.load %arg8[%c0_68, %c0_69, %c0_70] : memref<8x2x512xf32, #tpu.memory_space<vmem>>, vector<1x2x512xf32>
    %72 = vector.shape_cast %71 : vector<1x2x512xf32> to vector<2x512xf32>
    %73 = vector.extract_strided_slice %72 {offsets = [0, 0], sizes = [2, 128], strides = [1, 1]} : vector<2x512xf32> to vector<2x128xf32>
    %74 = arith.negf %73 : vector<2x128xf32>
    %75 = math.exp %74 : vector<2x128xf32>
    %cst_71 = arith.constant 1.000000e+00 : f32
    %76 = vector.broadcast %cst_71 : f32 to vector<2x128xf32>
    %77 = arith.addf %76, %75 : vector<2x128xf32>
    %78 = arith.divf %76, %77 : vector<2x128xf32>
    %79 = vector.extract_strided_slice %72 {offsets = [0, 128], sizes = [2, 128], strides = [1, 1]} : vector<2x512xf32> to vector<2x128xf32>
    %80 = arith.negf %79 : vector<2x128xf32>
    %81 = math.exp %80 : vector<2x128xf32>
    %cst_72 = arith.constant 1.000000e+00 : f32
    %82 = vector.broadcast %cst_72 : f32 to vector<2x128xf32>
    %83 = arith.addf %82, %81 : vector<2x128xf32>
    %84 = arith.divf %82, %83 : vector<2x128xf32>
    %85 = vector.extract_strided_slice %72 {offsets = [0, 256], sizes = [2, 128], strides = [1, 1]} : vector<2x512xf32> to vector<2x128xf32>
    %86 = math.tanh %85 : vector<2x128xf32>
    %87 = vector.extract_strided_slice %72 {offsets = [0, 384], sizes = [2, 128], strides = [1, 1]} : vector<2x512xf32> to vector<2x128xf32>
    %88 = arith.negf %87 : vector<2x128xf32>
    %89 = math.exp %88 : vector<2x128xf32>
    %cst_73 = arith.constant 1.000000e+00 : f32
    %90 = vector.broadcast %cst_73 : f32 to vector<2x128xf32>
    %91 = arith.addf %90, %89 : vector<2x128xf32>
    %92 = arith.divf %90, %91 : vector<2x128xf32>
    %93 = arith.mulf %84, %70 : vector<2x128xf32>
    %94 = arith.mulf %78, %86 : vector<2x128xf32>
    %95 = arith.addf %93, %94 : vector<2x128xf32>
    %96 = math.tanh %95 : vector<2x128xf32>
    %97 = arith.mulf %92, %96 : vector<2x128xf32>
    %98 = tpu.concatenate %97, %70 in 1 : vector<2x128xf32>, vector<2x128xf32> -> vector<2x256xf32>
    %99 = arith.truncf %98 : vector<2x256xf32> to vector<2x256xbf16>
    %c0_74 = arith.constant 0 : index
    %c0_75 = arith.constant 0 : index
    %100 = vector.load %arg3[%c0_74, %c0_75] : memref<256x1024xbf16, #tpu.memory_space<vmem>>, vector<256x1024xbf16>
    %cst_76 = arith.constant dense<0.000000e+00> : vector<2x1024xf32>
    %101 = tpu.matmul %99, %100, %cst_76 {dimension_numbers = #tpu.dot_dimension_numbers<[1], [0], [0], [1], [0, 0, 1, 1], [], []>} : vector<2x256xbf16>, vector<256x1024xbf16>, vector<2x1024xf32> -> vector<2x1024xf32>
    %102 = vector.extract_strided_slice %101 {offsets = [0, 0], sizes = [2, 512], strides = [1, 1]} : vector<2x1024xf32> to vector<2x512xf32>
    %103 = arith.addf %102, %5 : vector<2x512xf32>
    %104 = vector.extract_strided_slice %101 {offsets = [0, 512], sizes = [2, 512], strides = [1, 1]} : vector<2x1024xf32> to vector<2x512xf32>
    %c1_77 = arith.constant 1 : index
    %c0_78 = arith.constant 0 : index
    %c0_79 = arith.constant 0 : index
    %105 = vector.load %arg8[%c1_77, %c0_78, %c0_79] : memref<8x2x512xf32, #tpu.memory_space<vmem>>, vector<1x2x512xf32>
    %106 = vector.shape_cast %105 : vector<1x2x512xf32> to vector<2x512xf32>
    %107 = arith.addf %104, %106 : vector<2x512xf32>
    %108 = vector.extract_strided_slice %103 {offsets = [0, 0], sizes = [2, 128], strides = [1, 1]} : vector<2x512xf32> to vector<2x128xf32>
    %109 = arith.negf %108 : vector<2x128xf32>
    %110 = math.exp %109 : vector<2x128xf32>
    %cst_80 = arith.constant 1.000000e+00 : f32
    %111 = vector.broadcast %cst_80 : f32 to vector<2x128xf32>
    %112 = arith.addf %111, %110 : vector<2x128xf32>
    %113 = arith.divf %111, %112 : vector<2x128xf32>
    %114 = vector.extract_strided_slice %103 {offsets = [0, 128], sizes = [2, 128], strides = [1, 1]} : vector<2x512xf32> to vector<2x128xf32>
    %115 = arith.negf %114 : vector<2x128xf32>
    %116 = math.exp %115 : vector<2x128xf32>
    %cst_81 = arith.constant 1.000000e+00 : f32
    %117 = vector.broadcast %cst_81 : f32 to vector<2x128xf32>
    %118 = arith.addf %117, %116 : vector<2x128xf32>
    %119 = arith.divf %117, %118 : vector<2x128xf32>
    %120 = vector.extract_strided_slice %103 {offsets = [0, 256], sizes = [2, 128], strides = [1, 1]} : vector<2x512xf32> to vector<2x128xf32>
    %121 = math.tanh %120 : vector<2x128xf32>
    %122 = vector.extract_strided_slice %103 {offsets = [0, 384], sizes = [2, 128], strides = [1, 1]} : vector<2x512xf32> to vector<2x128xf32>
    %123 = arith.negf %122 : vector<2x128xf32>
    %124 = math.exp %123 : vector<2x128xf32>
    %cst_82 = arith.constant 1.000000e+00 : f32
    %125 = vector.broadcast %cst_82 : f32 to vector<2x128xf32>
    %126 = arith.addf %125, %124 : vector<2x128xf32>
    %127 = arith.divf %125, %126 : vector<2x128xf32>
    %128 = arith.mulf %119, %70 : vector<2x128xf32>
    %129 = arith.mulf %113, %121 : vector<2x128xf32>
    %130 = arith.addf %128, %129 : vector<2x128xf32>
    %131 = math.tanh %130 : vector<2x128xf32>
    %132 = arith.mulf %127, %131 : vector<2x128xf32>
    %133 = vector.extract_strided_slice %107 {offsets = [0, 0], sizes = [2, 128], strides = [1, 1]} : vector<2x512xf32> to vector<2x128xf32>
    %134 = arith.negf %133 : vector<2x128xf32>
    %135 = math.exp %134 : vector<2x128xf32>
    %cst_83 = arith.constant 1.000000e+00 : f32
    %136 = vector.broadcast %cst_83 : f32 to vector<2x128xf32>
    %137 = arith.addf %136, %135 : vector<2x128xf32>
    %138 = arith.divf %136, %137 : vector<2x128xf32>
    %139 = vector.extract_strided_slice %107 {offsets = [0, 128], sizes = [2, 128], strides = [1, 1]} : vector<2x512xf32> to vector<2x128xf32>
    %140 = arith.negf %139 : vector<2x128xf32>
    %141 = math.exp %140 : vector<2x128xf32>
    %cst_84 = arith.constant 1.000000e+00 : f32
    %142 = vector.broadcast %cst_84 : f32 to vector<2x128xf32>
    %143 = arith.addf %142, %141 : vector<2x128xf32>
    %144 = arith.divf %142, %143 : vector<2x128xf32>
    %145 = vector.extract_strided_slice %107 {offsets = [0, 256], sizes = [2, 128], strides = [1, 1]} : vector<2x512xf32> to vector<2x128xf32>
    %146 = math.tanh %145 : vector<2x128xf32>
    %147 = vector.extract_strided_slice %107 {offsets = [0, 384], sizes = [2, 128], strides = [1, 1]} : vector<2x512xf32> to vector<2x128xf32>
    %148 = arith.negf %147 : vector<2x128xf32>
    %149 = math.exp %148 : vector<2x128xf32>
    %cst_85 = arith.constant 1.000000e+00 : f32
    %150 = vector.broadcast %cst_85 : f32 to vector<2x128xf32>
    %151 = arith.addf %150, %149 : vector<2x128xf32>
    %152 = arith.divf %150, %151 : vector<2x128xf32>
    %153 = arith.mulf %144, %95 : vector<2x128xf32>
    %154 = arith.mulf %138, %146 : vector<2x128xf32>
    %155 = arith.addf %153, %154 : vector<2x128xf32>
    %156 = math.tanh %155 : vector<2x128xf32>
    %157 = arith.mulf %152, %156 : vector<2x128xf32>
    %158 = tpu.concatenate %157, %132 in 1 : vector<2x128xf32>, vector<2x128xf32> -> vector<2x256xf32>
    %159 = arith.truncf %158 : vector<2x256xf32> to vector<2x256xbf16>
    %c0_86 = arith.constant 0 : index
    %c0_87 = arith.constant 0 : index
    %160 = vector.load %arg3[%c0_86, %c0_87] : memref<256x1024xbf16, #tpu.memory_space<vmem>>, vector<256x1024xbf16>
    %cst_88 = arith.constant dense<0.000000e+00> : vector<2x1024xf32>
    %161 = tpu.matmul %159, %160, %cst_88 {dimension_numbers = #tpu.dot_dimension_numbers<[1], [0], [0], [1], [0, 0, 1, 1], [], []>} : vector<2x256xbf16>, vector<256x1024xbf16>, vector<2x1024xf32> -> vector<2x1024xf32>
    %162 = vector.extract_strided_slice %161 {offsets = [0, 0], sizes = [2, 512], strides = [1, 1]} : vector<2x1024xf32> to vector<2x512xf32>
    %163 = arith.addf %162, %5 : vector<2x512xf32>
    %164 = vector.extract_strided_slice %161 {offsets = [0, 512], sizes = [2, 512], strides = [1, 1]} : vector<2x1024xf32> to vector<2x512xf32>
    %c2_89 = arith.constant 2 : index
    %c0_90 = arith.constant 0 : index
    %c0_91 = arith.constant 0 : index
    %165 = vector.load %arg8[%c2_89, %c0_90, %c0_91] : memref<8x2x512xf32, #tpu.memory_space<vmem>>, vector<1x2x512xf32>
    %166 = vector.shape_cast %165 : vector<1x2x512xf32> to vector<2x512xf32>
    %167 = arith.addf %164, %166 : vector<2x512xf32>
    %168 = vector.extract_strided_slice %163 {offsets = [0, 0], sizes = [2, 128], strides = [1, 1]} : vector<2x512xf32> to vector<2x128xf32>
    %169 = arith.negf %168 : vector<2x128xf32>
    %170 = math.exp %169 : vector<2x128xf32>
    %cst_92 = arith.constant 1.000000e+00 : f32
    %171 = vector.broadcast %cst_92 : f32 to vector<2x128xf32>
    %172 = arith.addf %171, %170 : vector<2x128xf32>
    %173 = arith.divf %171, %172 : vector<2x128xf32>
    %174 = vector.extract_strided_slice %163 {offsets = [0, 128], sizes = [2, 128], strides = [1, 1]} : vector<2x512xf32> to vector<2x128xf32>
    %175 = arith.negf %174 : vector<2x128xf32>
    %176 = math.exp %175 : vector<2x128xf32>
    %cst_93 = arith.constant 1.000000e+00 : f32
    %177 = vector.broadcast %cst_93 : f32 to vector<2x128xf32>
    %178 = arith.addf %177, %176 : vector<2x128xf32>
    %179 = arith.divf %177, %178 : vector<2x128xf32>
    %180 = vector.extract_strided_slice %163 {offsets = [0, 256], sizes = [2, 128], strides = [1, 1]} : vector<2x512xf32> to vector<2x128xf32>
    %181 = math.tanh %180 : vector<2x128xf32>
    %182 = vector.extract_strided_slice %163 {offsets = [0, 384], sizes = [2, 128], strides = [1, 1]} : vector<2x512xf32> to vector<2x128xf32>
    %183 = arith.negf %182 : vector<2x128xf32>
    %184 = math.exp %183 : vector<2x128xf32>
    %cst_94 = arith.constant 1.000000e+00 : f32
    %185 = vector.broadcast %cst_94 : f32 to vector<2x128xf32>
    %186 = arith.addf %185, %184 : vector<2x128xf32>
    %187 = arith.divf %185, %186 : vector<2x128xf32>
    %188 = arith.mulf %179, %130 : vector<2x128xf32>
    %189 = arith.mulf %173, %181 : vector<2x128xf32>
    %190 = arith.addf %188, %189 : vector<2x128xf32>
    %191 = math.tanh %190 : vector<2x128xf32>
    %192 = arith.mulf %187, %191 : vector<2x128xf32>
    %193 = vector.extract_strided_slice %167 {offsets = [0, 0], sizes = [2, 128], strides = [1, 1]} : vector<2x512xf32> to vector<2x128xf32>
    %194 = arith.negf %193 : vector<2x128xf32>
    %195 = math.exp %194 : vector<2x128xf32>
    %cst_95 = arith.constant 1.000000e+00 : f32
    %196 = vector.broadcast %cst_95 : f32 to vector<2x128xf32>
    %197 = arith.addf %196, %195 : vector<2x128xf32>
    %198 = arith.divf %196, %197 : vector<2x128xf32>
    %199 = vector.extract_strided_slice %167 {offsets = [0, 128], sizes = [2, 128], strides = [1, 1]} : vector<2x512xf32> to vector<2x128xf32>
    %200 = arith.negf %199 : vector<2x128xf32>
    %201 = math.exp %200 : vector<2x128xf32>
    %cst_96 = arith.constant 1.000000e+00 : f32
    %202 = vector.broadcast %cst_96 : f32 to vector<2x128xf32>
    %203 = arith.addf %202, %201 : vector<2x128xf32>
    %204 = arith.divf %202, %203 : vector<2x128xf32>
    %205 = vector.extract_strided_slice %167 {offsets = [0, 256], sizes = [2, 128], strides = [1, 1]} : vector<2x512xf32> to vector<2x128xf32>
    %206 = math.tanh %205 : vector<2x128xf32>
    %207 = vector.extract_strided_slice %167 {offsets = [0, 384], sizes = [2, 128], strides = [1, 1]} : vector<2x512xf32> to vector<2x128xf32>
    %208 = arith.negf %207 : vector<2x128xf32>
    %209 = math.exp %208 : vector<2x128xf32>
    %cst_97 = arith.constant 1.000000e+00 : f32
    %210 = vector.broadcast %cst_97 : f32 to vector<2x128xf32>
    %211 = arith.addf %210, %209 : vector<2x128xf32>
    %212 = arith.divf %210, %211 : vector<2x128xf32>
    %213 = arith.mulf %204, %155 : vector<2x128xf32>
    %214 = arith.mulf %198, %206 : vector<2x128xf32>
    %215 = arith.addf %213, %214 : vector<2x128xf32>
    %216 = math.tanh %215 : vector<2x128xf32>
    %217 = arith.mulf %212, %216 : vector<2x128xf32>
    %218 = tpu.concatenate %217, %192 in 1 : vector<2x128xf32>, vector<2x128xf32> -> vector<2x256xf32>
    %219 = arith.truncf %218 : vector<2x256xf32> to vector<2x256xbf16>
    %c0_98 = arith.constant 0 : index
    %c0_99 = arith.constant 0 : index
    %220 = vector.load %arg3[%c0_98, %c0_99] : memref<256x1024xbf16, #tpu.memory_space<vmem>>, vector<256x1024xbf16>
    %cst_100 = arith.constant dense<0.000000e+00> : vector<2x1024xf32>
    %221 = tpu.matmul %219, %220, %cst_100 {dimension_numbers = #tpu.dot_dimension_numbers<[1], [0], [0], [1], [0, 0, 1, 1], [], []>} : vector<2x256xbf16>, vector<256x1024xbf16>, vector<2x1024xf32> -> vector<2x1024xf32>
    %222 = vector.extract_strided_slice %221 {offsets = [0, 0], sizes = [2, 512], strides = [1, 1]} : vector<2x1024xf32> to vector<2x512xf32>
    %223 = arith.addf %222, %5 : vector<2x512xf32>
    %224 = vector.extract_strided_slice %221 {offsets = [0, 512], sizes = [2, 512], strides = [1, 1]} : vector<2x1024xf32> to vector<2x512xf32>
    %c3_101 = arith.constant 3 : index
    %c0_102 = arith.constant 0 : index
    %c0_103 = arith.constant 0 : index
    %225 = vector.load %arg8[%c3_101, %c0_102, %c0_103] : memref<8x2x512xf32, #tpu.memory_space<vmem>>, vector<1x2x512xf32>
    %226 = vector.shape_cast %225 : vector<1x2x512xf32> to vector<2x512xf32>
    %227 = arith.addf %224, %226 : vector<2x512xf32>
    %228 = vector.extract_strided_slice %223 {offsets = [0, 0], sizes = [2, 128], strides = [1, 1]} : vector<2x512xf32> to vector<2x128xf32>
    %229 = arith.negf %228 : vector<2x128xf32>
    %230 = math.exp %229 : vector<2x128xf32>
    %cst_104 = arith.constant 1.000000e+00 : f32
    %231 = vector.broadcast %cst_104 : f32 to vector<2x128xf32>
    %232 = arith.addf %231, %230 : vector<2x128xf32>
    %233 = arith.divf %231, %232 : vector<2x128xf32>
    %234 = vector.extract_strided_slice %223 {offsets = [0, 128], sizes = [2, 128], strides = [1, 1]} : vector<2x512xf32> to vector<2x128xf32>
    %235 = arith.negf %234 : vector<2x128xf32>
    %236 = math.exp %235 : vector<2x128xf32>
    %cst_105 = arith.constant 1.000000e+00 : f32
    %237 = vector.broadcast %cst_105 : f32 to vector<2x128xf32>
    %238 = arith.addf %237, %236 : vector<2x128xf32>
    %239 = arith.divf %237, %238 : vector<2x128xf32>
    %240 = vector.extract_strided_slice %223 {offsets = [0, 256], sizes = [2, 128], strides = [1, 1]} : vector<2x512xf32> to vector<2x128xf32>
    %241 = math.tanh %240 : vector<2x128xf32>
    %242 = vector.extract_strided_slice %223 {offsets = [0, 384], sizes = [2, 128], strides = [1, 1]} : vector<2x512xf32> to vector<2x128xf32>
    %243 = arith.negf %242 : vector<2x128xf32>
    %244 = math.exp %243 : vector<2x128xf32>
    %cst_106 = arith.constant 1.000000e+00 : f32
    %245 = vector.broadcast %cst_106 : f32 to vector<2x128xf32>
    %246 = arith.addf %245, %244 : vector<2x128xf32>
    %247 = arith.divf %245, %246 : vector<2x128xf32>
    %248 = arith.mulf %239, %190 : vector<2x128xf32>
    %249 = arith.mulf %233, %241 : vector<2x128xf32>
    %250 = arith.addf %248, %249 : vector<2x128xf32>
    %251 = math.tanh %250 : vector<2x128xf32>
    %252 = arith.mulf %247, %251 : vector<2x128xf32>
    %253 = vector.extract_strided_slice %227 {offsets = [0, 0], sizes = [2, 128], strides = [1, 1]} : vector<2x512xf32> to vector<2x128xf32>
    %254 = arith.negf %253 : vector<2x128xf32>
    %255 = math.exp %254 : vector<2x128xf32>
    %cst_107 = arith.constant 1.000000e+00 : f32
    %256 = vector.broadcast %cst_107 : f32 to vector<2x128xf32>
    %257 = arith.addf %256, %255 : vector<2x128xf32>
    %258 = arith.divf %256, %257 : vector<2x128xf32>
    %259 = vector.extract_strided_slice %227 {offsets = [0, 128], sizes = [2, 128], strides = [1, 1]} : vector<2x512xf32> to vector<2x128xf32>
    %260 = arith.negf %259 : vector<2x128xf32>
    %261 = math.exp %260 : vector<2x128xf32>
    %cst_108 = arith.constant 1.000000e+00 : f32
    %262 = vector.broadcast %cst_108 : f32 to vector<2x128xf32>
    %263 = arith.addf %262, %261 : vector<2x128xf32>
    %264 = arith.divf %262, %263 : vector<2x128xf32>
    %265 = vector.extract_strided_slice %227 {offsets = [0, 256], sizes = [2, 128], strides = [1, 1]} : vector<2x512xf32> to vector<2x128xf32>
    %266 = math.tanh %265 : vector<2x128xf32>
    %267 = vector.extract_strided_slice %227 {offsets = [0, 384], sizes = [2, 128], strides = [1, 1]} : vector<2x512xf32> to vector<2x128xf32>
    %268 = arith.negf %267 : vector<2x128xf32>
    %269 = math.exp %268 : vector<2x128xf32>
    %cst_109 = arith.constant 1.000000e+00 : f32
    %270 = vector.broadcast %cst_109 : f32 to vector<2x128xf32>
    %271 = arith.addf %270, %269 : vector<2x128xf32>
    %272 = arith.divf %270, %271 : vector<2x128xf32>
    %273 = arith.mulf %264, %215 : vector<2x128xf32>
    %274 = arith.mulf %258, %266 : vector<2x128xf32>
    %275 = arith.addf %273, %274 : vector<2x128xf32>
    %276 = math.tanh %275 : vector<2x128xf32>
    %277 = arith.mulf %272, %276 : vector<2x128xf32>
    %278 = tpu.concatenate %277, %252 in 1 : vector<2x128xf32>, vector<2x128xf32> -> vector<2x256xf32>
    %279 = arith.truncf %278 : vector<2x256xf32> to vector<2x256xbf16>
    %c0_110 = arith.constant 0 : index
    %c0_111 = arith.constant 0 : index
    %280 = vector.load %arg3[%c0_110, %c0_111] : memref<256x1024xbf16, #tpu.memory_space<vmem>>, vector<256x1024xbf16>
    %cst_112 = arith.constant dense<0.000000e+00> : vector<2x1024xf32>
    %281 = tpu.matmul %279, %280, %cst_112 {dimension_numbers = #tpu.dot_dimension_numbers<[1], [0], [0], [1], [0, 0, 1, 1], [], []>} : vector<2x256xbf16>, vector<256x1024xbf16>, vector<2x1024xf32> -> vector<2x1024xf32>
    %282 = vector.extract_strided_slice %281 {offsets = [0, 0], sizes = [2, 512], strides = [1, 1]} : vector<2x1024xf32> to vector<2x512xf32>
    %283 = arith.addf %282, %5 : vector<2x512xf32>
    %284 = vector.extract_strided_slice %281 {offsets = [0, 512], sizes = [2, 512], strides = [1, 1]} : vector<2x1024xf32> to vector<2x512xf32>
    %c4_113 = arith.constant 4 : index
    %c0_114 = arith.constant 0 : index
    %c0_115 = arith.constant 0 : index
    %285 = vector.load %arg8[%c4_113, %c0_114, %c0_115] : memref<8x2x512xf32, #tpu.memory_space<vmem>>, vector<1x2x512xf32>
    %286 = vector.shape_cast %285 : vector<1x2x512xf32> to vector<2x512xf32>
    %287 = arith.addf %284, %286 : vector<2x512xf32>
    %288 = vector.extract_strided_slice %283 {offsets = [0, 0], sizes = [2, 128], strides = [1, 1]} : vector<2x512xf32> to vector<2x128xf32>
    %289 = arith.negf %288 : vector<2x128xf32>
    %290 = math.exp %289 : vector<2x128xf32>
    %cst_116 = arith.constant 1.000000e+00 : f32
    %291 = vector.broadcast %cst_116 : f32 to vector<2x128xf32>
    %292 = arith.addf %291, %290 : vector<2x128xf32>
    %293 = arith.divf %291, %292 : vector<2x128xf32>
    %294 = vector.extract_strided_slice %283 {offsets = [0, 128], sizes = [2, 128], strides = [1, 1]} : vector<2x512xf32> to vector<2x128xf32>
    %295 = arith.negf %294 : vector<2x128xf32>
    %296 = math.exp %295 : vector<2x128xf32>
    %cst_117 = arith.constant 1.000000e+00 : f32
    %297 = vector.broadcast %cst_117 : f32 to vector<2x128xf32>
    %298 = arith.addf %297, %296 : vector<2x128xf32>
    %299 = arith.divf %297, %298 : vector<2x128xf32>
    %300 = vector.extract_strided_slice %283 {offsets = [0, 256], sizes = [2, 128], strides = [1, 1]} : vector<2x512xf32> to vector<2x128xf32>
    %301 = math.tanh %300 : vector<2x128xf32>
    %302 = vector.extract_strided_slice %283 {offsets = [0, 384], sizes = [2, 128], strides = [1, 1]} : vector<2x512xf32> to vector<2x128xf32>
    %303 = arith.negf %302 : vector<2x128xf32>
    %304 = math.exp %303 : vector<2x128xf32>
    %cst_118 = arith.constant 1.000000e+00 : f32
    %305 = vector.broadcast %cst_118 : f32 to vector<2x128xf32>
    %306 = arith.addf %305, %304 : vector<2x128xf32>
    %307 = arith.divf %305, %306 : vector<2x128xf32>
    %308 = arith.mulf %299, %250 : vector<2x128xf32>
    %309 = arith.mulf %293, %301 : vector<2x128xf32>
    %310 = arith.addf %308, %309 : vector<2x128xf32>
    %311 = math.tanh %310 : vector<2x128xf32>
    %312 = arith.mulf %307, %311 : vector<2x128xf32>
    %313 = vector.extract_strided_slice %287 {offsets = [0, 0], sizes = [2, 128], strides = [1, 1]} : vector<2x512xf32> to vector<2x128xf32>
    %314 = arith.negf %313 : vector<2x128xf32>
    %315 = math.exp %314 : vector<2x128xf32>
    %cst_119 = arith.constant 1.000000e+00 : f32
    %316 = vector.broadcast %cst_119 : f32 to vector<2x128xf32>
    %317 = arith.addf %316, %315 : vector<2x128xf32>
    %318 = arith.divf %316, %317 : vector<2x128xf32>
    %319 = vector.extract_strided_slice %287 {offsets = [0, 128], sizes = [2, 128], strides = [1, 1]} : vector<2x512xf32> to vector<2x128xf32>
    %320 = arith.negf %319 : vector<2x128xf32>
    %321 = math.exp %320 : vector<2x128xf32>
    %cst_120 = arith.constant 1.000000e+00 : f32
    %322 = vector.broadcast %cst_120 : f32 to vector<2x128xf32>
    %323 = arith.addf %322, %321 : vector<2x128xf32>
    %324 = arith.divf %322, %323 : vector<2x128xf32>
    %325 = vector.extract_strided_slice %287 {offsets = [0, 256], sizes = [2, 128], strides = [1, 1]} : vector<2x512xf32> to vector<2x128xf32>
    %326 = math.tanh %325 : vector<2x128xf32>
    %327 = vector.extract_strided_slice %287 {offsets = [0, 384], sizes = [2, 128], strides = [1, 1]} : vector<2x512xf32> to vector<2x128xf32>
    %328 = arith.negf %327 : vector<2x128xf32>
    %329 = math.exp %328 : vector<2x128xf32>
    %cst_121 = arith.constant 1.000000e+00 : f32
    %330 = vector.broadcast %cst_121 : f32 to vector<2x128xf32>
    %331 = arith.addf %330, %329 : vector<2x128xf32>
    %332 = arith.divf %330, %331 : vector<2x128xf32>
    %333 = arith.mulf %324, %275 : vector<2x128xf32>
    %334 = arith.mulf %318, %326 : vector<2x128xf32>
    %335 = arith.addf %333, %334 : vector<2x128xf32>
    %336 = math.tanh %335 : vector<2x128xf32>
    %337 = arith.mulf %332, %336 : vector<2x128xf32>
    %338 = tpu.concatenate %337, %312 in 1 : vector<2x128xf32>, vector<2x128xf32> -> vector<2x256xf32>
    %339 = arith.truncf %338 : vector<2x256xf32> to vector<2x256xbf16>
    %c0_122 = arith.constant 0 : index
    %c0_123 = arith.constant 0 : index
    %340 = vector.load %arg3[%c0_122, %c0_123] : memref<256x1024xbf16, #tpu.memory_space<vmem>>, vector<256x1024xbf16>
    %cst_124 = arith.constant dense<0.000000e+00> : vector<2x1024xf32>
    %341 = tpu.matmul %339, %340, %cst_124 {dimension_numbers = #tpu.dot_dimension_numbers<[1], [0], [0], [1], [0, 0, 1, 1], [], []>} : vector<2x256xbf16>, vector<256x1024xbf16>, vector<2x1024xf32> -> vector<2x1024xf32>
    %342 = vector.extract_strided_slice %341 {offsets = [0, 0], sizes = [2, 512], strides = [1, 1]} : vector<2x1024xf32> to vector<2x512xf32>
    %343 = arith.addf %342, %5 : vector<2x512xf32>
    %344 = vector.extract_strided_slice %341 {offsets = [0, 512], sizes = [2, 512], strides = [1, 1]} : vector<2x1024xf32> to vector<2x512xf32>
    %c5_125 = arith.constant 5 : index
    %c0_126 = arith.constant 0 : index
    %c0_127 = arith.constant 0 : index
    %345 = vector.load %arg8[%c5_125, %c0_126, %c0_127] : memref<8x2x512xf32, #tpu.memory_space<vmem>>, vector<1x2x512xf32>
    %346 = vector.shape_cast %345 : vector<1x2x512xf32> to vector<2x512xf32>
    %347 = arith.addf %344, %346 : vector<2x512xf32>
    %348 = vector.extract_strided_slice %343 {offsets = [0, 0], sizes = [2, 128], strides = [1, 1]} : vector<2x512xf32> to vector<2x128xf32>
    %349 = arith.negf %348 : vector<2x128xf32>
    %350 = math.exp %349 : vector<2x128xf32>
    %cst_128 = arith.constant 1.000000e+00 : f32
    %351 = vector.broadcast %cst_128 : f32 to vector<2x128xf32>
    %352 = arith.addf %351, %350 : vector<2x128xf32>
    %353 = arith.divf %351, %352 : vector<2x128xf32>
    %354 = vector.extract_strided_slice %343 {offsets = [0, 128], sizes = [2, 128], strides = [1, 1]} : vector<2x512xf32> to vector<2x128xf32>
    %355 = arith.negf %354 : vector<2x128xf32>
    %356 = math.exp %355 : vector<2x128xf32>
    %cst_129 = arith.constant 1.000000e+00 : f32
    %357 = vector.broadcast %cst_129 : f32 to vector<2x128xf32>
    %358 = arith.addf %357, %356 : vector<2x128xf32>
    %359 = arith.divf %357, %358 : vector<2x128xf32>
    %360 = vector.extract_strided_slice %343 {offsets = [0, 256], sizes = [2, 128], strides = [1, 1]} : vector<2x512xf32> to vector<2x128xf32>
    %361 = math.tanh %360 : vector<2x128xf32>
    %362 = vector.extract_strided_slice %343 {offsets = [0, 384], sizes = [2, 128], strides = [1, 1]} : vector<2x512xf32> to vector<2x128xf32>
    %363 = arith.negf %362 : vector<2x128xf32>
    %364 = math.exp %363 : vector<2x128xf32>
    %cst_130 = arith.constant 1.000000e+00 : f32
    %365 = vector.broadcast %cst_130 : f32 to vector<2x128xf32>
    %366 = arith.addf %365, %364 : vector<2x128xf32>
    %367 = arith.divf %365, %366 : vector<2x128xf32>
    %368 = arith.mulf %359, %310 : vector<2x128xf32>
    %369 = arith.mulf %353, %361 : vector<2x128xf32>
    %370 = arith.addf %368, %369 : vector<2x128xf32>
    %371 = math.tanh %370 : vector<2x128xf32>
    %372 = arith.mulf %367, %371 : vector<2x128xf32>
    %373 = vector.extract_strided_slice %347 {offsets = [0, 0], sizes = [2, 128], strides = [1, 1]} : vector<2x512xf32> to vector<2x128xf32>
    %374 = arith.negf %373 : vector<2x128xf32>
    %375 = math.exp %374 : vector<2x128xf32>
    %cst_131 = arith.constant 1.000000e+00 : f32
    %376 = vector.broadcast %cst_131 : f32 to vector<2x128xf32>
    %377 = arith.addf %376, %375 : vector<2x128xf32>
    %378 = arith.divf %376, %377 : vector<2x128xf32>
    %379 = vector.extract_strided_slice %347 {offsets = [0, 128], sizes = [2, 128], strides = [1, 1]} : vector<2x512xf32> to vector<2x128xf32>
    %380 = arith.negf %379 : vector<2x128xf32>
    %381 = math.exp %380 : vector<2x128xf32>
    %cst_132 = arith.constant 1.000000e+00 : f32
    %382 = vector.broadcast %cst_132 : f32 to vector<2x128xf32>
    %383 = arith.addf %382, %381 : vector<2x128xf32>
    %384 = arith.divf %382, %383 : vector<2x128xf32>
    %385 = vector.extract_strided_slice %347 {offsets = [0, 256], sizes = [2, 128], strides = [1, 1]} : vector<2x512xf32> to vector<2x128xf32>
    %386 = math.tanh %385 : vector<2x128xf32>
    %387 = vector.extract_strided_slice %347 {offsets = [0, 384], sizes = [2, 128], strides = [1, 1]} : vector<2x512xf32> to vector<2x128xf32>
    %388 = arith.negf %387 : vector<2x128xf32>
    %389 = math.exp %388 : vector<2x128xf32>
    %cst_133 = arith.constant 1.000000e+00 : f32
    %390 = vector.broadcast %cst_133 : f32 to vector<2x128xf32>
    %391 = arith.addf %390, %389 : vector<2x128xf32>
    %392 = arith.divf %390, %391 : vector<2x128xf32>
    %393 = arith.mulf %384, %335 : vector<2x128xf32>
    %394 = arith.mulf %378, %386 : vector<2x128xf32>
    %395 = arith.addf %393, %394 : vector<2x128xf32>
    %396 = math.tanh %395 : vector<2x128xf32>
    %397 = arith.mulf %392, %396 : vector<2x128xf32>
    %398 = tpu.concatenate %397, %372 in 1 : vector<2x128xf32>, vector<2x128xf32> -> vector<2x256xf32>
    %399 = arith.truncf %398 : vector<2x256xf32> to vector<2x256xbf16>
    %c0_134 = arith.constant 0 : index
    %c0_135 = arith.constant 0 : index
    %400 = vector.load %arg3[%c0_134, %c0_135] : memref<256x1024xbf16, #tpu.memory_space<vmem>>, vector<256x1024xbf16>
    %cst_136 = arith.constant dense<0.000000e+00> : vector<2x1024xf32>
    %401 = tpu.matmul %399, %400, %cst_136 {dimension_numbers = #tpu.dot_dimension_numbers<[1], [0], [0], [1], [0, 0, 1, 1], [], []>} : vector<2x256xbf16>, vector<256x1024xbf16>, vector<2x1024xf32> -> vector<2x1024xf32>
    %402 = vector.extract_strided_slice %401 {offsets = [0, 0], sizes = [2, 512], strides = [1, 1]} : vector<2x1024xf32> to vector<2x512xf32>
    %403 = arith.addf %402, %5 : vector<2x512xf32>
    %404 = vector.extract_strided_slice %401 {offsets = [0, 512], sizes = [2, 512], strides = [1, 1]} : vector<2x1024xf32> to vector<2x512xf32>
    %c6_137 = arith.constant 6 : index
    %c0_138 = arith.constant 0 : index
    %c0_139 = arith.constant 0 : index
    %405 = vector.load %arg8[%c6_137, %c0_138, %c0_139] : memref<8x2x512xf32, #tpu.memory_space<vmem>>, vector<1x2x512xf32>
    %406 = vector.shape_cast %405 : vector<1x2x512xf32> to vector<2x512xf32>
    %407 = arith.addf %404, %406 : vector<2x512xf32>
    %408 = vector.extract_strided_slice %403 {offsets = [0, 0], sizes = [2, 128], strides = [1, 1]} : vector<2x512xf32> to vector<2x128xf32>
    %409 = arith.negf %408 : vector<2x128xf32>
    %410 = math.exp %409 : vector<2x128xf32>
    %cst_140 = arith.constant 1.000000e+00 : f32
    %411 = vector.broadcast %cst_140 : f32 to vector<2x128xf32>
    %412 = arith.addf %411, %410 : vector<2x128xf32>
    %413 = arith.divf %411, %412 : vector<2x128xf32>
    %414 = vector.extract_strided_slice %403 {offsets = [0, 128], sizes = [2, 128], strides = [1, 1]} : vector<2x512xf32> to vector<2x128xf32>
    %415 = arith.negf %414 : vector<2x128xf32>
    %416 = math.exp %415 : vector<2x128xf32>
    %cst_141 = arith.constant 1.000000e+00 : f32
    %417 = vector.broadcast %cst_141 : f32 to vector<2x128xf32>
    %418 = arith.addf %417, %416 : vector<2x128xf32>
    %419 = arith.divf %417, %418 : vector<2x128xf32>
    %420 = vector.extract_strided_slice %403 {offsets = [0, 256], sizes = [2, 128], strides = [1, 1]} : vector<2x512xf32> to vector<2x128xf32>
    %421 = math.tanh %420 : vector<2x128xf32>
    %422 = vector.extract_strided_slice %403 {offsets = [0, 384], sizes = [2, 128], strides = [1, 1]} : vector<2x512xf32> to vector<2x128xf32>
    %423 = arith.negf %422 : vector<2x128xf32>
    %424 = math.exp %423 : vector<2x128xf32>
    %cst_142 = arith.constant 1.000000e+00 : f32
    %425 = vector.broadcast %cst_142 : f32 to vector<2x128xf32>
    %426 = arith.addf %425, %424 : vector<2x128xf32>
    %427 = arith.divf %425, %426 : vector<2x128xf32>
    %428 = arith.mulf %419, %370 : vector<2x128xf32>
    %429 = arith.mulf %413, %421 : vector<2x128xf32>
    %430 = arith.addf %428, %429 : vector<2x128xf32>
    %431 = math.tanh %430 : vector<2x128xf32>
    %432 = arith.mulf %427, %431 : vector<2x128xf32>
    %433 = vector.extract_strided_slice %407 {offsets = [0, 0], sizes = [2, 128], strides = [1, 1]} : vector<2x512xf32> to vector<2x128xf32>
    %434 = arith.negf %433 : vector<2x128xf32>
    %435 = math.exp %434 : vector<2x128xf32>
    %cst_143 = arith.constant 1.000000e+00 : f32
    %436 = vector.broadcast %cst_143 : f32 to vector<2x128xf32>
    %437 = arith.addf %436, %435 : vector<2x128xf32>
    %438 = arith.divf %436, %437 : vector<2x128xf32>
    %439 = vector.extract_strided_slice %407 {offsets = [0, 128], sizes = [2, 128], strides = [1, 1]} : vector<2x512xf32> to vector<2x128xf32>
    %440 = arith.negf %439 : vector<2x128xf32>
    %441 = math.exp %440 : vector<2x128xf32>
    %cst_144 = arith.constant 1.000000e+00 : f32
    %442 = vector.broadcast %cst_144 : f32 to vector<2x128xf32>
    %443 = arith.addf %442, %441 : vector<2x128xf32>
    %444 = arith.divf %442, %443 : vector<2x128xf32>
    %445 = vector.extract_strided_slice %407 {offsets = [0, 256], sizes = [2, 128], strides = [1, 1]} : vector<2x512xf32> to vector<2x128xf32>
    %446 = math.tanh %445 : vector<2x128xf32>
    %447 = vector.extract_strided_slice %407 {offsets = [0, 384], sizes = [2, 128], strides = [1, 1]} : vector<2x512xf32> to vector<2x128xf32>
    %448 = arith.negf %447 : vector<2x128xf32>
    %449 = math.exp %448 : vector<2x128xf32>
    %cst_145 = arith.constant 1.000000e+00 : f32
    %450 = vector.broadcast %cst_145 : f32 to vector<2x128xf32>
    %451 = arith.addf %450, %449 : vector<2x128xf32>
    %452 = arith.divf %450, %451 : vector<2x128xf32>
    %453 = arith.mulf %444, %395 : vector<2x128xf32>
    %454 = arith.mulf %438, %446 : vector<2x128xf32>
    %455 = arith.addf %453, %454 : vector<2x128xf32>
    %456 = math.tanh %455 : vector<2x128xf32>
    %457 = arith.mulf %452, %456 : vector<2x128xf32>
    %458 = tpu.concatenate %457, %432 in 1 : vector<2x128xf32>, vector<2x128xf32> -> vector<2x256xf32>
    %459 = arith.truncf %458 : vector<2x256xf32> to vector<2x256xbf16>
    %c0_146 = arith.constant 0 : index
    %c0_147 = arith.constant 0 : index
    %460 = vector.load %arg3[%c0_146, %c0_147] : memref<256x1024xbf16, #tpu.memory_space<vmem>>, vector<256x1024xbf16>
    %cst_148 = arith.constant dense<0.000000e+00> : vector<2x1024xf32>
    %461 = tpu.matmul %459, %460, %cst_148 {dimension_numbers = #tpu.dot_dimension_numbers<[1], [0], [0], [1], [0, 0, 1, 1], [], []>} : vector<2x256xbf16>, vector<256x1024xbf16>, vector<2x1024xf32> -> vector<2x1024xf32>
    %462 = vector.extract_strided_slice %461 {offsets = [0, 0], sizes = [2, 512], strides = [1, 1]} : vector<2x1024xf32> to vector<2x512xf32>
    %463 = arith.addf %462, %5 : vector<2x512xf32>
    %464 = vector.extract_strided_slice %461 {offsets = [0, 512], sizes = [2, 512], strides = [1, 1]} : vector<2x1024xf32> to vector<2x512xf32>
    %c7_149 = arith.constant 7 : index
    %c0_150 = arith.constant 0 : index
    %c0_151 = arith.constant 0 : index
    %465 = vector.load %arg8[%c7_149, %c0_150, %c0_151] : memref<8x2x512xf32, #tpu.memory_space<vmem>>, vector<1x2x512xf32>
    %466 = vector.shape_cast %465 : vector<1x2x512xf32> to vector<2x512xf32>
    %467 = arith.addf %464, %466 : vector<2x512xf32>
    %468 = vector.extract_strided_slice %463 {offsets = [0, 0], sizes = [2, 128], strides = [1, 1]} : vector<2x512xf32> to vector<2x128xf32>
    %469 = arith.negf %468 : vector<2x128xf32>
    %470 = math.exp %469 : vector<2x128xf32>
    %cst_152 = arith.constant 1.000000e+00 : f32
    %471 = vector.broadcast %cst_152 : f32 to vector<2x128xf32>
    %472 = arith.addf %471, %470 : vector<2x128xf32>
    %473 = arith.divf %471, %472 : vector<2x128xf32>
    %474 = vector.extract_strided_slice %463 {offsets = [0, 128], sizes = [2, 128], strides = [1, 1]} : vector<2x512xf32> to vector<2x128xf32>
    %475 = arith.negf %474 : vector<2x128xf32>
    %476 = math.exp %475 : vector<2x128xf32>
    %cst_153 = arith.constant 1.000000e+00 : f32
    %477 = vector.broadcast %cst_153 : f32 to vector<2x128xf32>
    %478 = arith.addf %477, %476 : vector<2x128xf32>
    %479 = arith.divf %477, %478 : vector<2x128xf32>
    %480 = vector.extract_strided_slice %463 {offsets = [0, 256], sizes = [2, 128], strides = [1, 1]} : vector<2x512xf32> to vector<2x128xf32>
    %481 = math.tanh %480 : vector<2x128xf32>
    %482 = vector.extract_strided_slice %463 {offsets = [0, 384], sizes = [2, 128], strides = [1, 1]} : vector<2x512xf32> to vector<2x128xf32>
    %483 = arith.negf %482 : vector<2x128xf32>
    %484 = math.exp %483 : vector<2x128xf32>
    %cst_154 = arith.constant 1.000000e+00 : f32
    %485 = vector.broadcast %cst_154 : f32 to vector<2x128xf32>
    %486 = arith.addf %485, %484 : vector<2x128xf32>
    %487 = arith.divf %485, %486 : vector<2x128xf32>
    %488 = arith.mulf %479, %430 : vector<2x128xf32>
    %489 = arith.mulf %473, %481 : vector<2x128xf32>
    %490 = arith.addf %488, %489 : vector<2x128xf32>
    %491 = math.tanh %490 : vector<2x128xf32>
    %492 = arith.mulf %487, %491 : vector<2x128xf32>
    %493 = vector.extract_strided_slice %467 {offsets = [0, 0], sizes = [2, 128], strides = [1, 1]} : vector<2x512xf32> to vector<2x128xf32>
    %494 = arith.negf %493 : vector<2x128xf32>
    %495 = math.exp %494 : vector<2x128xf32>
    %cst_155 = arith.constant 1.000000e+00 : f32
    %496 = vector.broadcast %cst_155 : f32 to vector<2x128xf32>
    %497 = arith.addf %496, %495 : vector<2x128xf32>
    %498 = arith.divf %496, %497 : vector<2x128xf32>
    %499 = vector.extract_strided_slice %467 {offsets = [0, 128], sizes = [2, 128], strides = [1, 1]} : vector<2x512xf32> to vector<2x128xf32>
    %500 = arith.negf %499 : vector<2x128xf32>
    %501 = math.exp %500 : vector<2x128xf32>
    %cst_156 = arith.constant 1.000000e+00 : f32
    %502 = vector.broadcast %cst_156 : f32 to vector<2x128xf32>
    %503 = arith.addf %502, %501 : vector<2x128xf32>
    %504 = arith.divf %502, %503 : vector<2x128xf32>
    %505 = vector.extract_strided_slice %467 {offsets = [0, 256], sizes = [2, 128], strides = [1, 1]} : vector<2x512xf32> to vector<2x128xf32>
    %506 = math.tanh %505 : vector<2x128xf32>
    %507 = vector.extract_strided_slice %467 {offsets = [0, 384], sizes = [2, 128], strides = [1, 1]} : vector<2x512xf32> to vector<2x128xf32>
    %508 = arith.negf %507 : vector<2x128xf32>
    %509 = math.exp %508 : vector<2x128xf32>
    %cst_157 = arith.constant 1.000000e+00 : f32
    %510 = vector.broadcast %cst_157 : f32 to vector<2x128xf32>
    %511 = arith.addf %510, %509 : vector<2x128xf32>
    %512 = arith.divf %510, %511 : vector<2x128xf32>
    %513 = arith.mulf %504, %455 : vector<2x128xf32>
    %514 = arith.mulf %498, %506 : vector<2x128xf32>
    %515 = arith.addf %513, %514 : vector<2x128xf32>
    %516 = math.tanh %515 : vector<2x128xf32>
    %517 = arith.mulf %512, %516 : vector<2x128xf32>
    %518 = tpu.concatenate %517, %492 in 1 : vector<2x128xf32>, vector<2x128xf32> -> vector<2x256xf32>
    %519 = arith.truncf %518 : vector<2x256xf32> to vector<2x256xbf16>
    %c0_158 = arith.constant 0 : index
    %c0_159 = arith.constant 0 : index
    %520 = vector.load %arg3[%c0_158, %c0_159] : memref<256x1024xbf16, #tpu.memory_space<vmem>>, vector<256x512xbf16>
    %cst_160 = arith.constant dense<0.000000e+00> : vector<2x512xf32>
    %521 = tpu.matmul %519, %520, %cst_160 {dimension_numbers = #tpu.dot_dimension_numbers<[1], [0], [0], [1], [0, 0, 1, 1], [], []>} : vector<2x256xbf16>, vector<256x512xbf16>, vector<2x512xf32> -> vector<2x512xf32>
    %522 = arith.addf %521, %5 : vector<2x512xf32>
    %523 = vector.extract_strided_slice %522 {offsets = [0, 0], sizes = [2, 128], strides = [1, 1]} : vector<2x512xf32> to vector<2x128xf32>
    %524 = arith.negf %523 : vector<2x128xf32>
    %525 = math.exp %524 : vector<2x128xf32>
    %cst_161 = arith.constant 1.000000e+00 : f32
    %526 = vector.broadcast %cst_161 : f32 to vector<2x128xf32>
    %527 = arith.addf %526, %525 : vector<2x128xf32>
    %528 = arith.divf %526, %527 : vector<2x128xf32>
    %529 = vector.extract_strided_slice %522 {offsets = [0, 128], sizes = [2, 128], strides = [1, 1]} : vector<2x512xf32> to vector<2x128xf32>
    %530 = arith.negf %529 : vector<2x128xf32>
    %531 = math.exp %530 : vector<2x128xf32>
    %cst_162 = arith.constant 1.000000e+00 : f32
    %532 = vector.broadcast %cst_162 : f32 to vector<2x128xf32>
    %533 = arith.addf %532, %531 : vector<2x128xf32>
    %534 = arith.divf %532, %533 : vector<2x128xf32>
    %535 = vector.extract_strided_slice %522 {offsets = [0, 256], sizes = [2, 128], strides = [1, 1]} : vector<2x512xf32> to vector<2x128xf32>
    %536 = math.tanh %535 : vector<2x128xf32>
    %537 = vector.extract_strided_slice %522 {offsets = [0, 384], sizes = [2, 128], strides = [1, 1]} : vector<2x512xf32> to vector<2x128xf32>
    %538 = arith.negf %537 : vector<2x128xf32>
    %539 = math.exp %538 : vector<2x128xf32>
    %cst_163 = arith.constant 1.000000e+00 : f32
    %540 = vector.broadcast %cst_163 : f32 to vector<2x128xf32>
    %541 = arith.addf %540, %539 : vector<2x128xf32>
    %542 = arith.divf %540, %541 : vector<2x128xf32>
    %543 = arith.mulf %534, %490 : vector<2x128xf32>
    %544 = arith.mulf %528, %536 : vector<2x128xf32>
    %545 = arith.addf %543, %544 : vector<2x128xf32>
    %546 = math.tanh %545 : vector<2x128xf32>
    %547 = arith.mulf %542, %546 : vector<2x128xf32>
    %548 = arith.truncf %547 : vector<2x128xf32> to vector<2x128xbf16>
    %c0_164 = arith.constant 0 : index
    %c0_165 = arith.constant 0 : index
    %549 = vector.load %arg5[%c0_164, %c0_165] : memref<128x128xbf16, #tpu.memory_space<vmem>>, vector<128x128xbf16>
    %cst_166 = arith.constant dense<0.000000e+00> : vector<2x128xf32>
    %550 = tpu.matmul %548, %549, %cst_166 {dimension_numbers = #tpu.dot_dimension_numbers<[1], [0], [0], [1], [0, 0, 1, 1], [], []>} : vector<2x128xbf16>, vector<128x128xbf16>, vector<2x128xf32> -> vector<2x128xf32>
    %c0_167 = arith.constant 0 : index
    %c0_168 = arith.constant 0 : index
    %551 = vector.load %arg6[%c0_167, %c0_168] : memref<1x128xf32, #tpu.memory_space<vmem>>, vector<1x128xf32>
    %552 = vector.broadcast %551 : vector<1x128xf32> to vector<2x128xf32>
    %553 = arith.addf %550, %552 : vector<2x128xf32>
    %c0_169 = arith.constant 0 : index
    %c0_170 = arith.constant 0 : index
    %554 = vector.load %arg7[%c0_169, %c0_170] : memref<2x128xf32, #tpu.memory_space<vmem>>, vector<2x128xf32>
    tpu.vector_store %arg7[%c0_169, %c0_170], %553 {strides = array<i32>} : memref<2x128xf32, #tpu.memory_space<vmem>>, vector<2x128xf32>,
    return
  }
}

</mosaic_0001>

<llo_original>
// kernel: lstm_model_forward.1
$region0: #{lstm_model_forward.1}
  #allocation0 [shape = 'u32[]', space=smem, size = 0x4, offset = 0x4, fixed_abs, tag = 'smem constant byte address 0x4 - core index']
  #allocation1 [shape = 'u32[144,128]{1,0:T(1,128)}', space=vmem, size = 0x12000, scoped, tag = 'internal scratch']
  #allocation2 [shape = 'f32[8,2,512]{2,1,0:T(2,128)}', space=vmem, size = 0x8000, scoped, tag = 'scratch operand']
  %s0 = inlined_call_operand.vmem [shape: f32[8,2,128], index: 0, kind: input, shape index: {}]
  %s1 = inlined_call_operand.hbm [shape: f32[128,512], index: 1, kind: input, shape index: {}]
  %s2 = inlined_call_operand.vmem [shape: f32[1,512], index: 2, kind: input, shape index: {}]
  %s3 = inlined_call_operand.hbm [shape: bf16[256,1024], index: 3, kind: input, shape index: {}]
  %s4 = inlined_call_operand.vmem [shape: f32[1,512], index: 4, kind: input, shape index: {}]
  %s5 = inlined_call_operand.vmem [shape: bf16[128,128], index: 5, kind: input, shape index: {}]
  %s6 = inlined_call_operand.vmem [shape: f32[1,128], index: 6, kind: input, shape index: {}]
  %s7 = inlined_call_operand.vmem [shape: f32[2,128], index: 7, kind: output, shape index: {}]
  %s8 = sld [smem:[#allocation0]]
  $region46: #{lstm_model_forward.1} parent=0
    _
  %s10 = ssub.s32 1, %s8
  %s11 = scalar_select 0, %s10, %s8
  $region1: #{lstm_model_forward.1} parent=0
    #allocation3 [shape = 'u8[262144]{0}', space=vmem, size = 0x40000, scoped, tag = 'input window, operand 1, single buffered']
    #allocation4 [shape = 's32[1]{0}', space=sflag, size = 0x4, scoped, tag = 'scoped memory for lstm_model_forward.1']
    #allocation5 [shape = 'u8[524288]{0}', space=vmem, size = 0x80000, scoped, tag = 'input window, operand 3, single buffered']
    #allocation6 [shape = 's32[1]{0}', space=sflag, size = 0x4, scoped, tag = 'scoped memory for lstm_model_forward.1']
    %12 = vsyncpa [#allocation4], 0
    %13 = vsyncpa [#allocation6], 0
    // Predicated region
    $region2: #{lstm_model_forward.1} parent=1 // pred_check
      _
    $region3: #{lstm_model_forward.1} parent=1 // pred_check_branch
      %15 = sbr.rel (0) target = $region5
    $region4: #{lstm_model_forward.1} parent=1 // pred_region
      _
    $region5: #{lstm_model_forward.1} parent=1 // pred_fallthru
      _
    // Predicated region
    $region6: #{lstm_model_forward.1} parent=1 // pred_check
      _
    $region7: #{lstm_model_forward.1} parent=1 // pred_check_branch
      %17 = sbr.rel (0) target = $region9
    $region8: #{lstm_model_forward.1} parent=1 // pred_region
      %s19 = ssub.s32 8192, 8192
      %20 = vsyncadd [#allocation4], %s19
      %s21 = sshll.u32 [#allocation3], 4
      %s22 = int_to_ptr.vmem [resolvable:$true] %s21
      %27 = dma.hbm_to_vmem [thread:$0]  %s1, 8192, %s22, [#allocation4], 512, 512, 32
    $region9: #{lstm_model_forward.1} parent=1 // pred_fallthru
      _
    // Predicated region
    $region10: #{lstm_model_forward.1} parent=1 // pred_check
      _
    $region11: #{lstm_model_forward.1} parent=1 // pred_check_branch
      %29 = sbr.rel (0) target = $region13
    $region12: #{lstm_model_forward.1} parent=1 // pred_region
      _
    $region13: #{lstm_model_forward.1} parent=1 // pred_fallthru
      _
    // Predicated region
    $region14: #{lstm_model_forward.1} parent=1 // pred_check
      _
    $region15: #{lstm_model_forward.1} parent=1 // pred_check_branch
      %31 = sbr.rel (0) target = $region17
    $region16: #{lstm_model_forward.1} parent=1 // pred_region
      %s33 = ssub.s32 16384, 16384
      %34 = vsyncadd [#allocation6], %s33
      %s35 = sshll.u32 [#allocation5], 4
      %s36 = int_to_ptr.vmem [resolvable:$true] %s35
      %41 = dma.hbm_to_vmem [thread:$0]  %s3, 16384, %s36, [#allocation6], 512, 512, 32
    $region17: #{lstm_model_forward.1} parent=1 // pred_fallthru
      _
    // Predicated region
    $region18: #{lstm_model_forward.1} parent=1 // pred_check
      _
    $region19: #{lstm_model_forward.1} parent=1 // pred_check_branch
      %43 = sbr.rel (0) target = $region21
    $region20: #{lstm_model_forward.1} parent=1 // pred_region
      _
    $region21: #{lstm_model_forward.1} parent=1 // pred_fallthru
      _
    // Predicated region
    $region22: #{lstm_model_forward.1} parent=1 // pred_check
      _
    $region23: #{lstm_model_forward.1} parent=1 // pred_check_branch
      %45 = sbr.rel (0) target = $region25
    $region24: #{lstm_model_forward.1} parent=1 // pred_region
      _
    $region25: #{lstm_model_forward.1} parent=1 // pred_fallthru
      _
    // Predicated region
    $region26: #{lstm_model_forward.1} parent=1 // pred_check
      _
    $region27: #{lstm_model_forward.1} parent=1 // pred_check_branch
      %47 = sbr.rel (0) target = $region29
    $region28: #{lstm_model_forward.1} parent=1 // pred_region
      _
    $region29: #{lstm_model_forward.1} parent=1 // pred_fallthru
      _
    // Predicated region
    $region30: #{lstm_model_forward.1} parent=1 // pred_check
      _
    $region31: #{lstm_model_forward.1} parent=1 // pred_check_branch
      %49 = sbr.rel (0) target = $region33
    $region32: #{lstm_model_forward.1} parent=1 // pred_region
      %50 = dma.done [#allocation4], 8192
    $region33: #{lstm_model_forward.1} parent=1 // pred_fallthru
      _
    // Predicated region
    $region34: #{lstm_model_forward.1} parent=1 // pred_check
      _
    $region35: #{lstm_model_forward.1} parent=1 // pred_check_branch
      %52 = sbr.rel (0) target = $region37
    $region36: #{lstm_model_forward.1} parent=1 // pred_region
      %53 = dma.done [#allocation6], 16384
    $region37: #{lstm_model_forward.1} parent=1 // pred_fallthru
      _
    %v55 = vld [vmem:[%s2] sm:$0xf]
    %v57 = vlaneseq
    %v58 = vshrl.u32 %v57, 7
    %v59 = vsub.s32 0, %v58
    %v60 = vrot.slane %v55, %v59
    %v61 = vlaneseq
    %v62 = vshrl.u32 %v61, 7
    %v63 = vsub.s32 1, %v62
    %v64 = vrot.slane %v55, %v63
    %v65 = vlaneseq
    %v66 = vshrl.u32 %v65, 7
    %v67 = vsub.s32 2, %v66
    %v68 = vrot.slane %v55, %v67
    %v69 = vlaneseq
    %v70 = vshrl.u32 %v69, 7
    %v71 = vsub.s32 3, %v70
    %v72 = vrot.slane %v55, %v71
    %v77 = vld [vmem:[%s4] sm:$0xf]
    %v79 = vlaneseq
    %v80 = vshrl.u32 %v79, 7
    %v81 = vsub.s32 0, %v80
    %v82 = vrot.slane %v77, %v81
    %v83 = vlaneseq
    %v84 = vshrl.u32 %v83, 7
    %v85 = vsub.s32 1, %v84
    %v86 = vrot.slane %v77, %v85
    %v87 = vlaneseq
    %v88 = vshrl.u32 %v87, 7
    %v89 = vsub.s32 2, %v88
    %v90 = vrot.slane %v77, %v89
    %v91 = vlaneseq
    %v92 = vshrl.u32 %v91, 7
    %v93 = vsub.s32 3, %v92
    %v94 = vrot.slane %v77, %v93
    %v99 = vld [vmem:[%s0] sm:$0x3]
    %v100 = vld [vmem:[#allocation3] sm:$0xff]
    %v101 = vld [vmem:[#allocation3 + $0x8] sm:$0xff]
    %v102 = vld [vmem:[#allocation3 + $0x10] sm:$0xff]
    %v103 = vld [vmem:[#allocation3 + $0x18] sm:$0xff]
    %v104 = vld [vmem:[#allocation3 + $0x20] sm:$0xff]
    %v105 = vld [vmem:[#allocation3 + $0x28] sm:$0xff]
    %v106 = vld [vmem:[#allocation3 + $0x30] sm:$0xff]
    %v107 = vld [vmem:[#allocation3 + $0x38] sm:$0xff]
    %v108 = vld [vmem:[#allocation3 + $0x40] sm:$0xff]
    %v109 = vld [vmem:[#allocation3 + $0x48] sm:$0xff]
    %v110 = vld [vmem:[#allocation3 + $0x50] sm:$0xff]
    %v111 = vld [vmem:[#allocation3 + $0x58] sm:$0xff]
    %v112 = vld [vmem:[#allocation3 + $0x60] sm:$0xff]
    %v113 = vld [vmem:[#allocation3 + $0x68] sm:$0xff]
    %v114 = vld [vmem:[#allocation3 + $0x70] sm:$0xff]
    %v115 = vld [vmem:[#allocation3 + $0x78] sm:$0xff]
    %v116 = vld [vmem:[#allocation3 + $0x80] sm:$0xff]
    %v117 = vld [vmem:[#allocation3 + $0x88] sm:$0xff]
    %v118 = vld [vmem:[#allocation3 + $0x90] sm:$0xff]
    %v119 = vld [vmem:[#allocation3 + $0x98] sm:$0xff]
    %v120 = vld [vmem:[#allocation3 + $0xa0] sm:$0xff]
    %v121 = vld [vmem:[#allocation3 + $0xa8] sm:$0xff]
    %v122 = vld [vmem:[#allocation3 + $0xb0] sm:$0xff]
    %v123 = vld [vmem:[#allocation3 + $0xb8] sm:$0xff]
    %v124 = vld [vmem:[#allocation3 + $0xc0] sm:$0xff]
    %v125 = vld [vmem:[#allocation3 + $0xc8] sm:$0xff]
    %v126 = vld [vmem:[#allocation3 + $0xd0] sm:$0xff]
    %v127 = vld [vmem:[#allocation3 + $0xd8] sm:$0xff]
    %v128 = vld [vmem:[#allocation3 + $0xe0] sm:$0xff]
    %v129 = vld [vmem:[#allocation3 + $0xe8] sm:$0xff]
    %v130 = vld [vmem:[#allocation3 + $0xf0] sm:$0xff]
    %v131 = vld [vmem:[#allocation3 + $0xf8] sm:$0xff]
    %v132 = vld [vmem:[#allocation3 + $0x100] sm:$0xff]
    %v133 = vld [vmem:[#allocation3 + $0x108] sm:$0xff]
    %v134 = vld [vmem:[#allocation3 + $0x110] sm:$0xff]
    %v135 = vld [vmem:[#allocation3 + $0x118] sm:$0xff]
    %v136 = vld [vmem:[#allocation3 + $0x120] sm:$0xff]
    %v137 = vld [vmem:[#allocation3 + $0x128] sm:$0xff]
    %v138 = vld [vmem:[#allocation3 + $0x130] sm:$0xff]
    %v139 = vld [vmem:[#allocation3 + $0x138] sm:$0xff]
    %v140 = vld [vmem:[#allocation3 + $0x140] sm:$0xff]
    %v141 = vld [vmem:[#allocation3 + $0x148] sm:$0xff]
    %v142 = vld [vmem:[#allocation3 + $0x150] sm:$0xff]
    %v143 = vld [vmem:[#allocation3 + $0x158] sm:$0xff]
    %v144 = vld [vmem:[#allocation3 + $0x160] sm:$0xff]
    %v145 = vld [vmem:[#allocation3 + $0x168] sm:$0xff]
    %v146 = vld [vmem:[#allocation3 + $0x170] sm:$0xff]
    %v147 = vld [vmem:[#allocation3 + $0x178] sm:$0xff]
    %v148 = vld [vmem:[#allocation3 + $0x180] sm:$0xff]
    %v149 = vld [vmem:[#allocation3 + $0x188] sm:$0xff]
    %v150 = vld [vmem:[#allocation3 + $0x190] sm:$0xff]
    %v151 = vld [vmem:[#allocation3 + $0x198] sm:$0xff]
    %v152 = vld [vmem:[#allocation3 + $0x1a0] sm:$0xff]
    %v153 = vld [vmem:[#allocation3 + $0x1a8] sm:$0xff]
    %v154 = vld [vmem:[#allocation3 + $0x1b0] sm:$0xff]
    %v155 = vld [vmem:[#allocation3 + $0x1b8] sm:$0xff]
    %v156 = vld [vmem:[#allocation3 + $0x1c0] sm:$0xff]
    %v157 = vld [vmem:[#allocation3 + $0x1c8] sm:$0xff]
    %v158 = vld [vmem:[#allocation3 + $0x1d0] sm:$0xff]
    %v159 = vld [vmem:[#allocation3 + $0x1d8] sm:$0xff]
    %v160 = vld [vmem:[#allocation3 + $0x1e0] sm:$0xff]
    %v161 = vld [vmem:[#allocation3 + $0x1e8] sm:$0xff]
    %v162 = vld [vmem:[#allocation3 + $0x1f0] sm:$0xff]
    %v163 = vld [vmem:[#allocation3 + $0x1f8] sm:$0xff]
    %164 = vmatprep.subr.mxu0 %v101
    %165 = vmatpush1.msra.mxu0 %v100
    %166 = vmatprep.subr.mxu0 %v105
    %167 = vmatpush1.msra.mxu0 %v104
    %168 = vmatprep.subr.mxu0 %v109
    %169 = vmatpush1.msra.mxu0 %v108
    %170 = vmatprep.subr.mxu0 %v113
    %171 = vmatpush1.msra.mxu0 %v112
    %172 = vmatprep.subr.mxu0 %v117
    %173 = vmatpush1.msra.mxu0 %v116
    %174 = vmatprep.subr.mxu0 %v121
    %175 = vmatpush1.msra.mxu0 %v120
    %176 = vmatprep.subr.mxu0 %v125
    %177 = vmatpush1.msra.mxu0 %v124
    %178 = vmatprep.subr.mxu0 %v129
    %179 = vmatpush1.msra.mxu0 %v128
    %180 = vmatprep.subr.mxu0 %v133
    %181 = vmatpush1.msra.mxu0 %v132
    %182 = vmatprep.subr.mxu0 %v137
    %183 = vmatpush1.msra.mxu0 %v136
    %184 = vmatprep.subr.mxu0 %v141
    %185 = vmatpush1.msra.mxu0 %v140
    %186 = vmatprep.subr.mxu0 %v145
    %187 = vmatpush1.msra.mxu0 %v144
    %188 = vmatprep.subr.mxu0 %v149
    %189 = vmatpush1.msra.mxu0 %v148
    %190 = vmatprep.subr.mxu0 %v153
    %191 = vmatpush1.msra.mxu0 %v152
    %192 = vmatprep.subr.mxu0 %v157
    %193 = vmatpush1.msra.mxu0 %v156
    %194 = vmatprep.subr.mxu0 %v161
    %195 = vmatpush1.msra.mxu0 %v160
    %196 = vmatprep.subr.mxu0 0.0
    %197 = vmatpush1.msra.mxu0 0.0
    %198 = vmatprep.subr.mxu0 0.0
    %199 = vmatpush1.msra.mxu0 0.0
    %200 = vmatprep.subr.mxu0 0.0
    %201 = vmatpush1.msra.mxu0 0.0
    %202 = vmatprep.subr.mxu0 0.0
    %203 = vmatpush1.msra.mxu0 0.0
    %204 = vmatprep.subr.mxu0 0.0
    %205 = vmatpush1.msra.mxu0 0.0
    %206 = vmatprep.subr.mxu0 0.0
    %207 = vmatpush1.msra.mxu0 0.0
    %208 = vmatprep.subr.mxu0 0.0
    %209 = vmatpush1.msra.mxu0 0.0
    %210 = vmatprep.subr.mxu0 0.0
    %211 = vmatpush1.msra.mxu0 0.0
    %212 = vmatprep.subr.mxu0 0.0
    %213 = vmatpush1.msra.mxu0 0.0
    %214 = vmatprep.subr.mxu0 0.0
    %215 = vmatpush1.msra.mxu0 0.0
    %216 = vmatprep.subr.mxu0 0.0
    %217 = vmatpush1.msra.mxu0 0.0
    %218 = vmatprep.subr.mxu0 0.0
    %219 = vmatpush1.msra.mxu0 0.0
    %220 = vmatprep.subr.mxu0 0.0
    %221 = vmatpush1.msra.mxu0 0.0
    %222 = vmatprep.subr.mxu0 0.0
    %223 = vmatpush1.msra.mxu0 0.0
    %224 = vmatprep.subr.mxu0 0.0
    %225 = vmatpush1.msra.mxu0 0.0
    %226 = vmatprep.subr.mxu0 0.0
    %227 = vmatpush1.msra.mxu0 0.0
    %228 = vmatprep.mubr.f32.mxu0 0.0
    %229 = vmatmul.mubr.f32.gmra.mrb[0].mxu0 %v99
    %v230 = vpop.f32.mrb[0].mxu0
    %v231 = vadd.f32 %v60, %v230
    %v232 = vpop.f32.mrb[0].mxu0
    %v233 = vadd.f32 %v64, %v232
    %234 = vdwg.mxu0
    %235 = vmatprep.subr.mxu0 %v103
    %236 = vmatpush1.msra.mxu0 %v102
    %237 = vmatprep.subr.mxu0 %v107
    %238 = vmatpush1.msra.mxu0 %v106
    %239 = vmatprep.subr.mxu0 %v111
    %240 = vmatpush1.msra.mxu0 %v110
    %241 = vmatprep.subr.mxu0 %v115
    %242 = vmatpush1.msra.mxu0 %v114
    %243 = vmatprep.subr.mxu0 %v119
    %244 = vmatpush1.msra.mxu0 %v118
    %245 = vmatprep.subr.mxu0 %v123
    %246 = vmatpush1.msra.mxu0 %v122
    %247 = vmatprep.subr.mxu0 %v127
    %248 = vmatpush1.msra.mxu0 %v126
    %249 = vmatprep.subr.mxu0 %v131
    %250 = vmatpush1.msra.mxu0 %v130
    %251 = vmatprep.subr.mxu0 %v135
    %252 = vmatpush1.msra.mxu0 %v134
    %253 = vmatprep.subr.mxu0 %v139
    %254 = vmatpush1.msra.mxu0 %v138
    %255 = vmatprep.subr.mxu0 %v143
    %256 = vmatpush1.msra.mxu0 %v142
    %257 = vmatprep.subr.mxu0 %v147
    %258 = vmatpush1.msra.mxu0 %v146
    %259 = vmatprep.subr.mxu0 %v151
    %260 = vmatpush1.msra.mxu0 %v150
    %261 = vmatprep.subr.mxu0 %v155
    %262 = vmatpush1.msra.mxu0 %v154
    %263 = vmatprep.subr.mxu0 %v159
    %264 = vmatpush1.msra.mxu0 %v158
    %265 = vmatprep.subr.mxu0 %v163
    %266 = vmatpush1.msra.mxu0 %v162
    %267 = vmatprep.subr.mxu0 0.0
    %268 = vmatpush1.msra.mxu0 0.0
    %269 = vmatprep.subr.mxu0 0.0
    %270 = vmatpush1.msra.mxu0 0.0
    %271 = vmatprep.subr.mxu0 0.0
    %272 = vmatpush1.msra.mxu0 0.0
    %273 = vmatprep.subr.mxu0 0.0
    %274 = vmatpush1.msra.mxu0 0.0
    %275 = vmatprep.subr.mxu0 0.0
    %276 = vmatpush1.msra.mxu0 0.0
    %277 = vmatprep.subr.mxu0 0.0
    %278 = vmatpush1.msra.mxu0 0.0
    %279 = vmatprep.subr.mxu0 0.0
    %280 = vmatpush1.msra.mxu0 0.0
    %281 = vmatprep.subr.mxu0 0.0
    %282 = vmatpush1.msra.mxu0 0.0
    %283 = vmatprep.subr.mxu0 0.0
    %284 = vmatpush1.msra.mxu0 0.0
    %285 = vmatprep.subr.mxu0 0.0
    %286 = vmatpush1.msra.mxu0 0.0
    %287 = vmatprep.subr.mxu0 0.0
    %288 = vmatpush1.msra.mxu0 0.0
    %289 = vmatprep.subr.mxu0 0.0
    %290 = vmatpush1.msra.mxu0 0.0
    %291 = vmatprep.subr.mxu0 0.0
    %292 = vmatpush1.msra.mxu0 0.0
    %293 = vmatprep.subr.mxu0 0.0
    %294 = vmatpush1.msra.mxu0 0.0
    %295 = vmatprep.subr.mxu0 0.0
    %296 = vmatpush1.msra.mxu0 0.0
    %297 = vmatprep.subr.mxu0 0.0
    %298 = vmatpush1.msra.mxu0 0.0
    %299 = vmatprep.mubr.f32.mxu0 0.0
    %300 = vmatmul.mubr.f32.gmra.mrb[0].mxu0 %v99
    %v301 = vpop.f32.mrb[0].mxu0
    %v302 = vadd.f32 %v68, %v301
    %v303 = vpop.f32.mrb[0].mxu0
    %v304 = vadd.f32 %v72, %v303
    %305 = vdwg.mxu0
    %v310 = vcombine.low %v231, %v233
    %v311 = vcombine.low %v302, %v304
    %v313 = vunpack.c.l.s4 1983009808
    %v314 = vunpack.c.0.s8 %v313
    %v315 = vlaneseq
    %v316 = vshrl.u32 %v315, 7
    %v317 = vsub.s32 %v314, %v316
    %v318 = vrot.slane %v310, %v317
    %v320 = vunpack.c.l.s4 1983009808
    %v321 = vunpack.c.0.s8 %v320
    %v322 = vlaneseq
    %v323 = vshrl.u32 %v322, 7
    %v324 = vsub.s32 %v321, %v323
    %v325 = vrot.slane %v311, %v324
    %v326 = vcombine.low %v318, %v325
    %328 = vst [vmem:[#allocation2] sm:$0xff] %v326
    %s329 = scalar_lea.vmem %s0, 2
    %v330 = vld [vmem:[%s329] sm:$0x3]
    %v331 = vld [vmem:[#allocation3] sm:$0xff]
    %v332 = vld [vmem:[#allocation3 + $0x8] sm:$0xff]
    %v333 = vld [vmem:[#allocation3 + $0x10] sm:$0xff]
    %v334 = vld [vmem:[#allocation3 + $0x18] sm:$0xff]
    %v335 = vld [vmem:[#allocation3 + $0x20] sm:$0xff]
    %v336 = vld [vmem:[#allocation3 + $0x28] sm:$0xff]
    %v337 = vld [vmem:[#allocation3 + $0x30] sm:$0xff]
    %v338 = vld [vmem:[#allocation3 + $0x38] sm:$0xff]
    %v339 = vld [vmem:[#allocation3 + $0x40] sm:$0xff]
    %v340 = vld [vmem:[#allocation3 + $0x48] sm:$0xff]
    %v341 = vld [vmem:[#allocation3 + $0x50] sm:$0xff]
    %v342 = vld [vmem:[#allocation3 + $0x58] sm:$0xff]
    %v343 = vld [vmem:[#allocation3 + $0x60] sm:$0xff]
    %v344 = vld [vmem:[#allocation3 + $0x68] sm:$0xff]
    %v345 = vld [vmem:[#allocation3 + $0x70] sm:$0xff]
    %v346 = vld [vmem:[#allocation3 + $0x78] sm:$0xff]
    %v347 = vld [vmem:[#allocation3 + $0x80] sm:$0xff]
    %v348 = vld [vmem:[#allocation3 + $0x88] sm:$0xff]
    %v349 = vld [vmem:[#allocation3 + $0x90] sm:$0xff]
    %v350 = vld [vmem:[#allocation3 + $0x98] sm:$0xff]
    %v351 = vld [vmem:[#allocation3 + $0xa0] sm:$0xff]
    %v352 = vld [vmem:[#allocation3 + $0xa8] sm:$0xff]
    %v353 = vld [vmem:[#allocation3 + $0xb0] sm:$0xff]
    %v354 = vld [vmem:[#allocation3 + $0xb8] sm:$0xff]
    %v355 = vld [vmem:[#allocation3 + $0xc0] sm:$0xff]
    %v356 = vld [vmem:[#allocation3 + $0xc8] sm:$0xff]
    %v357 = vld [vmem:[#allocation3 + $0xd0] sm:$0xff]
    %v358 = vld [vmem:[#allocation3 + $0xd8] sm:$0xff]
    %v359 = vld [vmem:[#allocation3 + $0xe0] sm:$0xff]
    %v360 = vld [vmem:[#allocation3 + $0xe8] sm:$0xff]
    %v361 = vld [vmem:[#allocation3 + $0xf0] sm:$0xff]
    %v362 = vld [vmem:[#allocation3 + $0xf8] sm:$0xff]
    %v363 = vld [vmem:[#allocation3 + $0x100] sm:$0xff]
    %v364 = vld [vmem:[#allocation3 + $0x108] sm:$0xff]
    %v365 = vld [vmem:[#allocation3 + $0x110] sm:$0xff]
    %v366 = vld [vmem:[#allocation3 + $0x118] sm:$0xff]
    %v367 = vld [vmem:[#allocation3 + $0x120] sm:$0xff]
    %v368 = vld [vmem:[#allocation3 + $0x128] sm:$0xff]
    %v369 = vld [vmem:[#allocation3 + $0x130] sm:$0xff]
    %v370 = vld [vmem:[#allocation3 + $0x138] sm:$0xff]
    %v371 = vld [vmem:[#allocation3 + $0x140] sm:$0xff]
    %v372 = vld [vmem:[#allocation3 + $0x148] sm:$0xff]
    %v373 = vld [vmem:[#allocation3 + $0x150] sm:$0xff]
    %v374 = vld [vmem:[#allocation3 + $0x158] sm:$0xff]
    %v375 = vld [vmem:[#allocation3 + $0x160] sm:$0xff]
    %v376 = vld [vmem:[#allocation3 + $0x168] sm:$0xff]
    %v377 = vld [vmem:[#allocation3 + $0x170] sm:$0xff]
    %v378 = vld [vmem:[#allocation3 + $0x178] sm:$0xff]
    %v379 = vld [vmem:[#allocation3 + $0x180] sm:$0xff]
    %v380 = vld [vmem:[#allocation3 + $0x188] sm:$0xff]
    %v381 = vld [vmem:[#allocation3 + $0x190] sm:$0xff]
    %v382 = vld [vmem:[#allocation3 + $0x198] sm:$0xff]
    %v383 = vld [vmem:[#allocation3 + $0x1a0] sm:$0xff]
    %v384 = vld [vmem:[#allocation3 + $0x1a8] sm:$0xff]
    %v385 = vld [vmem:[#allocation3 + $0x1b0] sm:$0xff]
    %v386 = vld [vmem:[#allocation3 + $0x1b8] sm:$0xff]
    %v387 = vld [vmem:[#allocation3 + $0x1c0] sm:$0xff]
    %v388 = vld [vmem:[#allocation3 + $0x1c8] sm:$0xff]
    %v389 = vld [vmem:[#allocation3 + $0x1d0] sm:$0xff]
    %v390 = vld [vmem:[#allocation3 + $0x1d8] sm:$0xff]
    %v391 = vld [vmem:[#allocation3 + $0x1e0] sm:$0xff]
    %v392 = vld [vmem:[#allocation3 + $0x1e8] sm:$0xff]
    %v393 = vld [vmem:[#allocation3 + $0x1f0] sm:$0xff]
    %v394 = vld [vmem:[#allocation3 + $0x1f8] sm:$0xff]
    %395 = vmatprep.subr.mxu0 %v332
    %396 = vmatpush1.msra.mxu0 %v331
    %397 = vmatprep.subr.mxu0 %v336
    %398 = vmatpush1.msra.mxu0 %v335
    %399 = vmatprep.subr.mxu0 %v340
    %400 = vmatpush1.msra.mxu0 %v339
    %401 = vmatprep.subr.mxu0 %v344
    %402 = vmatpush1.msra.mxu0 %v343
    %403 = vmatprep.subr.mxu0 %v348
    %404 = vmatpush1.msra.mxu0 %v347
    %405 = vmatprep.subr.mxu0 %v352
    %406 = vmatpush1.msra.mxu0 %v351
    %407 = vmatprep.subr.mxu0 %v356
    %408 = vmatpush1.msra.mxu0 %v355
    %409 = vmatprep.subr.mxu0 %v360
    %410 = vmatpush1.msra.mxu0 %v359
    %411 = vmatprep.subr.mxu0 %v364
    %412 = vmatpush1.msra.mxu0 %v363
    %413 = vmatprep.subr.mxu0 %v368
    %414 = vmatpush1.msra.mxu0 %v367
    %415 = vmatprep.subr.mxu0 %v372
    %416 = vmatpush1.msra.mxu0 %v371
    %417 = vmatprep.subr.mxu0 %v376
    %418 = vmatpush1.msra.mxu0 %v375
    %419 = vmatprep.subr.mxu0 %v380
    %420 = vmatpush1.msra.mxu0 %v379
    %421 = vmatprep.subr.mxu0 %v384
    %422 = vmatpush1.msra.mxu0 %v383
    %423 = vmatprep.subr.mxu0 %v388
    %424 = vmatpush1.msra.mxu0 %v387
    %425 = vmatprep.subr.mxu0 %v392
    %426 = vmatpush1.msra.mxu0 %v391
    %427 = vmatprep.subr.mxu0 0.0
    %428 = vmatpush1.msra.mxu0 0.0
    %429 = vmatprep.subr.mxu0 0.0
    %430 = vmatpush1.msra.mxu0 0.0
    %431 = vmatprep.subr.mxu0 0.0
    %432 = vmatpush1.msra.mxu0 0.0
    %433 = vmatprep.subr.mxu0 0.0
    %434 = vmatpush1.msra.mxu0 0.0
    %435 = vmatprep.subr.mxu0 0.0
    %436 = vmatpush1.msra.mxu0 0.0
    %437 = vmatprep.subr.mxu0 0.0
    %438 = vmatpush1.msra.mxu0 0.0
    %439 = vmatprep.subr.mxu0 0.0
    %440 = vmatpush1.msra.mxu0 0.0
    %441 = vmatprep.subr.mxu0 0.0
    %442 = vmatpush1.msra.mxu0 0.0
    %443 = vmatprep.subr.mxu0 0.0
    %444 = vmatpush1.msra.mxu0 0.0
    %445 = vmatprep.subr.mxu0 0.0
    %446 = vmatpush1.msra.mxu0 0.0
    %447 = vmatprep.subr.mxu0 0.0
    %448 = vmatpush1.msra.mxu0 0.0
    %449 = vmatprep.subr.mxu0 0.0
    %450 = vmatpush1.msra.mxu0 0.0
    %451 = vmatprep.subr.mxu0 0.0
    %452 = vmatpush1.msra.mxu0 0.0
    %453 = vmatprep.subr.mxu0 0.0
    %454 = vmatpush1.msra.mxu0 0.0
    %455 = vmatprep.subr.mxu0 0.0
    %456 = vmatpush1.msra.mxu0 0.0
    %457 = vmatprep.subr.mxu0 0.0
    %458 = vmatpush1.msra.mxu0 0.0
    %459 = vmatprep.mubr.f32.mxu0 0.0
    %460 = vmatmul.mubr.f32.gmra.mrb[0].mxu0 %v330
    %v461 = vpop.f32.mrb[0].mxu0
    %v462 = vadd.f32 %v60, %v461
    %v463 = vpop.f32.mrb[0].mxu0
    %v464 = vadd.f32 %v64, %v463
    %465 = vdwg.mxu0
    %466 = vmatprep.subr.mxu0 %v334
    %467 = vmatpush1.msra.mxu0 %v333
    %468 = vmatprep.subr.mxu0 %v338
    %469 = vmatpush1.msra.mxu0 %v337
    %470 = vmatprep.subr.mxu0 %v342
    %471 = vmatpush1.msra.mxu0 %v341
    %472 = vmatprep.subr.mxu0 %v346
    %473 = vmatpush1.msra.mxu0 %v345
    %474 = vmatprep.subr.mxu0 %v350
    %475 = vmatpush1.msra.mxu0 %v349
    %476 = vmatprep.subr.mxu0 %v354
    %477 = vmatpush1.msra.mxu0 %v353
    %478 = vmatprep.subr.mxu0 %v358
    %479 = vmatpush1.msra.mxu0 %v357
    %480 = vmatprep.subr.mxu0 %v362
    %481 = vmatpush1.msra.mxu0 %v361
    %482 = vmatprep.subr.mxu0 %v366
    %483 = vmatpush1.msra.mxu0 %v365
    %484 = vmatprep.subr.mxu0 %v370
    %485 = vmatpush1.msra.mxu0 %v369
    %486 = vmatprep.subr.mxu0 %v374
    %487 = vmatpush1.msra.mxu0 %v373
    %488 = vmatprep.subr.mxu0 %v378
    %489 = vmatpush1.msra.mxu0 %v377
    %490 = vmatprep.subr.mxu0 %v382
    %491 = vmatpush1.msra.mxu0 %v381
    %492 = vmatprep.subr.mxu0 %v386
    %493 = vmatpush1.msra.mxu0 %v385
    %494 = vmatprep.subr.mxu0 %v390
    %495 = vmatpush1.msra.mxu0 %v389
    %496 = vmatprep.subr.mxu0 %v394
    %497 = vmatpush1.msra.mxu0 %v393
    %498 = vmatprep.subr.mxu0 0.0
    %499 = vmatpush1.msra.mxu0 0.0
    %500 = vmatprep.subr.mxu0 0.0
    %501 = vmatpush1.msra.mxu0 0.0
    %502 = vmatprep.subr.mxu0 0.0
    %503 = vmatpush1.msra.mxu0 0.0
    %504 = vmatprep.subr.mxu0 0.0
    %505 = vmatpush1.msra.mxu0 0.0
    %506 = vmatprep.subr.mxu0 0.0
    %507 = vmatpush1.msra.mxu0 0.0
    %508 = vmatprep.subr.mxu0 0.0
    %509 = vmatpush1.msra.mxu0 0.0
    %510 = vmatprep.subr.mxu0 0.0
    %511 = vmatpush1.msra.mxu0 0.0
    %512 = vmatprep.subr.mxu0 0.0
    %513 = vmatpush1.msra.mxu0 0.0
    %514 = vmatprep.subr.mxu0 0.0
    %515 = vmatpush1.msra.mxu0 0.0
    %516 = vmatprep.subr.mxu0 0.0
    %517 = vmatpush1.msra.mxu0 0.0
    %518 = vmatprep.subr.mxu0 0.0
    %519 = vmatpush1.msra.mxu0 0.0
    %520 = vmatprep.subr.mxu0 0.0
    %521 = vmatpush1.msra.mxu0 0.0
    %522 = vmatprep.subr.mxu0 0.0
    %523 = vmatpush1.msra.mxu0 0.0
    %524 = vmatprep.subr.mxu0 0.0
    %525 = vmatpush1.msra.mxu0 0.0
    %526 = vmatprep.subr.mxu0 0.0
    %527 = vmatpush1.msra.mxu0 0.0
    %528 = vmatprep.subr.mxu0 0.0
    %529 = vmatpush1.msra.mxu0 0.0
    %530 = vmatprep.mubr.f32.mxu0 0.0
    %531 = vmatmul.mubr.f32.gmra.mrb[0].mxu0 %v330
    %v532 = vpop.f32.mrb[0].mxu0
    %v533 = vadd.f32 %v68, %v532
    %v534 = vpop.f32.mrb[0].mxu0
    %v535 = vadd.f32 %v72, %v534
    %536 = vdwg.mxu0
    %v541 = vcombine.low %v462, %v464
    %v542 = vcombine.low %v533, %v535
    %v544 = vunpack.c.l.s4 1983009808
    %v545 = vunpack.c.0.s8 %v544
    %v546 = vlaneseq
    %v547 = vshrl.u32 %v546, 7
    %v548 = vsub.s32 %v545, %v547
    %v549 = vrot.slane %v541, %v548
    %v551 = vunpack.c.l.s4 1983009808
    %v552 = vunpack.c.0.s8 %v551
    %v553 = vlaneseq
    %v554 = vshrl.u32 %v553, 7
    %v555 = vsub.s32 %v552, %v554
    %v556 = vrot.slane %v542, %v555
    %v557 = vcombine.low %v549, %v556
    %s559 = scalar_lea.vmem [#allocation2], 8
    %560 = vst [vmem:[%s559] sm:$0xff] %v557
    %s561 = scalar_lea.vmem %s0, 4
    %v562 = vld [vmem:[%s561] sm:$0x3]
    %v563 = vld [vmem:[#allocation3] sm:$0xff]
    %v564 = vld [vmem:[#allocation3 + $0x8] sm:$0xff]
    %v565 = vld [vmem:[#allocation3 + $0x10] sm:$0xff]
    %v566 = vld [vmem:[#allocation3 + $0x18] sm:$0xff]
    %v567 = vld [vmem:[#allocation3 + $0x20] sm:$0xff]
    %v568 = vld [vmem:[#allocation3 + $0x28] sm:$0xff]
    %v569 = vld [vmem:[#allocation3 + $0x30] sm:$0xff]
    %v570 = vld [vmem:[#allocation3 + $0x38] sm:$0xff]
    %v571 = vld [vmem:[#allocation3 + $0x40] sm:$0xff]
    %v572 = vld [vmem:[#allocation3 + $0x48] sm:$0xff]
    %v573 = vld [vmem:[#allocation3 + $0x50] sm:$0xff]
    %v574 = vld [vmem:[#allocation3 + $0x58] sm:$0xff]
    %v575 = vld [vmem:[#allocation3 + $0x60] sm:$0xff]
    %v576 = vld [vmem:[#allocation3 + $0x68] sm:$0xff]
    %v577 = vld [vmem:[#allocation3 + $0x70] sm:$0xff]
    %v578 = vld [vmem:[#allocation3 + $0x78] sm:$0xff]
    %v579 = vld [vmem:[#allocation3 + $0x80] sm:$0xff]
    %v580 = vld [vmem:[#allocation3 + $0x88] sm:$0xff]
    %v581 = vld [vmem:[#allocation3 + $0x90] sm:$0xff]
    %v582 = vld [vmem:[#allocation3 + $0x98] sm:$0xff]
    %v583 = vld [vmem:[#allocation3 + $0xa0] sm:$0xff]
    %v584 = vld [vmem:[#allocation3 + $0xa8] sm:$0xff]
    %v585 = vld [vmem:[#allocation3 + $0xb0] sm:$0xff]
    %v586 = vld [vmem:[#allocation3 + $0xb8] sm:$0xff]
    %v587 = vld [vmem:[#allocation3 + $0xc0] sm:$0xff]
    %v588 = vld [vmem:[#allocation3 + $0xc8] sm:$0xff]
    %v589 = vld [vmem:[#allocation3 + $0xd0] sm:$0xff]
    %v590 = vld [vmem:[#allocation3 + $0xd8] sm:$0xff]
    %v591 = vld [vmem:[#allocation3 + $0xe0] sm:$0xff]
    %v592 = vld [vmem:[#allocation3 + $0xe8] sm:$0xff]
    %v593 = vld [vmem:[#allocation3 + $0xf0] sm:$0xff]
    %v594 = vld [vmem:[#allocation3 + $0xf8] sm:$0xff]
    %v595 = vld [vmem:[#allocation3 + $0x100] sm:$0xff]
    %v596 = vld [vmem:[#allocation3 + $0x108] sm:$0xff]
    %v597 = vld [vmem:[#allocation3 + $0x110] sm:$0xff]
    %v598 = vld [vmem:[#allocation3 + $0x118] sm:$0xff]
    %v599 = vld [vmem:[#allocation3 + $0x120] sm:$0xff]
    %v600 = vld [vmem:[#allocation3 + $0x128] sm:$0xff]
    %v601 = vld [vmem:[#allocation3 + $0x130] sm:$0xff]
    %v602 = vld [vmem:[#allocation3 + $0x138] sm:$0xff]
    %v603 = vld [vmem:[#allocation3 + $0x140] sm:$0xff]
    %v604 = vld [vmem:[#allocation3 + $0x148] sm:$0xff]
    %v605 = vld [vmem:[#allocation3 + $0x150] sm:$0xff]
    %v606 = vld [vmem:[#allocation3 + $0x158] sm:$0xff]
    %v607 = vld [vmem:[#allocation3 + $0x160] sm:$0xff]
    %v608 = vld [vmem:[#allocation3 + $0x168] sm:$0xff]
    %v609 = vld [vmem:[#allocation3 + $0x170] sm:$0xff]
    %v610 = vld [vmem:[#allocation3 + $0x178] sm:$0xff]
    %v611 = vld [vmem:[#allocation3 + $0x180] sm:$0xff]
    %v612 = vld [vmem:[#allocation3 + $0x188] sm:$0xff]
    %v613 = vld [vmem:[#allocation3 + $0x190] sm:$0xff]
    %v614 = vld [vmem:[#allocation3 + $0x198] sm:$0xff]
    %v615 = vld [vmem:[#allocation3 + $0x1a0] sm:$0xff]
    %v616 = vld [vmem:[#allocation3 + $0x1a8] sm:$0xff]
    %v617 = vld [vmem:[#allocation3 + $0x1b0] sm:$0xff]
    %v618 = vld [vmem:[#allocation3 + $0x1b8] sm:$0xff]
    %v619 = vld [vmem:[#allocation3 + $0x1c0] sm:$0xff]
    %v620 = vld [vmem:[#allocation3 + $0x1c8] sm:$0xff]
    %v621 = vld [vmem:[#allocation3 + $0x1d0] sm:$0xff]
    %v622 = vld [vmem:[#allocation3 + $0x1d8] sm:$0xff]
    %v623 = vld [vmem:[#allocation3 + $0x1e0] sm:$0xff]
    %v624 = vld [vmem:[#allocation3 + $0x1e8] sm:$0xff]
    %v625 = vld [vmem:[#allocation3 + $0x1f0] sm:$0xff]
    %v626 = vld [vmem:[#allocation3 + $0x1f8] sm:$0xff]
    %627 = vmatprep.subr.mxu0 %v564
    %628 = vmatpush1.msra.mxu0 %v563
    %629 = vmatprep.subr.mxu0 %v568
    %630 = vmatpush1.msra.mxu0 %v567
    %631 = vmatprep.subr.mxu0 %v572
    %632 = vmatpush1.msra.mxu0 %v571
    %633 = vmatprep.subr.mxu0 %v576
    %634 = vmatpush1.msra.mxu0 %v575
    %635 = vmatprep.subr.mxu0 %v580
    %636 = vmatpush1.msra.mxu0 %v579
    %637 = vmatprep.subr.mxu0 %v584
    %638 = vmatpush1.msra.mxu0 %v583
    %639 = vmatprep.subr.mxu0 %v588
    %640 = vmatpush1.msra.mxu0 %v587
    %641 = vmatprep.subr.mxu0 %v592
    %642 = vmatpush1.msra.mxu0 %v591
    %643 = vmatprep.subr.mxu0 %v596
    %644 = vmatpush1.msra.mxu0 %v595
    %645 = vmatprep.subr.mxu0 %v600
    %646 = vmatpush1.msra.mxu0 %v599
    %647 = vmatprep.subr.mxu0 %v604
    %648 = vmatpush1.msra.mxu0 %v603
    %649 = vmatprep.subr.mxu0 %v608
    %650 = vmatpush1.msra.mxu0 %v607
    %651 = vmatprep.subr.mxu0 %v612
    %652 = vmatpush1.msra.mxu0 %v611
    %653 = vmatprep.subr.mxu0 %v616
    %654 = vmatpush1.msra.mxu0 %v615
    %655 = vmatprep.subr.mxu0 %v620
    %656 = vmatpush1.msra.mxu0 %v619
    %657 = vmatprep.subr.mxu0 %v624
    %658 = vmatpush1.msra.mxu0 %v623
    %659 = vmatprep.subr.mxu0 0.0
    %660 = vmatpush1.msra.mxu0 0.0
    %661 = vmatprep.subr.mxu0 0.0
    %662 = vmatpush1.msra.mxu0 0.0
    %663 = vmatprep.subr.mxu0 0.0
    %664 = vmatpush1.msra.mxu0 0.0
    %665 = vmatprep.subr.mxu0 0.0
    %666 = vmatpush1.msra.mxu0 0.0
    %667 = vmatprep.subr.mxu0 0.0
    %668 = vmatpush1.msra.mxu0 0.0
    %669 = vmatprep.subr.mxu0 0.0
    %670 = vmatpush1.msra.mxu0 0.0
    %671 = vmatprep.subr.mxu0 0.0
    %672 = vmatpush1.msra.mxu0 0.0
    %673 = vmatprep.subr.mxu0 0.0
    %674 = vmatpush1.msra.mxu0 0.0
    %675 = vmatprep.subr.mxu0 0.0
    %676 = vmatpush1.msra.mxu0 0.0
    %677 = vmatprep.subr.mxu0 0.0
    %678 = vmatpush1.msra.mxu0 0.0
    %679 = vmatprep.subr.mxu0 0.0
    %680 = vmatpush1.msra.mxu0 0.0
    %681 = vmatprep.subr.mxu0 0.0
    %682 = vmatpush1.msra.mxu0 0.0
    %683 = vmatprep.subr.mxu0 0.0
    %684 = vmatpush1.msra.mxu0 0.0
    %685 = vmatprep.subr.mxu0 0.0
    %686 = vmatpush1.msra.mxu0 0.0
    %687 = vmatprep.subr.mxu0 0.0
    %688 = vmatpush1.msra.mxu0 0.0
    %689 = vmatprep.subr.mxu0 0.0
    %690 = vmatpush1.msra.mxu0 0.0
    %691 = vmatprep.mubr.f32.mxu0 0.0
    %692 = vmatmul.mubr.f32.gmra.mrb[0].mxu0 %v562
    %v693 = vpop.f32.mrb[0].mxu0
    %v694 = vadd.f32 %v60, %v693
    %v695 = vpop.f32.mrb[0].mxu0
    %v696 = vadd.f32 %v64, %v695
    %697 = vdwg.mxu0
    %698 = vmatprep.subr.mxu0 %v566
    %699 = vmatpush1.msra.mxu0 %v565
    %700 = vmatprep.subr.mxu0 %v570
    %701 = vmatpush1.msra.mxu0 %v569
    %702 = vmatprep.subr.mxu0 %v574
    %703 = vmatpush1.msra.mxu0 %v573
    %704 = vmatprep.subr.mxu0 %v578
    %705 = vmatpush1.msra.mxu0 %v577
    %706 = vmatprep.subr.mxu0 %v582
    %707 = vmatpush1.msra.mxu0 %v581
    %708 = vmatprep.subr.mxu0 %v586
    %709 = vmatpush1.msra.mxu0 %v585
    %710 = vmatprep.subr.mxu0 %v590
    %711 = vmatpush1.msra.mxu0 %v589
    %712 = vmatprep.subr.mxu0 %v594
    %713 = vmatpush1.msra.mxu0 %v593
    %714 = vmatprep.subr.mxu0 %v598
    %715 = vmatpush1.msra.mxu0 %v597
    %716 = vmatprep.subr.mxu0 %v602
    %717 = vmatpush1.msra.mxu0 %v601
    %718 = vmatprep.subr.mxu0 %v606
    %719 = vmatpush1.msra.mxu0 %v605
    %720 = vmatprep.subr.mxu0 %v610
    %721 = vmatpush1.msra.mxu0 %v609
    %722 = vmatprep.subr.mxu0 %v614
    %723 = vmatpush1.msra.mxu0 %v613
    %724 = vmatprep.subr.mxu0 %v618
    %725 = vmatpush1.msra.mxu0 %v617
    %726 = vmatprep.subr.mxu0 %v622
    %727 = vmatpush1.msra.mxu0 %v621
    %728 = vmatprep.subr.mxu0 %v626
    %729 = vmatpush1.msra.mxu0 %v625
    %730 = vmatprep.subr.mxu0 0.0
    %731 = vmatpush1.msra.mxu0 0.0
    %732 = vmatprep.subr.mxu0 0.0
    %733 = vmatpush1.msra.mxu0 0.0
    %734 = vmatprep.subr.mxu0 0.0
    %735 = vmatpush1.msra.mxu0 0.0
    %736 = vmatprep.subr.mxu0 0.0
    %737 = vmatpush1.msra.mxu0 0.0
    %738 = vmatprep.subr.mxu0 0.0
    %739 = vmatpush1.msra.mxu0 0.0
    %740 = vmatprep.subr.mxu0 0.0
    %741 = vmatpush1.msra.mxu0 0.0
    %742 = vmatprep.subr.mxu0 0.0
    %743 = vmatpush1.msra.mxu0 0.0
    %744 = vmatprep.subr.mxu0 0.0
    %745 = vmatpush1.msra.mxu0 0.0
    %746 = vmatprep.subr.mxu0 0.0
    %747 = vmatpush1.msra.mxu0 0.0
    %748 = vmatprep.subr.mxu0 0.0
    %749 = vmatpush1.msra.mxu0 0.0
    %750 = vmatprep.subr.mxu0 0.0
    %751 = vmatpush1.msra.mxu0 0.0
    %752 = vmatprep.subr.mxu0 0.0
    %753 = vmatpush1.msra.mxu0 0.0
    %754 = vmatprep.subr.mxu0 0.0
    %755 = vmatpush1.msra.mxu0 0.0
    %756 = vmatprep.subr.mxu0 0.0
    %757 = vmatpush1.msra.mxu0 0.0
    %758 = vmatprep.subr.mxu0 0.0
    %759 = vmatpush1.msra.mxu0 0.0
    %760 = vmatprep.subr.mxu0 0.0
    %761 = vmatpush1.msra.mxu0 0.0
    %762 = vmatprep.mubr.f32.mxu0 0.0
    %763 = vmatmul.mubr.f32.gmra.mrb[0].mxu0 %v562
    %v764 = vpop.f32.mrb[0].mxu0
    %v765 = vadd.f32 %v68, %v764
    %v766 = vpop.f32.mrb[0].mxu0
    %v767 = vadd.f32 %v72, %v766
    %768 = vdwg.mxu0
    %v773 = vcombine.low %v694, %v696
    %v774 = vcombine.low %v765, %v767
    %v776 = vunpack.c.l.s4 1983009808
    %v777 = vunpack.c.0.s8 %v776
    %v778 = vlaneseq
    %v779 = vshrl.u32 %v778, 7
    %v780 = vsub.s32 %v777, %v779
    %v781 = vrot.slane %v773, %v780
    %v783 = vunpack.c.l.s4 1983009808
    %v784 = vunpack.c.0.s8 %v783
    %v785 = vlaneseq
    %v786 = vshrl.u32 %v785, 7
    %v787 = vsub.s32 %v784, %v786
    %v788 = vrot.slane %v774, %v787
    %v789 = vcombine.low %v781, %v788
    %s791 = scalar_lea.vmem [#allocation2], 16
    %792 = vst [vmem:[%s791] sm:$0xff] %v789
    %s793 = scalar_lea.vmem %s0, 6
    %v794 = vld [vmem:[%s793] sm:$0x3]
    %v795 = vld [vmem:[#allocation3] sm:$0xff]
    %v796 = vld [vmem:[#allocation3 + $0x8] sm:$0xff]
    %v797 = vld [vmem:[#allocation3 + $0x10] sm:$0xff]
    %v798 = vld [vmem:[#allocation3 + $0x18] sm:$0xff]
    %v799 = vld [vmem:[#allocation3 + $0x20] sm:$0xff]
    %v800 = vld [vmem:[#allocation3 + $0x28] sm:$0xff]
    %v801 = vld [vmem:[#allocation3 + $0x30] sm:$0xff]
    %v802 = vld [vmem:[#allocation3 + $0x38] sm:$0xff]
    %v803 = vld [vmem:[#allocation3 + $0x40] sm:$0xff]
    %v804 = vld [vmem:[#allocation3 + $0x48] sm:$0xff]
    %v805 = vld [vmem:[#allocation3 + $0x50] sm:$0xff]
    %v806 = vld [vmem:[#allocation3 + $0x58] sm:$0xff]
    %v807 = vld [vmem:[#allocation3 + $0x60] sm:$0xff]
    %v808 = vld [vmem:[#allocation3 + $0x68] sm:$0xff]
    %v809 = vld [vmem:[#allocation3 + $0x70] sm:$0xff]
    %v810 = vld [vmem:[#allocation3 + $0x78] sm:$0xff]
    %v811 = vld [vmem:[#allocation3 + $0x80] sm:$0xff]
    %v812 = vld [vmem:[#allocation3 + $0x88] sm:$0xff]
    %v813 = vld [vmem:[#allocation3 + $0x90] sm:$0xff]
    %v814 = vld [vmem:[#allocation3 + $0x98] sm:$0xff]
    %v815 = vld [vmem:[#allocation3 + $0xa0] sm:$0xff]
    %v816 = vld [vmem:[#allocation3 + $0xa8] sm:$0xff]
    %v817 = vld [vmem:[#allocation3 + $0xb0] sm:$0xff]
    %v818 = vld [vmem:[#allocation3 + $0xb8] sm:$0xff]
    %v819 = vld [vmem:[#allocation3 + $0xc0] sm:$0xff]
    %v820 = vld [vmem:[#allocation3 + $0xc8] sm:$0xff]
    %v821 = vld [vmem:[#allocation3 + $0xd0] sm:$0xff]
    %v822 = vld [vmem:[#allocation3 + $0xd8] sm:$0xff]
    %v823 = vld [vmem:[#allocation3 + $0xe0] sm:$0xff]
    %v824 = vld [vmem:[#allocation3 + $0xe8] sm:$0xff]
    %v825 = vld [vmem:[#allocation3 + $0xf0] sm:$0xff]
    %v826 = vld [vmem:[#allocation3 + $0xf8] sm:$0xff]
    %v827 = vld [vmem:[#allocation3 + $0x100] sm:$0xff]
    %v828 = vld [vmem:[#allocation3 + $0x108] sm:$0xff]
    %v829 = vld [vmem:[#allocation3 + $0x110] sm:$0xff]
    %v830 = vld [vmem:[#allocation3 + $0x118] sm:$0xff]
    %v831 = vld [vmem:[#allocation3 + $0x120] sm:$0xff]
    %v832 = vld [vmem:[#allocation3 + $0x128] sm:$0xff]
    %v833 = vld [vmem:[#allocation3 + $0x130] sm:$0xff]
    %v834 = vld [vmem:[#allocation3 + $0x138] sm:$0xff]
    %v835 = vld [vmem:[#allocation3 + $0x140] sm:$0xff]
    %v836 = vld [vmem:[#allocation3 + $0x148] sm:$0xff]
    %v837 = vld [vmem:[#allocation3 + $0x150] sm:$0xff]
    %v838 = vld [vmem:[#allocation3 + $0x158] sm:$0xff]
    %v839 = vld [vmem:[#allocation3 + $0x160] sm:$0xff]
    %v840 = vld [vmem:[#allocation3 + $0x168] sm:$0xff]
    %v841 = vld [vmem:[#allocation3 + $0x170] sm:$0xff]
    %v842 = vld [vmem:[#allocation3 + $0x178] sm:$0xff]
    %v843 = vld [vmem:[#allocation3 + $0x180] sm:$0xff]
    %v844 = vld [vmem:[#allocation3 + $0x188] sm:$0xff]
    %v845 = vld [vmem:[#allocation3 + $0x190] sm:$0xff]
    %v846 = vld [vmem:[#allocation3 + $0x198] sm:$0xff]
    %v847 = vld [vmem:[#allocation3 + $0x1a0] sm:$0xff]
    %v848 = vld [vmem:[#allocation3 + $0x1a8] sm:$0xff]
    %v849 = vld [vmem:[#allocation3 + $0x1b0] sm:$0xff]
    %v850 = vld [vmem:[#allocation3 + $0x1b8] sm:$0xff]
    %v851 = vld [vmem:[#allocation3 + $0x1c0] sm:$0xff]
    %v852 = vld [vmem:[#allocation3 + $0x1c8] sm:$0xff]
    %v853 = vld [vmem:[#allocation3 + $0x1d0] sm:$0xff]
    %v854 = vld [vmem:[#allocation3 + $0x1d8] sm:$0xff]
    %v855 = vld [vmem:[#allocation3 + $0x1e0] sm:$0xff]
    %v856 = vld [vmem:[#allocation3 + $0x1e8] sm:$0xff]
    %v857 = vld [vmem:[#allocation3 + $0x1f0] sm:$0xff]
    %v858 = vld [vmem:[#allocation3 + $0x1f8] sm:$0xff]
    %859 = vmatprep.subr.mxu0 %v796
    %860 = vmatpush1.msra.mxu0 %v795
    %861 = vmatprep.subr.mxu0 %v800
    %862 = vmatpush1.msra.mxu0 %v799
    %863 = vmatprep.subr.mxu0 %v804
    %864 = vmatpush1.msra.mxu0 %v803
    %865 = vmatprep.subr.mxu0 %v808
    %866 = vmatpush1.msra.mxu0 %v807
    %867 = vmatprep.subr.mxu0 %v812
    %868 = vmatpush1.msra.mxu0 %v811
    %869 = vmatprep.subr.mxu0 %v816
    %870 = vmatpush1.msra.mxu0 %v815
    %871 = vmatprep.subr.mxu0 %v820
    %872 = vmatpush1.msra.mxu0 %v819
    %873 = vmatprep.subr.mxu0 %v824
    %874 = vmatpush1.msra.mxu0 %v823
    %875 = vmatprep.subr.mxu0 %v828
    %876 = vmatpush1.msra.mxu0 %v827
    %877 = vmatprep.subr.mxu0 %v832
    %878 = vmatpush1.msra.mxu0 %v831
    %879 = vmatprep.subr.mxu0 %v836
    %880 = vmatpush1.msra.mxu0 %v835
    %881 = vmatprep.subr.mxu0 %v840
    %882 = vmatpush1.msra.mxu0 %v839
    %883 = vmatprep.subr.mxu0 %v844
    %884 = vmatpush1.msra.mxu0 %v843
    %885 = vmatprep.subr.mxu0 %v848
    %886 = vmatpush1.msra.mxu0 %v847
    %887 = vmatprep.subr.mxu0 %v852
    %888 = vmatpush1.msra.mxu0 %v851
    %889 = vmatprep.subr.mxu0 %v856
    %890 = vmatpush1.msra.mxu0 %v855
    %891 = vmatprep.subr.mxu0 0.0
    %892 = vmatpush1.msra.mxu0 0.0
    %893 = vmatprep.subr.mxu0 0.0
    %894 = vmatpush1.msra.mxu0 0.0
    %895 = vmatprep.subr.mxu0 0.0
    %896 = vmatpush1.msra.mxu0 0.0
    %897 = vmatprep.subr.mxu0 0.0
    %898 = vmatpush1.msra.mxu0 0.0
    %899 = vmatprep.subr.mxu0 0.0
    %900 = vmatpush1.msra.mxu0 0.0
    %901 = vmatprep.subr.mxu0 0.0
    %902 = vmatpush1.msra.mxu0 0.0
    %903 = vmatprep.subr.mxu0 0.0
    %904 = vmatpush1.msra.mxu0 0.0
    %905 = vmatprep.subr.mxu0 0.0
    %906 = vmatpush1.msra.mxu0 0.0
    %907 = vmatprep.subr.mxu0 0.0
    %908 = vmatpush1.msra.mxu0 0.0
    %909 = vmatprep.subr.mxu0 0.0
    %910 = vmatpush1.msra.mxu0 0.0
    %911 = vmatprep.subr.mxu0 0.0
    %912 = vmatpush1.msra.mxu0 0.0
    %913 = vmatprep.subr.mxu0 0.0
    %914 = vmatpush1.msra.mxu0 0.0
    %915 = vmatprep.subr.mxu0 0.0
    %916 = vmatpush1.msra.mxu0 0.0
    %917 = vmatprep.subr.mxu0 0.0
    %918 = vmatpush1.msra.mxu0 0.0
    %919 = vmatprep.subr.mxu0 0.0
    %920 = vmatpush1.msra.mxu0 0.0
    %921 = vmatprep.subr.mxu0 0.0
    %922 = vmatpush1.msra.mxu0 0.0
    %923 = vmatprep.mubr.f32.mxu0 0.0
    %924 = vmatmul.mubr.f32.gmra.mrb[0].mxu0 %v794
    %v925 = vpop.f32.mrb[0].mxu0
    %v926 = vadd.f32 %v60, %v925
    %v927 = vpop.f32.mrb[0].mxu0
    %v928 = vadd.f32 %v64, %v927
    %929 = vdwg.mxu0
    %930 = vmatprep.subr.mxu0 %v798
    %931 = vmatpush1.msra.mxu0 %v797
    %932 = vmatprep.subr.mxu0 %v802
    %933 = vmatpush1.msra.mxu0 %v801
    %934 = vmatprep.subr.mxu0 %v806
    %935 = vmatpush1.msra.mxu0 %v805
    %936 = vmatprep.subr.mxu0 %v810
    %937 = vmatpush1.msra.mxu0 %v809
    %938 = vmatprep.subr.mxu0 %v814
    %939 = vmatpush1.msra.mxu0 %v813
    %940 = vmatprep.subr.mxu0 %v818
    %941 = vmatpush1.msra.mxu0 %v817
    %942 = vmatprep.subr.mxu0 %v822
    %943 = vmatpush1.msra.mxu0 %v821
    %944 = vmatprep.subr.mxu0 %v826
    %945 = vmatpush1.msra.mxu0 %v825
    %946 = vmatprep.subr.mxu0 %v830
    %947 = vmatpush1.msra.mxu0 %v829
    %948 = vmatprep.subr.mxu0 %v834
    %949 = vmatpush1.msra.mxu0 %v833
    %950 = vmatprep.subr.mxu0 %v838
    %951 = vmatpush1.msra.mxu0 %v837
    %952 = vmatprep.subr.mxu0 %v842
    %953 = vmatpush1.msra.mxu0 %v841
    %954 = vmatprep.subr.mxu0 %v846
    %955 = vmatpush1.msra.mxu0 %v845
    %956 = vmatprep.subr.mxu0 %v850
    %957 = vmatpush1.msra.mxu0 %v849
    %958 = vmatprep.subr.mxu0 %v854
    %959 = vmatpush1.msra.mxu0 %v853
    %960 = vmatprep.subr.mxu0 %v858
    %961 = vmatpush1.msra.mxu0 %v857
    %962 = vmatprep.subr.mxu0 0.0
    %963 = vmatpush1.msra.mxu0 0.0
    %964 = vmatprep.subr.mxu0 0.0
    %965 = vmatpush1.msra.mxu0 0.0
    %966 = vmatprep.subr.mxu0 0.0
    %967 = vmatpush1.msra.mxu0 0.0
    %968 = vmatprep.subr.mxu0 0.0
    %969 = vmatpush1.msra.mxu0 0.0
    %970 = vmatprep.subr.mxu0 0.0
    %971 = vmatpush1.msra.mxu0 0.0
    %972 = vmatprep.subr.mxu0 0.0
    %973 = vmatpush1.msra.mxu0 0.0
    %974 = vmatprep.subr.mxu0 0.0
    %975 = vmatpush1.msra.mxu0 0.0
    %976 = vmatprep.subr.mxu0 0.0
    %977 = vmatpush1.msra.mxu0 0.0
    %978 = vmatprep.subr.mxu0 0.0
    %979 = vmatpush1.msra.mxu0 0.0
    %980 = vmatprep.subr.mxu0 0.0
    %981 = vmatpush1.msra.mxu0 0.0
    %982 = vmatprep.subr.mxu0 0.0
    %983 = vmatpush1.msra.mxu0 0.0
    %984 = vmatprep.subr.mxu0 0.0
    %985 = vmatpush1.msra.mxu0 0.0
    %986 = vmatprep.subr.mxu0 0.0
    %987 = vmatpush1.msra.mxu0 0.0
    %988 = vmatprep.subr.mxu0 0.0
    %989 = vmatpush1.msra.mxu0 0.0
    %990 = vmatprep.subr.mxu0 0.0
    %991 = vmatpush1.msra.mxu0 0.0
    %992 = vmatprep.subr.mxu0 0.0
    %993 = vmatpush1.msra.mxu0 0.0
    %994 = vmatprep.mubr.f32.mxu0 0.0
    %995 = vmatmul.mubr.f32.gmra.mrb[0].mxu0 %v794
    %v996 = vpop.f32.mrb[0].mxu0
    %v997 = vadd.f32 %v68, %v996
    %v998 = vpop.f32.mrb[0].mxu0
    %v999 = vadd.f32 %v72, %v998
    %1000 = vdwg.mxu0
    %v1005 = vcombine.low %v926, %v928
    %v1006 = vcombine.low %v997, %v999
    %v1008 = vunpack.c.l.s4 1983009808
    %v1009 = vunpack.c.0.s8 %v1008
    %v1010 = vlaneseq
    %v1011 = vshrl.u32 %v1010, 7
    %v1012 = vsub.s32 %v1009, %v1011
    %v1013 = vrot.slane %v1005, %v1012
    %v1015 = vunpack.c.l.s4 1983009808
    %v1016 = vunpack.c.0.s8 %v1015
    %v1017 = vlaneseq
    %v1018 = vshrl.u32 %v1017, 7
    %v1019 = vsub.s32 %v1016, %v1018
    %v1020 = vrot.slane %v1006, %v1019
    %v1021 = vcombine.low %v1013, %v1020
    %s1023 = scalar_lea.vmem [#allocation2], 24
    %1024 = vst [vmem:[%s1023] sm:$0xff] %v1021
    %s1025 = scalar_lea.vmem %s0, 8
    %v1026 = vld [vmem:[%s1025] sm:$0x3]
    %v1027 = vld [vmem:[#allocation3] sm:$0xff]
    %v1028 = vld [vmem:[#allocation3 + $0x8] sm:$0xff]
    %v1029 = vld [vmem:[#allocation3 + $0x10] sm:$0xff]
    %v1030 = vld [vmem:[#allocation3 + $0x18] sm:$0xff]
    %v1031 = vld [vmem:[#allocation3 + $0x20] sm:$0xff]
    %v1032 = vld [vmem:[#allocation3 + $0x28] sm:$0xff]
    %v1033 = vld [vmem:[#allocation3 + $0x30] sm:$0xff]
    %v1034 = vld [vmem:[#allocation3 + $0x38] sm:$0xff]
    %v1035 = vld [vmem:[#allocation3 + $0x40] sm:$0xff]
    %v1036 = vld [vmem:[#allocation3 + $0x48] sm:$0xff]
    %v1037 = vld [vmem:[#allocation3 + $0x50] sm:$0xff]
    %v1038 = vld [vmem:[#allocation3 + $0x58] sm:$0xff]
    %v1039 = vld [vmem:[#allocation3 + $0x60] sm:$0xff]
    %v1040 = vld [vmem:[#allocation3 + $0x68] sm:$0xff]
    %v1041 = vld [vmem:[#allocation3 + $0x70] sm:$0xff]
    %v1042 = vld [vmem:[#allocation3 + $0x78] sm:$0xff]
    %v1043 = vld [vmem:[#allocation3 + $0x80] sm:$0xff]
    %v1044 = vld [vmem:[#allocation3 + $0x88] sm:$0xff]
    %v1045 = vld [vmem:[#allocation3 + $0x90] sm:$0xff]
    %v1046 = vld [vmem:[#allocation3 + $0x98] sm:$0xff]
    %v1047 = vld [vmem:[#allocation3 + $0xa0] sm:$0xff]
    %v1048 = vld [vmem:[#allocation3 + $0xa8] sm:$0xff]
    %v1049 = vld [vmem:[#allocation3 + $0xb0] sm:$0xff]
    %v1050 = vld [vmem:[#allocation3 + $0xb8] sm:$0xff]
    %v1051 = vld [vmem:[#allocation3 + $0xc0] sm:$0xff]
    %v1052 = vld [vmem:[#allocation3 + $0xc8] sm:$0xff]
    %v1053 = vld [vmem:[#allocation3 + $0xd0] sm:$0xff]
    %v1054 = vld [vmem:[#allocation3 + $0xd8] sm:$0xff]
    %v1055 = vld [vmem:[#allocation3 + $0xe0] sm:$0xff]
    %v1056 = vld [vmem:[#allocation3 + $0xe8] sm:$0xff]
    %v1057 = vld [vmem:[#allocation3 + $0xf0] sm:$0xff]
    %v1058 = vld [vmem:[#allocation3 + $0xf8] sm:$0xff]
    %v1059 = vld [vmem:[#allocation3 + $0x100] sm:$0xff]
    %v1060 = vld [vmem:[#allocation3 + $0x108] sm:$0xff]
    %v1061 = vld [vmem:[#allocation3 + $0x110] sm:$0xff]
    %v1062 = vld [vmem:[#allocation3 + $0x118] sm:$0xff]
    %v1063 = vld [vmem:[#allocation3 + $0x120] sm:$0xff]
    %v1064 = vld [vmem:[#allocation3 + $0x128] sm:$0xff]
    %v1065 = vld [vmem:[#allocation3 + $0x130] sm:$0xff]
    %v1066 = vld [vmem:[#allocation3 + $0x138] sm:$0xff]
    %v1067 = vld [vmem:[#allocation3 + $0x140] sm:$0xff]
    %v1068 = vld [vmem:[#allocation3 + $0x148] sm:$0xff]
    %v1069 = vld [vmem:[#allocation3 + $0x150] sm:$0xff]
    %v1070 = vld [vmem:[#allocation3 + $0x158] sm:$0xff]
    %v1071 = vld [vmem:[#allocation3 + $0x160] sm:$0xff]
    %v1072 = vld [vmem:[#allocation3 + $0x168] sm:$0xff]
    %v1073 = vld [vmem:[#allocation3 + $0x170] sm:$0xff]
    %v1074 = vld [vmem:[#allocation3 + $0x178] sm:$0xff]
    %v1075 = vld [vmem:[#allocation3 + $0x180] sm:$0xff]
    %v1076 = vld [vmem:[#allocation3 + $0x188] sm:$0xff]
    %v1077 = vld [vmem:[#allocation3 + $0x190] sm:$0xff]
    %v1078 = vld [vmem:[#allocation3 + $0x198] sm:$0xff]
    %v1079 = vld [vmem:[#allocation3 + $0x1a0] sm:$0xff]
    %v1080 = vld [vmem:[#allocation3 + $0x1a8] sm:$0xff]
    %v1081 = vld [vmem:[#allocation3 + $0x1b0] sm:$0xff]
    %v1082 = vld [vmem:[#allocation3 + $0x1b8] sm:$0xff]
    %v1083 = vld [vmem:[#allocation3 + $0x1c0] sm:$0xff]
    %v1084 = vld [vmem:[#allocation3 + $0x1c8] sm:$0xff]
    %v1085 = vld [vmem:[#allocation3 + $0x1d0] sm:$0xff]
    %v1086 = vld [vmem:[#allocation3 + $0x1d8] sm:$0xff]
    %v1087 = vld [vmem:[#allocation3 + $0x1e0] sm:$0xff]
    %v1088 = vld [vmem:[#allocation3 + $0x1e8] sm:$0xff]
    %v1089 = vld [vmem:[#allocation3 + $0x1f0] sm:$0xff]
    %v1090 = vld [vmem:[#allocation3 + $0x1f8] sm:$0xff]
    %1091 = vmatprep.subr.mxu0 %v1028
    %1092 = vmatpush1.msra.mxu0 %v1027
    %1093 = vmatprep.subr.mxu0 %v1032
    %1094 = vmatpush1.msra.mxu0 %v1031
    %1095 = vmatprep.subr.mxu0 %v1036
    %1096 = vmatpush1.msra.mxu0 %v1035
    %1097 = vmatprep.subr.mxu0 %v1040
    %1098 = vmatpush1.msra.mxu0 %v1039
    %1099 = vmatprep.subr.mxu0 %v1044
    %1100 = vmatpush1.msra.mxu0 %v1043
    %1101 = vmatprep.subr.mxu0 %v1048
    %1102 = vmatpush1.msra.mxu0 %v1047
    %1103 = vmatprep.subr.mxu0 %v1052
    %1104 = vmatpush1.msra.mxu0 %v1051
    %1105 = vmatprep.subr.mxu0 %v1056
    %1106 = vmatpush1.msra.mxu0 %v1055
    %1107 = vmatprep.subr.mxu0 %v1060
    %1108 = vmatpush1.msra.mxu0 %v1059
    %1109 = vmatprep.subr.mxu0 %v1064
    %1110 = vmatpush1.msra.mxu0 %v1063
    %1111 = vmatprep.subr.mxu0 %v1068
    %1112 = vmatpush1.msra.mxu0 %v1067
    %1113 = vmatprep.subr.mxu0 %v1072
    %1114 = vmatpush1.msra.mxu0 %v1071
    %1115 = vmatprep.subr.mxu0 %v1076
    %1116 = vmatpush1.msra.mxu0 %v1075
    %1117 = vmatprep.subr.mxu0 %v1080
    %1118 = vmatpush1.msra.mxu0 %v1079
    %1119 = vmatprep.subr.mxu0 %v1084
    %1120 = vmatpush1.msra.mxu0 %v1083
    %1121 = vmatprep.subr.mxu0 %v1088
    %1122 = vmatpush1.msra.mxu0 %v1087
    %1123 = vmatprep.subr.mxu0 0.0
    %1124 = vmatpush1.msra.mxu0 0.0
    %1125 = vmatprep.subr.mxu0 0.0
    %1126 = vmatpush1.msra.mxu0 0.0
    %1127 = vmatprep.subr.mxu0 0.0
    %1128 = vmatpush1.msra.mxu0 0.0
    %1129 = vmatprep.subr.mxu0 0.0
    %1130 = vmatpush1.msra.mxu0 0.0
    %1131 = vmatprep.subr.mxu0 0.0
    %1132 = vmatpush1.msra.mxu0 0.0
    %1133 = vmatprep.subr.mxu0 0.0
    %1134 = vmatpush1.msra.mxu0 0.0
    %1135 = vmatprep.subr.mxu0 0.0
    %1136 = vmatpush1.msra.mxu0 0.0
    %1137 = vmatprep.subr.mxu0 0.0
    %1138 = vmatpush1.msra.mxu0 0.0
    %1139 = vmatprep.subr.mxu0 0.0
    %1140 = vmatpush1.msra.mxu0 0.0
    %1141 = vmatprep.subr.mxu0 0.0
    %1142 = vmatpush1.msra.mxu0 0.0
    %1143 = vmatprep.subr.mxu0 0.0
    %1144 = vmatpush1.msra.mxu0 0.0
    %1145 = vmatprep.subr.mxu0 0.0
    %1146 = vmatpush1.msra.mxu0 0.0
    %1147 = vmatprep.subr.mxu0 0.0
    %1148 = vmatpush1.msra.mxu0 0.0
    %1149 = vmatprep.subr.mxu0 0.0
    %1150 = vmatpush1.msra.mxu0 0.0
    %1151 = vmatprep.subr.mxu0 0.0
    %1152 = vmatpush1.msra.mxu0 0.0
    %1153 = vmatprep.subr.mxu0 0.0
    %1154 = vmatpush1.msra.mxu0 0.0
    %1155 = vmatprep.mubr.f32.mxu0 0.0
    %1156 = vmatmul.mubr.f32.gmra.mrb[0].mxu0 %v1026
    %v1157 = vpop.f32.mrb[0].mxu0
    %v1158 = vadd.f32 %v60, %v1157
    %v1159 = vpop.f32.mrb[0].mxu0
    %v1160 = vadd.f32 %v64, %v1159
    %1161 = vdwg.mxu0
    %1162 = vmatprep.subr.mxu0 %v1030
    %1163 = vmatpush1.msra.mxu0 %v1029
    %1164 = vmatprep.subr.mxu0 %v1034
    %1165 = vmatpush1.msra.mxu0 %v1033
    %1166 = vmatprep.subr.mxu0 %v1038
    %1167 = vmatpush1.msra.mxu0 %v1037
    %1168 = vmatprep.subr.mxu0 %v1042
    %1169 = vmatpush1.msra.mxu0 %v1041
    %1170 = vmatprep.subr.mxu0 %v1046
    %1171 = vmatpush1.msra.mxu0 %v1045
    %1172 = vmatprep.subr.mxu0 %v1050
    %1173 = vmatpush1.msra.mxu0 %v1049
    %1174 = vmatprep.subr.mxu0 %v1054
    %1175 = vmatpush1.msra.mxu0 %v1053
    %1176 = vmatprep.subr.mxu0 %v1058
    %1177 = vmatpush1.msra.mxu0 %v1057
    %1178 = vmatprep.subr.mxu0 %v1062
    %1179 = vmatpush1.msra.mxu0 %v1061
    %1180 = vmatprep.subr.mxu0 %v1066
    %1181 = vmatpush1.msra.mxu0 %v1065
    %1182 = vmatprep.subr.mxu0 %v1070
    %1183 = vmatpush1.msra.mxu0 %v1069
    %1184 = vmatprep.subr.mxu0 %v1074
    %1185 = vmatpush1.msra.mxu0 %v1073
    %1186 = vmatprep.subr.mxu0 %v1078
    %1187 = vmatpush1.msra.mxu0 %v1077
    %1188 = vmatprep.subr.mxu0 %v1082
    %1189 = vmatpush1.msra.mxu0 %v1081
    %1190 = vmatprep.subr.mxu0 %v1086
    %1191 = vmatpush1.msra.mxu0 %v1085
    %1192 = vmatprep.subr.mxu0 %v1090
    %1193 = vmatpush1.msra.mxu0 %v1089
    %1194 = vmatprep.subr.mxu0 0.0
    %1195 = vmatpush1.msra.mxu0 0.0
    %1196 = vmatprep.subr.mxu0 0.0
    %1197 = vmatpush1.msra.mxu0 0.0
    %1198 = vmatprep.subr.mxu0 0.0
    %1199 = vmatpush1.msra.mxu0 0.0
    %1200 = vmatprep.subr.mxu0 0.0
    %1201 = vmatpush1.msra.mxu0 0.0
    %1202 = vmatprep.subr.mxu0 0.0
    %1203 = vmatpush1.msra.mxu0 0.0
    %1204 = vmatprep.subr.mxu0 0.0
    %1205 = vmatpush1.msra.mxu0 0.0
    %1206 = vmatprep.subr.mxu0 0.0
    %1207 = vmatpush1.msra.mxu0 0.0
    %1208 = vmatprep.subr.mxu0 0.0
    %1209 = vmatpush1.msra.mxu0 0.0
    %1210 = vmatprep.subr.mxu0 0.0
    %1211 = vmatpush1.msra.mxu0 0.0
    %1212 = vmatprep.subr.mxu0 0.0
    %1213 = vmatpush1.msra.mxu0 0.0
    %1214 = vmatprep.subr.mxu0 0.0
    %1215 = vmatpush1.msra.mxu0 0.0
    %1216 = vmatprep.subr.mxu0 0.0
    %1217 = vmatpush1.msra.mxu0 0.0
    %1218 = vmatprep.subr.mxu0 0.0
    %1219 = vmatpush1.msra.mxu0 0.0
    %1220 = vmatprep.subr.mxu0 0.0
    %1221 = vmatpush1.msra.mxu0 0.0
    %1222 = vmatprep.subr.mxu0 0.0
    %1223 = vmatpush1.msra.mxu0 0.0
    %1224 = vmatprep.subr.mxu0 0.0
    %1225 = vmatpush1.msra.mxu0 0.0
    %1226 = vmatprep.mubr.f32.mxu0 0.0
    %1227 = vmatmul.mubr.f32.gmra.mrb[0].mxu0 %v1026
    %v1228 = vpop.f32.mrb[0].mxu0
    %v1229 = vadd.f32 %v68, %v1228
    %v1230 = vpop.f32.mrb[0].mxu0
    %v1231 = vadd.f32 %v72, %v1230
    %1232 = vdwg.mxu0
    %v1237 = vcombine.low %v1158, %v1160
    %v1238 = vcombine.low %v1229, %v1231
    %v1240 = vunpack.c.l.s4 1983009808
    %v1241 = vunpack.c.0.s8 %v1240
    %v1242 = vlaneseq
    %v1243 = vshrl.u32 %v1242, 7
    %v1244 = vsub.s32 %v1241, %v1243
    %v1245 = vrot.slane %v1237, %v1244
    %v1247 = vunpack.c.l.s4 1983009808
    %v1248 = vunpack.c.0.s8 %v1247
    %v1249 = vlaneseq
    %v1250 = vshrl.u32 %v1249, 7
    %v1251 = vsub.s32 %v1248, %v1250
    %v1252 = vrot.slane %v1238, %v1251
    %v1253 = vcombine.low %v1245, %v1252
    %s1255 = scalar_lea.vmem [#allocation2], 32
    %1256 = vst [vmem:[%s1255] sm:$0xff] %v1253
    %s1257 = scalar_lea.vmem %s0, 10
    %v1258 = vld [vmem:[%s1257] sm:$0x3]
    %v1259 = vld [vmem:[#allocation3] sm:$0xff]
    %v1260 = vld [vmem:[#allocation3 + $0x8] sm:$0xff]
    %v1261 = vld [vmem:[#allocation3 + $0x10] sm:$0xff]
    %v1262 = vld [vmem:[#allocation3 + $0x18] sm:$0xff]
    %v1263 = vld [vmem:[#allocation3 + $0x20] sm:$0xff]
    %v1264 = vld [vmem:[#allocation3 + $0x28] sm:$0xff]
    %v1265 = vld [vmem:[#allocation3 + $0x30] sm:$0xff]
    %v1266 = vld [vmem:[#allocation3 + $0x38] sm:$0xff]
    %v1267 = vld [vmem:[#allocation3 + $0x40] sm:$0xff]
    %v1268 = vld [vmem:[#allocation3 + $0x48] sm:$0xff]
    %v1269 = vld [vmem:[#allocation3 + $0x50] sm:$0xff]
    %v1270 = vld [vmem:[#allocation3 + $0x58] sm:$0xff]
    %v1271 = vld [vmem:[#allocation3 + $0x60] sm:$0xff]
    %v1272 = vld [vmem:[#allocation3 + $0x68] sm:$0xff]
    %v1273 = vld [vmem:[#allocation3 + $0x70] sm:$0xff]
    %v1274 = vld [vmem:[#allocation3 + $0x78] sm:$0xff]
    %v1275 = vld [vmem:[#allocation3 + $0x80] sm:$0xff]
    %v1276 = vld [vmem:[#allocation3 + $0x88] sm:$0xff]
    %v1277 = vld [vmem:[#allocation3 + $0x90] sm:$0xff]
    %v1278 = vld [vmem:[#allocation3 + $0x98] sm:$0xff]
    %v1279 = vld [vmem:[#allocation3 + $0xa0] sm:$0xff]
    %v1280 = vld [vmem:[#allocation3 + $0xa8] sm:$0xff]
    %v1281 = vld [vmem:[#allocation3 + $0xb0] sm:$0xff]
    %v1282 = vld [vmem:[#allocation3 + $0xb8] sm:$0xff]
    %v1283 = vld [vmem:[#allocation3 + $0xc0] sm:$0xff]
    %v1284 = vld [vmem:[#allocation3 + $0xc8] sm:$0xff]
    %v1285 = vld [vmem:[#allocation3 + $0xd0] sm:$0xff]
    %v1286 = vld [vmem:[#allocation3 + $0xd8] sm:$0xff]
    %v1287 = vld [vmem:[#allocation3 + $0xe0] sm:$0xff]
    %v1288 = vld [vmem:[#allocation3 + $0xe8] sm:$0xff]
    %v1289 = vld [vmem:[#allocation3 + $0xf0] sm:$0xff]
    %v1290 = vld [vmem:[#allocation3 + $0xf8] sm:$0xff]
    %v1291 = vld [vmem:[#allocation3 + $0x100] sm:$0xff]
    %v1292 = vld [vmem:[#allocation3 + $0x108] sm:$0xff]
    %v1293 = vld [vmem:[#allocation3 + $0x110] sm:$0xff]
    %v1294 = vld [vmem:[#allocation3 + $0x118] sm:$0xff]
    %v1295 = vld [vmem:[#allocation3 + $0x120] sm:$0xff]
    %v1296 = vld [vmem:[#allocation3 + $0x128] sm:$0xff]
    %v1297 = vld [vmem:[#allocation3 + $0x130] sm:$0xff]
    %v1298 = vld [vmem:[#allocation3 + $0x138] sm:$0xff]
    %v1299 = vld [vmem:[#allocation3 + $0x140] sm:$0xff]
    %v1300 = vld [vmem:[#allocation3 + $0x148] sm:$0xff]
    %v1301 = vld [vmem:[#allocation3 + $0x150] sm:$0xff]
    %v1302 = vld [vmem:[#allocation3 + $0x158] sm:$0xff]
    %v1303 = vld [vmem:[#allocation3 + $0x160] sm:$0xff]
    %v1304 = vld [vmem:[#allocation3 + $0x168] sm:$0xff]
    %v1305 = vld [vmem:[#allocation3 + $0x170] sm:$0xff]
    %v1306 = vld [vmem:[#allocation3 + $0x178] sm:$0xff]
    %v1307 = vld [vmem:[#allocation3 + $0x180] sm:$0xff]
    %v1308 = vld [vmem:[#allocation3 + $0x188] sm:$0xff]
    %v1309 = vld [vmem:[#allocation3 + $0x190] sm:$0xff]
    %v1310 = vld [vmem:[#allocation3 + $0x198] sm:$0xff]
    %v1311 = vld [vmem:[#allocation3 + $0x1a0] sm:$0xff]
    %v1312 = vld [vmem:[#allocation3 + $0x1a8] sm:$0xff]
    %v1313 = vld [vmem:[#allocation3 + $0x1b0] sm:$0xff]
    %v1314 = vld [vmem:[#allocation3 + $0x1b8] sm:$0xff]
    %v1315 = vld [vmem:[#allocation3 + $0x1c0] sm:$0xff]
    %v1316 = vld [vmem:[#allocation3 + $0x1c8] sm:$0xff]
    %v1317 = vld [vmem:[#allocation3 + $0x1d0] sm:$0xff]
    %v1318 = vld [vmem:[#allocation3 + $0x1d8] sm:$0xff]
    %v1319 = vld [vmem:[#allocation3 + $0x1e0] sm:$0xff]
    %v1320 = vld [vmem:[#allocation3 + $0x1e8] sm:$0xff]
    %v1321 = vld [vmem:[#allocation3 + $0x1f0] sm:$0xff]
    %v1322 = vld [vmem:[#allocation3 + $0x1f8] sm:$0xff]
    %1323 = vmatprep.subr.mxu0 %v1260
    %1324 = vmatpush1.msra.mxu0 %v1259
    %1325 = vmatprep.subr.mxu0 %v1264
    %1326 = vmatpush1.msra.mxu0 %v1263
    %1327 = vmatprep.subr.mxu0 %v1268
    %1328 = vmatpush1.msra.mxu0 %v1267
    %1329 = vmatprep.subr.mxu0 %v1272
    %1330 = vmatpush1.msra.mxu0 %v1271
    %1331 = vmatprep.subr.mxu0 %v1276
    %1332 = vmatpush1.msra.mxu0 %v1275
    %1333 = vmatprep.subr.mxu0 %v1280
    %1334 = vmatpush1.msra.mxu0 %v1279
    %1335 = vmatprep.subr.mxu0 %v1284
    %1336 = vmatpush1.msra.mxu0 %v1283
    %1337 = vmatprep.subr.mxu0 %v1288
    %1338 = vmatpush1.msra.mxu0 %v1287
    %1339 = vmatprep.subr.mxu0 %v1292
    %1340 = vmatpush1.msra.mxu0 %v1291
    %1341 = vmatprep.subr.mxu0 %v1296
    %1342 = vmatpush1.msra.mxu0 %v1295
    %1343 = vmatprep.subr.mxu0 %v1300
    %1344 = vmatpush1.msra.mxu0 %v1299
    %1345 = vmatprep.subr.mxu0 %v1304
    %1346 = vmatpush1.msra.mxu0 %v1303
    %1347 = vmatprep.subr.mxu0 %v1308
    %1348 = vmatpush1.msra.mxu0 %v1307
    %1349 = vmatprep.subr.mxu0 %v1312
    %1350 = vmatpush1.msra.mxu0 %v1311
    %1351 = vmatprep.subr.mxu0 %v1316
    %1352 = vmatpush1.msra.mxu0 %v1315
    %1353 = vmatprep.subr.mxu0 %v1320
    %1354 = vmatpush1.msra.mxu0 %v1319
    %1355 = vmatprep.subr.mxu0 0.0
    %1356 = vmatpush1.msra.mxu0 0.0
    %1357 = vmatprep.subr.mxu0 0.0
    %1358 = vmatpush1.msra.mxu0 0.0
    %1359 = vmatprep.subr.mxu0 0.0
    %1360 = vmatpush1.msra.mxu0 0.0
    %1361 = vmatprep.subr.mxu0 0.0
    %1362 = vmatpush1.msra.mxu0 0.0
    %1363 = vmatprep.subr.mxu0 0.0
    %1364 = vmatpush1.msra.mxu0 0.0
    %1365 = vmatprep.subr.mxu0 0.0
    %1366 = vmatpush1.msra.mxu0 0.0
    %1367 = vmatprep.subr.mxu0 0.0
    %1368 = vmatpush1.msra.mxu0 0.0
    %1369 = vmatprep.subr.mxu0 0.0
    %1370 = vmatpush1.msra.mxu0 0.0
    %1371 = vmatprep.subr.mxu0 0.0
    %1372 = vmatpush1.msra.mxu0 0.0
    %1373 = vmatprep.subr.mxu0 0.0
    %1374 = vmatpush1.msra.mxu0 0.0
    %1375 = vmatprep.subr.mxu0 0.0
    %1376 = vmatpush1.msra.mxu0 0.0
    %1377 = vmatprep.subr.mxu0 0.0
    %1378 = vmatpush1.msra.mxu0 0.0
    %1379 = vmatprep.subr.mxu0 0.0
    %1380 = vmatpush1.msra.mxu0 0.0
    %1381 = vmatprep.subr.mxu0 0.0
    %1382 = vmatpush1.msra.mxu0 0.0
    %1383 = vmatprep.subr.mxu0 0.0
    %1384 = vmatpush1.msra.mxu0 0.0
    %1385 = vmatprep.subr.mxu0 0.0
    %1386 = vmatpush1.msra.mxu0 0.0
    %1387 = vmatprep.mubr.f32.mxu0 0.0
    %1388 = vmatmul.mubr.f32.gmra.mrb[0].mxu0 %v1258
    %v1389 = vpop.f32.mrb[0].mxu0
    %v1390 = vadd.f32 %v60, %v1389
    %v1391 = vpop.f32.mrb[0].mxu0
    %v1392 = vadd.f32 %v64, %v1391
    %1393 = vdwg.mxu0
    %1394 = vmatprep.subr.mxu0 %v1262
    %1395 = vmatpush1.msra.mxu0 %v1261
    %1396 = vmatprep.subr.mxu0 %v1266
    %1397 = vmatpush1.msra.mxu0 %v1265
    %1398 = vmatprep.subr.mxu0 %v1270
    %1399 = vmatpush1.msra.mxu0 %v1269
    %1400 = vmatprep.subr.mxu0 %v1274
    %1401 = vmatpush1.msra.mxu0 %v1273
    %1402 = vmatprep.subr.mxu0 %v1278
    %1403 = vmatpush1.msra.mxu0 %v1277
    %1404 = vmatprep.subr.mxu0 %v1282
    %1405 = vmatpush1.msra.mxu0 %v1281
    %1406 = vmatprep.subr.mxu0 %v1286
    %1407 = vmatpush1.msra.mxu0 %v1285
    %1408 = vmatprep.subr.mxu0 %v1290
    %1409 = vmatpush1.msra.mxu0 %v1289
    %1410 = vmatprep.subr.mxu0 %v1294
    %1411 = vmatpush1.msra.mxu0 %v1293
    %1412 = vmatprep.subr.mxu0 %v1298
    %1413 = vmatpush1.msra.mxu0 %v1297
    %1414 = vmatprep.subr.mxu0 %v1302
    %1415 = vmatpush1.msra.mxu0 %v1301
    %1416 = vmatprep.subr.mxu0 %v1306
    %1417 = vmatpush1.msra.mxu0 %v1305
    %1418 = vmatprep.subr.mxu0 %v1310
    %1419 = vmatpush1.msra.mxu0 %v1309
    %1420 = vmatprep.subr.mxu0 %v1314
    %1421 = vmatpush1.msra.mxu0 %v1313
    %1422 = vmatprep.subr.mxu0 %v1318
    %1423 = vmatpush1.msra.mxu0 %v1317
    %1424 = vmatprep.subr.mxu0 %v1322
    %1425 = vmatpush1.msra.mxu0 %v1321
    %1426 = vmatprep.subr.mxu0 0.0
    %1427 = vmatpush1.msra.mxu0 0.0
    %1428 = vmatprep.subr.mxu0 0.0
    %1429 = vmatpush1.msra.mxu0 0.0
    %1430 = vmatprep.subr.mxu0 0.0
    %1431 = vmatpush1.msra.mxu0 0.0
    %1432 = vmatprep.subr.mxu0 0.0
    %1433 = vmatpush1.msra.mxu0 0.0
    %1434 = vmatprep.subr.mxu0 0.0
    %1435 = vmatpush1.msra.mxu0 0.0
    %1436 = vmatprep.subr.mxu0 0.0
    %1437 = vmatpush1.msra.mxu0 0.0
    %1438 = vmatprep.subr.mxu0 0.0
    %1439 = vmatpush1.msra.mxu0 0.0
    %1440 = vmatprep.subr.mxu0 0.0
    %1441 = vmatpush1.msra.mxu0 0.0
    %1442 = vmatprep.subr.mxu0 0.0
    %1443 = vmatpush1.msra.mxu0 0.0
    %1444 = vmatprep.subr.mxu0 0.0
    %1445 = vmatpush1.msra.mxu0 0.0
    %1446 = vmatprep.subr.mxu0 0.0
    %1447 = vmatpush1.msra.mxu0 0.0
    %1448 = vmatprep.subr.mxu0 0.0
    %1449 = vmatpush1.msra.mxu0 0.0
    %1450 = vmatprep.subr.mxu0 0.0
    %1451 = vmatpush1.msra.mxu0 0.0
    %1452 = vmatprep.subr.mxu0 0.0
    %1453 = vmatpush1.msra.mxu0 0.0
    %1454 = vmatprep.subr.mxu0 0.0
    %1455 = vmatpush1.msra.mxu0 0.0
    %1456 = vmatprep.subr.mxu0 0.0
    %1457 = vmatpush1.msra.mxu0 0.0
    %1458 = vmatprep.mubr.f32.mxu0 0.0
    %1459 = vmatmul.mubr.f32.gmra.mrb[0].mxu0 %v1258
    %v1460 = vpop.f32.mrb[0].mxu0
    %v1461 = vadd.f32 %v68, %v1460
    %v1462 = vpop.f32.mrb[0].mxu0
    %v1463 = vadd.f32 %v72, %v1462
    %1464 = vdwg.mxu0
    %v1469 = vcombine.low %v1390, %v1392
    %v1470 = vcombine.low %v1461, %v1463
    %v1472 = vunpack.c.l.s4 1983009808
    %v1473 = vunpack.c.0.s8 %v1472
    %v1474 = vlaneseq
    %v1475 = vshrl.u32 %v1474, 7
    %v1476 = vsub.s32 %v1473, %v1475
    %v1477 = vrot.slane %v1469, %v1476
    %v1479 = vunpack.c.l.s4 1983009808
    %v1480 = vunpack.c.0.s8 %v1479
    %v1481 = vlaneseq
    %v1482 = vshrl.u32 %v1481, 7
    %v1483 = vsub.s32 %v1480, %v1482
    %v1484 = vrot.slane %v1470, %v1483
    %v1485 = vcombine.low %v1477, %v1484
    %s1487 = scalar_lea.vmem [#allocation2], 40
    %1488 = vst [vmem:[%s1487] sm:$0xff] %v1485
    %s1489 = scalar_lea.vmem %s0, 12
    %v1490 = vld [vmem:[%s1489] sm:$0x3]
    %v1491 = vld [vmem:[#allocation3] sm:$0xff]
    %v1492 = vld [vmem:[#allocation3 + $0x8] sm:$0xff]
    %v1493 = vld [vmem:[#allocation3 + $0x10] sm:$0xff]
    %v1494 = vld [vmem:[#allocation3 + $0x18] sm:$0xff]
    %v1495 = vld [vmem:[#allocation3 + $0x20] sm:$0xff]
    %v1496 = vld [vmem:[#allocation3 + $0x28] sm:$0xff]
    %v1497 = vld [vmem:[#allocation3 + $0x30] sm:$0xff]
    %v1498 = vld [vmem:[#allocation3 + $0x38] sm:$0xff]
    %v1499 = vld [vmem:[#allocation3 + $0x40] sm:$0xff]
    %v1500 = vld [vmem:[#allocation3 + $0x48] sm:$0xff]
    %v1501 = vld [vmem:[#allocation3 + $0x50] sm:$0xff]
    %v1502 = vld [vmem:[#allocation3 + $0x58] sm:$0xff]
    %v1503 = vld [vmem:[#allocation3 + $0x60] sm:$0xff]
    %v1504 = vld [vmem:[#allocation3 + $0x68] sm:$0xff]
    %v1505 = vld [vmem:[#allocation3 + $0x70] sm:$0xff]
    %v1506 = vld [vmem:[#allocation3 + $0x78] sm:$0xff]
    %v1507 = vld [vmem:[#allocation3 + $0x80] sm:$0xff]
    %v1508 = vld [vmem:[#allocation3 + $0x88] sm:$0xff]
    %v1509 = vld [vmem:[#allocation3 + $0x90] sm:$0xff]
    %v1510 = vld [vmem:[#allocation3 + $0x98] sm:$0xff]
    %v1511 = vld [vmem:[#allocation3 + $0xa0] sm:$0xff]
    %v1512 = vld [vmem:[#allocation3 + $0xa8] sm:$0xff]
    %v1513 = vld [vmem:[#allocation3 + $0xb0] sm:$0xff]
    %v1514 = vld [vmem:[#allocation3 + $0xb8] sm:$0xff]
    %v1515 = vld [vmem:[#allocation3 + $0xc0] sm:$0xff]
    %v1516 = vld [vmem:[#allocation3 + $0xc8] sm:$0xff]
    %v1517 = vld [vmem:[#allocation3 + $0xd0] sm:$0xff]
    %v1518 = vld [vmem:[#allocation3 + $0xd8] sm:$0xff]
    %v1519 = vld [vmem:[#allocation3 + $0xe0] sm:$0xff]
    %v1520 = vld [vmem:[#allocation3 + $0xe8] sm:$0xff]
    %v1521 = vld [vmem:[#allocation3 + $0xf0] sm:$0xff]
    %v1522 = vld [vmem:[#allocation3 + $0xf8] sm:$0xff]
    %v1523 = vld [vmem:[#allocation3 + $0x100] sm:$0xff]
    %v1524 = vld [vmem:[#allocation3 + $0x108] sm:$0xff]
    %v1525 = vld [vmem:[#allocation3 + $0x110] sm:$0xff]
    %v1526 = vld [vmem:[#allocation3 + $0x118] sm:$0xff]
    %v1527 = vld [vmem:[#allocation3 + $0x120] sm:$0xff]
    %v1528 = vld [vmem:[#allocation3 + $0x128] sm:$0xff]
    %v1529 = vld [vmem:[#allocation3 + $0x130] sm:$0xff]
    %v1530 = vld [vmem:[#allocation3 + $0x138] sm:$0xff]
    %v1531 = vld [vmem:[#allocation3 + $0x140] sm:$0xff]
    %v1532 = vld [vmem:[#allocation3 + $0x148] sm:$0xff]
    %v1533 = vld [vmem:[#allocation3 + $0x150] sm:$0xff]
    %v1534 = vld [vmem:[#allocation3 + $0x158] sm:$0xff]
    %v1535 = vld [vmem:[#allocation3 + $0x160] sm:$0xff]
    %v1536 = vld [vmem:[#allocation3 + $0x168] sm:$0xff]
    %v1537 = vld [vmem:[#allocation3 + $0x170] sm:$0xff]
    %v1538 = vld [vmem:[#allocation3 + $0x178] sm:$0xff]
    %v1539 = vld [vmem:[#allocation3 + $0x180] sm:$0xff]
    %v1540 = vld [vmem:[#allocation3 + $0x188] sm:$0xff]
    %v1541 = vld [vmem:[#allocation3 + $0x190] sm:$0xff]
    %v1542 = vld [vmem:[#allocation3 + $0x198] sm:$0xff]
    %v1543 = vld [vmem:[#allocation3 + $0x1a0] sm:$0xff]
    %v1544 = vld [vmem:[#allocation3 + $0x1a8] sm:$0xff]
    %v1545 = vld [vmem:[#allocation3 + $0x1b0] sm:$0xff]
    %v1546 = vld [vmem:[#allocation3 + $0x1b8] sm:$0xff]
    %v1547 = vld [vmem:[#allocation3 + $0x1c0] sm:$0xff]
    %v1548 = vld [vmem:[#allocation3 + $0x1c8] sm:$0xff]
    %v1549 = vld [vmem:[#allocation3 + $0x1d0] sm:$0xff]
    %v1550 = vld [vmem:[#allocation3 + $0x1d8] sm:$0xff]
    %v1551 = vld [vmem:[#allocation3 + $0x1e0] sm:$0xff]
    %v1552 = vld [vmem:[#allocation3 + $0x1e8] sm:$0xff]
    %v1553 = vld [vmem:[#allocation3 + $0x1f0] sm:$0xff]
    %v1554 = vld [vmem:[#allocation3 + $0x1f8] sm:$0xff]
    %1555 = vmatprep.subr.mxu0 %v1492
    %1556 = vmatpush1.msra.mxu0 %v1491
    %1557 = vmatprep.subr.mxu0 %v1496
    %1558 = vmatpush1.msra.mxu0 %v1495
    %1559 = vmatprep.subr.mxu0 %v1500
    %1560 = vmatpush1.msra.mxu0 %v1499
    %1561 = vmatprep.subr.mxu0 %v1504
    %1562 = vmatpush1.msra.mxu0 %v1503
    %1563 = vmatprep.subr.mxu0 %v1508
    %1564 = vmatpush1.msra.mxu0 %v1507
    %1565 = vmatprep.subr.mxu0 %v1512
    %1566 = vmatpush1.msra.mxu0 %v1511
    %1567 = vmatprep.subr.mxu0 %v1516
    %1568 = vmatpush1.msra.mxu0 %v1515
    %1569 = vmatprep.subr.mxu0 %v1520
    %1570 = vmatpush1.msra.mxu0 %v1519
    %1571 = vmatprep.subr.mxu0 %v1524
    %1572 = vmatpush1.msra.mxu0 %v1523
    %1573 = vmatprep.subr.mxu0 %v1528
    %1574 = vmatpush1.msra.mxu0 %v1527
    %1575 = vmatprep.subr.mxu0 %v1532
    %1576 = vmatpush1.msra.mxu0 %v1531
    %1577 = vmatprep.subr.mxu0 %v1536
    %1578 = vmatpush1.msra.mxu0 %v1535
    %1579 = vmatprep.subr.mxu0 %v1540
    %1580 = vmatpush1.msra.mxu0 %v1539
    %1581 = vmatprep.subr.mxu0 %v1544
    %1582 = vmatpush1.msra.mxu0 %v1543
    %1583 = vmatprep.subr.mxu0 %v1548
    %1584 = vmatpush1.msra.mxu0 %v1547
    %1585 = vmatprep.subr.mxu0 %v1552
    %1586 = vmatpush1.msra.mxu0 %v1551
    %1587 = vmatprep.subr.mxu0 0.0
    %1588 = vmatpush1.msra.mxu0 0.0
    %1589 = vmatprep.subr.mxu0 0.0
    %1590 = vmatpush1.msra.mxu0 0.0
    %1591 = vmatprep.subr.mxu0 0.0
    %1592 = vmatpush1.msra.mxu0 0.0
    %1593 = vmatprep.subr.mxu0 0.0
    %1594 = vmatpush1.msra.mxu0 0.0
    %1595 = vmatprep.subr.mxu0 0.0
    %1596 = vmatpush1.msra.mxu0 0.0
    %1597 = vmatprep.subr.mxu0 0.0
    %1598 = vmatpush1.msra.mxu0 0.0
    %1599 = vmatprep.subr.mxu0 0.0
    %1600 = vmatpush1.msra.mxu0 0.0
    %1601 = vmatprep.subr.mxu0 0.0
    %1602 = vmatpush1.msra.mxu0 0.0
    %1603 = vmatprep.subr.mxu0 0.0
    %1604 = vmatpush1.msra.mxu0 0.0
    %1605 = vmatprep.subr.mxu0 0.0
    %1606 = vmatpush1.msra.mxu0 0.0
    %1607 = vmatprep.subr.mxu0 0.0
    %1608 = vmatpush1.msra.mxu0 0.0
    %1609 = vmatprep.subr.mxu0 0.0
    %1610 = vmatpush1.msra.mxu0 0.0
    %1611 = vmatprep.subr.mxu0 0.0
    %1612 = vmatpush1.msra.mxu0 0.0
    %1613 = vmatprep.subr.mxu0 0.0
    %1614 = vmatpush1.msra.mxu0 0.0
    %1615 = vmatprep.subr.mxu0 0.0
    %1616 = vmatpush1.msra.mxu0 0.0
    %1617 = vmatprep.subr.mxu0 0.0
    %1618 = vmatpush1.msra.mxu0 0.0
    %1619 = vmatprep.mubr.f32.mxu0 0.0
    %1620 = vmatmul.mubr.f32.gmra.mrb[0].mxu0 %v1490
    %v1621 = vpop.f32.mrb[0].mxu0
    %v1622 = vadd.f32 %v60, %v1621
    %v1623 = vpop.f32.mrb[0].mxu0
    %v1624 = vadd.f32 %v64, %v1623
    %1625 = vdwg.mxu0
    %1626 = vmatprep.subr.mxu0 %v1494
    %1627 = vmatpush1.msra.mxu0 %v1493
    %1628 = vmatprep.subr.mxu0 %v1498
    %1629 = vmatpush1.msra.mxu0 %v1497
    %1630 = vmatprep.subr.mxu0 %v1502
    %1631 = vmatpush1.msra.mxu0 %v1501
    %1632 = vmatprep.subr.mxu0 %v1506
    %1633 = vmatpush1.msra.mxu0 %v1505
    %1634 = vmatprep.subr.mxu0 %v1510
    %1635 = vmatpush1.msra.mxu0 %v1509
    %1636 = vmatprep.subr.mxu0 %v1514
    %1637 = vmatpush1.msra.mxu0 %v1513
    %1638 = vmatprep.subr.mxu0 %v1518
    %1639 = vmatpush1.msra.mxu0 %v1517
    %1640 = vmatprep.subr.mxu0 %v1522
    %1641 = vmatpush1.msra.mxu0 %v1521
    %1642 = vmatprep.subr.mxu0 %v1526
    %1643 = vmatpush1.msra.mxu0 %v1525
    %1644 = vmatprep.subr.mxu0 %v1530
    %1645 = vmatpush1.msra.mxu0 %v1529
    %1646 = vmatprep.subr.mxu0 %v1534
    %1647 = vmatpush1.msra.mxu0 %v1533
    %1648 = vmatprep.subr.mxu0 %v1538
    %1649 = vmatpush1.msra.mxu0 %v1537
    %1650 = vmatprep.subr.mxu0 %v1542
    %1651 = vmatpush1.msra.mxu0 %v1541
    %1652 = vmatprep.subr.mxu0 %v1546
    %1653 = vmatpush1.msra.mxu0 %v1545
    %1654 = vmatprep.subr.mxu0 %v1550
    %1655 = vmatpush1.msra.mxu0 %v1549
    %1656 = vmatprep.subr.mxu0 %v1554
    %1657 = vmatpush1.msra.mxu0 %v1553
    %1658 = vmatprep.subr.mxu0 0.0
    %1659 = vmatpush1.msra.mxu0 0.0
    %1660 = vmatprep.subr.mxu0 0.0
    %1661 = vmatpush1.msra.mxu0 0.0
    %1662 = vmatprep.subr.mxu0 0.0
    %1663 = vmatpush1.msra.mxu0 0.0
    %1664 = vmatprep.subr.mxu0 0.0
    %1665 = vmatpush1.msra.mxu0 0.0
    %1666 = vmatprep.subr.mxu0 0.0
    %1667 = vmatpush1.msra.mxu0 0.0
    %1668 = vmatprep.subr.mxu0 0.0
    %1669 = vmatpush1.msra.mxu0 0.0
    %1670 = vmatprep.subr.mxu0 0.0
    %1671 = vmatpush1.msra.mxu0 0.0
    %1672 = vmatprep.subr.mxu0 0.0
    %1673 = vmatpush1.msra.mxu0 0.0
    %1674 = vmatprep.subr.mxu0 0.0
    %1675 = vmatpush1.msra.mxu0 0.0
    %1676 = vmatprep.subr.mxu0 0.0
    %1677 = vmatpush1.msra.mxu0 0.0
    %1678 = vmatprep.subr.mxu0 0.0
    %1679 = vmatpush1.msra.mxu0 0.0
    %1680 = vmatprep.subr.mxu0 0.0
    %1681 = vmatpush1.msra.mxu0 0.0
    %1682 = vmatprep.subr.mxu0 0.0
    %1683 = vmatpush1.msra.mxu0 0.0
    %1684 = vmatprep.subr.mxu0 0.0
    %1685 = vmatpush1.msra.mxu0 0.0
    %1686 = vmatprep.subr.mxu0 0.0
    %1687 = vmatpush1.msra.mxu0 0.0
    %1688 = vmatprep.subr.mxu0 0.0
    %1689 = vmatpush1.msra.mxu0 0.0
    %1690 = vmatprep.mubr.f32.mxu0 0.0
    %1691 = vmatmul.mubr.f32.gmra.mrb[0].mxu0 %v1490
    %v1692 = vpop.f32.mrb[0].mxu0
    %v1693 = vadd.f32 %v68, %v1692
    %v1694 = vpop.f32.mrb[0].mxu0
    %v1695 = vadd.f32 %v72, %v1694
    %1696 = vdwg.mxu0
    %v1701 = vcombine.low %v1622, %v1624
    %v1702 = vcombine.low %v1693, %v1695
    %v1704 = vunpack.c.l.s4 1983009808
    %v1705 = vunpack.c.0.s8 %v1704
    %v1706 = vlaneseq
    %v1707 = vshrl.u32 %v1706, 7
    %v1708 = vsub.s32 %v1705, %v1707
    %v1709 = vrot.slane %v1701, %v1708
    %v1711 = vunpack.c.l.s4 1983009808
    %v1712 = vunpack.c.0.s8 %v1711
    %v1713 = vlaneseq
    %v1714 = vshrl.u32 %v1713, 7
    %v1715 = vsub.s32 %v1712, %v1714
    %v1716 = vrot.slane %v1702, %v1715
    %v1717 = vcombine.low %v1709, %v1716
    %s1719 = scalar_lea.vmem [#allocation2], 48
    %1720 = vst [vmem:[%s1719] sm:$0xff] %v1717
    %s1721 = scalar_lea.vmem %s0, 14
    %v1722 = vld [vmem:[%s1721] sm:$0x3]
    %v1723 = vld [vmem:[#allocation3] sm:$0xff]
    %v1724 = vld [vmem:[#allocation3 + $0x8] sm:$0xff]
    %v1725 = vld [vmem:[#allocation3 + $0x10] sm:$0xff]
    %v1726 = vld [vmem:[#allocation3 + $0x18] sm:$0xff]
    %v1727 = vld [vmem:[#allocation3 + $0x20] sm:$0xff]
    %v1728 = vld [vmem:[#allocation3 + $0x28] sm:$0xff]
    %v1729 = vld [vmem:[#allocation3 + $0x30] sm:$0xff]
    %v1730 = vld [vmem:[#allocation3 + $0x38] sm:$0xff]
    %v1731 = vld [vmem:[#allocation3 + $0x40] sm:$0xff]
    %v1732 = vld [vmem:[#allocation3 + $0x48] sm:$0xff]
    %v1733 = vld [vmem:[#allocation3 + $0x50] sm:$0xff]
    %v1734 = vld [vmem:[#allocation3 + $0x58] sm:$0xff]
    %v1735 = vld [vmem:[#allocation3 + $0x60] sm:$0xff]
    %v1736 = vld [vmem:[#allocation3 + $0x68] sm:$0xff]
    %v1737 = vld [vmem:[#allocation3 + $0x70] sm:$0xff]
    %v1738 = vld [vmem:[#allocation3 + $0x78] sm:$0xff]
    %v1739 = vld [vmem:[#allocation3 + $0x80] sm:$0xff]
    %v1740 = vld [vmem:[#allocation3 + $0x88] sm:$0xff]
    %v1741 = vld [vmem:[#allocation3 + $0x90] sm:$0xff]
    %v1742 = vld [vmem:[#allocation3 + $0x98] sm:$0xff]
    %v1743 = vld [vmem:[#allocation3 + $0xa0] sm:$0xff]
    %v1744 = vld [vmem:[#allocation3 + $0xa8] sm:$0xff]
    %v1745 = vld [vmem:[#allocation3 + $0xb0] sm:$0xff]
    %v1746 = vld [vmem:[#allocation3 + $0xb8] sm:$0xff]
    %v1747 = vld [vmem:[#allocation3 + $0xc0] sm:$0xff]
    %v1748 = vld [vmem:[#allocation3 + $0xc8] sm:$0xff]
    %v1749 = vld [vmem:[#allocation3 + $0xd0] sm:$0xff]
    %v1750 = vld [vmem:[#allocation3 + $0xd8] sm:$0xff]
    %v1751 = vld [vmem:[#allocation3 + $0xe0] sm:$0xff]
    %v1752 = vld [vmem:[#allocation3 + $0xe8] sm:$0xff]
    %v1753 = vld [vmem:[#allocation3 + $0xf0] sm:$0xff]
    %v1754 = vld [vmem:[#allocation3 + $0xf8] sm:$0xff]
    %v1755 = vld [vmem:[#allocation3 + $0x100] sm:$0xff]
    %v1756 = vld [vmem:[#allocation3 + $0x108] sm:$0xff]
    %v1757 = vld [vmem:[#allocation3 + $0x110] sm:$0xff]
    %v1758 = vld [vmem:[#allocation3 + $0x118] sm:$0xff]
    %v1759 = vld [vmem:[#allocation3 + $0x120] sm:$0xff]
    %v1760 = vld [vmem:[#allocation3 + $0x128] sm:$0xff]
    %v1761 = vld [vmem:[#allocation3 + $0x130] sm:$0xff]
    %v1762 = vld [vmem:[#allocation3 + $0x138] sm:$0xff]
    %v1763 = vld [vmem:[#allocation3 + $0x140] sm:$0xff]
    %v1764 = vld [vmem:[#allocation3 + $0x148] sm:$0xff]
    %v1765 = vld [vmem:[#allocation3 + $0x150] sm:$0xff]
    %v1766 = vld [vmem:[#allocation3 + $0x158] sm:$0xff]
    %v1767 = vld [vmem:[#allocation3 + $0x160] sm:$0xff]
    %v1768 = vld [vmem:[#allocation3 + $0x168] sm:$0xff]
    %v1769 = vld [vmem:[#allocation3 + $0x170] sm:$0xff]
    %v1770 = vld [vmem:[#allocation3 + $0x178] sm:$0xff]
    %v1771 = vld [vmem:[#allocation3 + $0x180] sm:$0xff]
    %v1772 = vld [vmem:[#allocation3 + $0x188] sm:$0xff]
    %v1773 = vld [vmem:[#allocation3 + $0x190] sm:$0xff]
    %v1774 = vld [vmem:[#allocation3 + $0x198] sm:$0xff]
    %v1775 = vld [vmem:[#allocation3 + $0x1a0] sm:$0xff]
    %v1776 = vld [vmem:[#allocation3 + $0x1a8] sm:$0xff]
    %v1777 = vld [vmem:[#allocation3 + $0x1b0] sm:$0xff]
    %v1778 = vld [vmem:[#allocation3 + $0x1b8] sm:$0xff]
    %v1779 = vld [vmem:[#allocation3 + $0x1c0] sm:$0xff]
    %v1780 = vld [vmem:[#allocation3 + $0x1c8] sm:$0xff]
    %v1781 = vld [vmem:[#allocation3 + $0x1d0] sm:$0xff]
    %v1782 = vld [vmem:[#allocation3 + $0x1d8] sm:$0xff]
    %v1783 = vld [vmem:[#allocation3 + $0x1e0] sm:$0xff]
    %v1784 = vld [vmem:[#allocation3 + $0x1e8] sm:$0xff]
    %v1785 = vld [vmem:[#allocation3 + $0x1f0] sm:$0xff]
    %v1786 = vld [vmem:[#allocation3 + $0x1f8] sm:$0xff]
    %1787 = vmatprep.subr.mxu0 %v1724
    %1788 = vmatpush1.msra.mxu0 %v1723
    %1789 = vmatprep.subr.mxu0 %v1728
    %1790 = vmatpush1.msra.mxu0 %v1727
    %1791 = vmatprep.subr.mxu0 %v1732
    %1792 = vmatpush1.msra.mxu0 %v1731
    %1793 = vmatprep.subr.mxu0 %v1736
    %1794 = vmatpush1.msra.mxu0 %v1735
    %1795 = vmatprep.subr.mxu0 %v1740
    %1796 = vmatpush1.msra.mxu0 %v1739
    %1797 = vmatprep.subr.mxu0 %v1744
    %1798 = vmatpush1.msra.mxu0 %v1743
    %1799 = vmatprep.subr.mxu0 %v1748
    %1800 = vmatpush1.msra.mxu0 %v1747
    %1801 = vmatprep.subr.mxu0 %v1752
    %1802 = vmatpush1.msra.mxu0 %v1751
    %1803 = vmatprep.subr.mxu0 %v1756
    %1804 = vmatpush1.msra.mxu0 %v1755
    %1805 = vmatprep.subr.mxu0 %v1760
    %1806 = vmatpush1.msra.mxu0 %v1759
    %1807 = vmatprep.subr.mxu0 %v1764
    %1808 = vmatpush1.msra.mxu0 %v1763
    %1809 = vmatprep.subr.mxu0 %v1768
    %1810 = vmatpush1.msra.mxu0 %v1767
    %1811 = vmatprep.subr.mxu0 %v1772
    %1812 = vmatpush1.msra.mxu0 %v1771
    %1813 = vmatprep.subr.mxu0 %v1776
    %1814 = vmatpush1.msra.mxu0 %v1775
    %1815 = vmatprep.subr.mxu0 %v1780
    %1816 = vmatpush1.msra.mxu0 %v1779
    %1817 = vmatprep.subr.mxu0 %v1784
    %1818 = vmatpush1.msra.mxu0 %v1783
    %1819 = vmatprep.subr.mxu0 0.0
    %1820 = vmatpush1.msra.mxu0 0.0
    %1821 = vmatprep.subr.mxu0 0.0
    %1822 = vmatpush1.msra.mxu0 0.0
    %1823 = vmatprep.subr.mxu0 0.0
    %1824 = vmatpush1.msra.mxu0 0.0
    %1825 = vmatprep.subr.mxu0 0.0
    %1826 = vmatpush1.msra.mxu0 0.0
    %1827 = vmatprep.subr.mxu0 0.0
    %1828 = vmatpush1.msra.mxu0 0.0
    %1829 = vmatprep.subr.mxu0 0.0
    %1830 = vmatpush1.msra.mxu0 0.0
    %1831 = vmatprep.subr.mxu0 0.0
    %1832 = vmatpush1.msra.mxu0 0.0
    %1833 = vmatprep.subr.mxu0 0.0
    %1834 = vmatpush1.msra.mxu0 0.0
    %1835 = vmatprep.subr.mxu0 0.0
    %1836 = vmatpush1.msra.mxu0 0.0
    %1837 = vmatprep.subr.mxu0 0.0
    %1838 = vmatpush1.msra.mxu0 0.0
    %1839 = vmatprep.subr.mxu0 0.0
    %1840 = vmatpush1.msra.mxu0 0.0
    %1841 = vmatprep.subr.mxu0 0.0
    %1842 = vmatpush1.msra.mxu0 0.0
    %1843 = vmatprep.subr.mxu0 0.0
    %1844 = vmatpush1.msra.mxu0 0.0
    %1845 = vmatprep.subr.mxu0 0.0
    %1846 = vmatpush1.msra.mxu0 0.0
    %1847 = vmatprep.subr.mxu0 0.0
    %1848 = vmatpush1.msra.mxu0 0.0
    %1849 = vmatprep.subr.mxu0 0.0
    %1850 = vmatpush1.msra.mxu0 0.0
    %1851 = vmatprep.mubr.f32.mxu0 0.0
    %1852 = vmatmul.mubr.f32.gmra.mrb[0].mxu0 %v1722
    %v1853 = vpop.f32.mrb[0].mxu0
    %v1854 = vadd.f32 %v60, %v1853
    %v1855 = vpop.f32.mrb[0].mxu0
    %v1856 = vadd.f32 %v64, %v1855
    %1857 = vdwg.mxu0
    %1858 = vmatprep.subr.mxu0 %v1726
    %1859 = vmatpush1.msra.mxu0 %v1725
    %1860 = vmatprep.subr.mxu0 %v1730
    %1861 = vmatpush1.msra.mxu0 %v1729
    %1862 = vmatprep.subr.mxu0 %v1734
    %1863 = vmatpush1.msra.mxu0 %v1733
    %1864 = vmatprep.subr.mxu0 %v1738
    %1865 = vmatpush1.msra.mxu0 %v1737
    %1866 = vmatprep.subr.mxu0 %v1742
    %1867 = vmatpush1.msra.mxu0 %v1741
    %1868 = vmatprep.subr.mxu0 %v1746
    %1869 = vmatpush1.msra.mxu0 %v1745
    %1870 = vmatprep.subr.mxu0 %v1750
    %1871 = vmatpush1.msra.mxu0 %v1749
    %1872 = vmatprep.subr.mxu0 %v1754
    %1873 = vmatpush1.msra.mxu0 %v1753
    %1874 = vmatprep.subr.mxu0 %v1758
    %1875 = vmatpush1.msra.mxu0 %v1757
    %1876 = vmatprep.subr.mxu0 %v1762
    %1877 = vmatpush1.msra.mxu0 %v1761
    %1878 = vmatprep.subr.mxu0 %v1766
    %1879 = vmatpush1.msra.mxu0 %v1765
    %1880 = vmatprep.subr.mxu0 %v1770
    %1881 = vmatpush1.msra.mxu0 %v1769
    %1882 = vmatprep.subr.mxu0 %v1774
    %1883 = vmatpush1.msra.mxu0 %v1773
    %1884 = vmatprep.subr.mxu0 %v1778
    %1885 = vmatpush1.msra.mxu0 %v1777
    %1886 = vmatprep.subr.mxu0 %v1782
    %1887 = vmatpush1.msra.mxu0 %v1781
    %1888 = vmatprep.subr.mxu0 %v1786
    %1889 = vmatpush1.msra.mxu0 %v1785
    %1890 = vmatprep.subr.mxu0 0.0
    %1891 = vmatpush1.msra.mxu0 0.0
    %1892 = vmatprep.subr.mxu0 0.0
    %1893 = vmatpush1.msra.mxu0 0.0
    %1894 = vmatprep.subr.mxu0 0.0
    %1895 = vmatpush1.msra.mxu0 0.0
    %1896 = vmatprep.subr.mxu0 0.0
    %1897 = vmatpush1.msra.mxu0 0.0
    %1898 = vmatprep.subr.mxu0 0.0
    %1899 = vmatpush1.msra.mxu0 0.0
    %1900 = vmatprep.subr.mxu0 0.0
    %1901 = vmatpush1.msra.mxu0 0.0
    %1902 = vmatprep.subr.mxu0 0.0
    %1903 = vmatpush1.msra.mxu0 0.0
    %1904 = vmatprep.subr.mxu0 0.0
    %1905 = vmatpush1.msra.mxu0 0.0
    %1906 = vmatprep.subr.mxu0 0.0
    %1907 = vmatpush1.msra.mxu0 0.0
    %1908 = vmatprep.subr.mxu0 0.0
    %1909 = vmatpush1.msra.mxu0 0.0
    %1910 = vmatprep.subr.mxu0 0.0
    %1911 = vmatpush1.msra.mxu0 0.0
    %1912 = vmatprep.subr.mxu0 0.0
    %1913 = vmatpush1.msra.mxu0 0.0
    %1914 = vmatprep.subr.mxu0 0.0
    %1915 = vmatpush1.msra.mxu0 0.0
    %1916 = vmatprep.subr.mxu0 0.0
    %1917 = vmatpush1.msra.mxu0 0.0
    %1918 = vmatprep.subr.mxu0 0.0
    %1919 = vmatpush1.msra.mxu0 0.0
    %1920 = vmatprep.subr.mxu0 0.0
    %1921 = vmatpush1.msra.mxu0 0.0
    %1922 = vmatprep.mubr.f32.mxu0 0.0
    %1923 = vmatmul.mubr.f32.gmra.mrb[0].mxu0 %v1722
    %v1924 = vpop.f32.mrb[0].mxu0
    %v1925 = vadd.f32 %v68, %v1924
    %v1926 = vpop.f32.mrb[0].mxu0
    %v1927 = vadd.f32 %v72, %v1926
    %1928 = vdwg.mxu0
    %v1933 = vcombine.low %v1854, %v1856
    %v1934 = vcombine.low %v1925, %v1927
    %v1936 = vunpack.c.l.s4 1983009808
    %v1937 = vunpack.c.0.s8 %v1936
    %v1938 = vlaneseq
    %v1939 = vshrl.u32 %v1938, 7
    %v1940 = vsub.s32 %v1937, %v1939
    %v1941 = vrot.slane %v1933, %v1940
    %v1943 = vunpack.c.l.s4 1983009808
    %v1944 = vunpack.c.0.s8 %v1943
    %v1945 = vlaneseq
    %v1946 = vshrl.u32 %v1945, 7
    %v1947 = vsub.s32 %v1944, %v1946
    %v1948 = vrot.slane %v1934, %v1947
    %v1949 = vcombine.low %v1941, %v1948
    %s1951 = scalar_lea.vmem [#allocation2], 56
    %1952 = vst [vmem:[%s1951] sm:$0xff] %v1949
    %v1953 = vld [vmem:[#allocation2] sm:$0xff]
    %v1954 = vxor.u32 %v1953, 2147483648
    %v1955 = vmul.f32 %v1954, 1.442695
    %v1956 = vpow.pop %v1955
    %v1957 = vadd.f32 %v1956, 1.0
    %v1958 = vrcp.pop %v1957
    %v1959 = vmul.f32 1.0, %v1958
    %v1961 = vrot.slane %v1953, 2
    %v1963 = vxor.u32 %v1961, 2147483648
    %v1964 = vmul.f32 %v1963, 1.442695
    %v1965 = vpow.pop %v1964
    %v1966 = vadd.f32 %v1965, 1.0
    %v1967 = vrcp.pop %v1966
    %v1968 = vmul.f32 1.0, %v1967
    %v1969 = vrot.slane %v1953, 4
    %v1971 = vtanh.pop %v1969
    %v1972 = vrot.slane %v1953, 6
    %v1974 = vxor.u32 %v1972, 2147483648
    %v1975 = vmul.f32 %v1974, 1.442695
    %v1976 = vpow.pop %v1975
    %v1977 = vadd.f32 %v1976, 1.0
    %v1978 = vrcp.pop %v1977
    %v1979 = vmul.f32 1.0, %v1978
    %v1980 = vmul.f32 %v1968, 0.0
    %v1981 = vmul.f32 %v1959, %v1971
    %v1982 = vadd.f32 %v1980, %v1981
    %v1983 = vtanh.pop %v1982
    %v1984 = vmul.f32 %v1979, %v1983
    %v1985 = vpack.c.bf16 %v1984, %v1984
    %v1986 = vpack.c.bf16 0.0, 0.0
    %v1987 = vld [vmem:[#allocation5] sm:$0xff]
    %v1988 = vld [vmem:[#allocation5 + $0x8] sm:$0xff]
    %v1989 = vld [vmem:[#allocation5 + $0x10] sm:$0xff]
    %v1990 = vld [vmem:[#allocation5 + $0x18] sm:$0xff]
    %v1991 = vld [vmem:[#allocation5 + $0x20] sm:$0xff]
    %v1992 = vld [vmem:[#allocation5 + $0x28] sm:$0xff]
    %v1993 = vld [vmem:[#allocation5 + $0x30] sm:$0xff]
    %v1994 = vld [vmem:[#allocation5 + $0x38] sm:$0xff]
    %v1995 = vld [vmem:[#allocation5 + $0x40] sm:$0xff]
    %v1996 = vld [vmem:[#allocation5 + $0x48] sm:$0xff]
    %v1997 = vld [vmem:[#allocation5 + $0x50] sm:$0xff]
    %v1998 = vld [vmem:[#allocation5 + $0x58] sm:$0xff]
    %v1999 = vld [vmem:[#allocation5 + $0x60] sm:$0xff]
    %v2000 = vld [vmem:[#allocation5 + $0x68] sm:$0xff]
    %v2001 = vld [vmem:[#allocation5 + $0x70] sm:$0xff]
    %v2002 = vld [vmem:[#allocation5 + $0x78] sm:$0xff]
    %v2003 = vld [vmem:[#allocation5 + $0x80] sm:$0xff]
    %v2004 = vld [vmem:[#allocation5 + $0x88] sm:$0xff]
    %v2005 = vld [vmem:[#allocation5 + $0x90] sm:$0xff]
    %v2006 = vld [vmem:[#allocation5 + $0x98] sm:$0xff]
    %v2007 = vld [vmem:[#allocation5 + $0xa0] sm:$0xff]
    %v2008 = vld [vmem:[#allocation5 + $0xa8] sm:$0xff]
    %v2009 = vld [vmem:[#allocation5 + $0xb0] sm:$0xff]
    %v2010 = vld [vmem:[#allocation5 + $0xb8] sm:$0xff]
    %v2011 = vld [vmem:[#allocation5 + $0xc0] sm:$0xff]
    %v2012 = vld [vmem:[#allocation5 + $0xc8] sm:$0xff]
    %v2013 = vld [vmem:[#allocation5 + $0xd0] sm:$0xff]
    %v2014 = vld [vmem:[#allocation5 + $0xd8] sm:$0xff]
    %v2015 = vld [vmem:[#allocation5 + $0xe0] sm:$0xff]
    %v2016 = vld [vmem:[#allocation5 + $0xe8] sm:$0xff]
    %v2017 = vld [vmem:[#allocation5 + $0xf0] sm:$0xff]
    %v2018 = vld [vmem:[#allocation5 + $0xf8] sm:$0xff]
    %v2019 = vld [vmem:[#allocation5 + $0x100] sm:$0xff]
    %v2020 = vld [vmem:[#allocation5 + $0x108] sm:$0xff]
    %v2021 = vld [vmem:[#allocation5 + $0x110] sm:$0xff]
    %v2022 = vld [vmem:[#allocation5 + $0x118] sm:$0xff]
    %v2023 = vld [vmem:[#allocation5 + $0x120] sm:$0xff]
    %v2024 = vld [vmem:[#allocation5 + $0x128] sm:$0xff]
    %v2025 = vld [vmem:[#allocation5 + $0x130] sm:$0xff]
    %v2026 = vld [vmem:[#allocation5 + $0x138] sm:$0xff]
    %v2027 = vld [vmem:[#allocation5 + $0x140] sm:$0xff]
    %v2028 = vld [vmem:[#allocation5 + $0x148] sm:$0xff]
    %v2029 = vld [vmem:[#allocation5 + $0x150] sm:$0xff]
    %v2030 = vld [vmem:[#allocation5 + $0x158] sm:$0xff]
    %v2031 = vld [vmem:[#allocation5 + $0x160] sm:$0xff]
    %v2032 = vld [vmem:[#allocation5 + $0x168] sm:$0xff]
    %v2033 = vld [vmem:[#allocation5 + $0x170] sm:$0xff]
    %v2034 = vld [vmem:[#allocation5 + $0x178] sm:$0xff]
    %v2035 = vld [vmem:[#allocation5 + $0x180] sm:$0xff]
    %v2036 = vld [vmem:[#allocation5 + $0x188] sm:$0xff]
    %v2037 = vld [vmem:[#allocation5 + $0x190] sm:$0xff]
    %v2038 = vld [vmem:[#allocation5 + $0x198] sm:$0xff]
    %v2039 = vld [vmem:[#allocation5 + $0x1a0] sm:$0xff]
    %v2040 = vld [vmem:[#allocation5 + $0x1a8] sm:$0xff]
    %v2041 = vld [vmem:[#allocation5 + $0x1b0] sm:$0xff]
    %v2042 = vld [vmem:[#allocation5 + $0x1b8] sm:$0xff]
    %v2043 = vld [vmem:[#allocation5 + $0x1c0] sm:$0xff]
    %v2044 = vld [vmem:[#allocation5 + $0x1c8] sm:$0xff]
    %v2045 = vld [vmem:[#allocation5 + $0x1d0] sm:$0xff]
    %v2046 = vld [vmem:[#allocation5 + $0x1d8] sm:$0xff]
    %v2047 = vld [vmem:[#allocation5 + $0x1e0] sm:$0xff]
    %v2048 = vld [vmem:[#allocation5 + $0x1e8] sm:$0xff]
    %v2049 = vld [vmem:[#allocation5 + $0x1f0] sm:$0xff]
    %v2050 = vld [vmem:[#allocation5 + $0x1f8] sm:$0xff]
    %v2051 = vld [vmem:[#allocation5 + $0x200] sm:$0xff]
    %v2052 = vld [vmem:[#allocation5 + $0x208] sm:$0xff]
    %v2053 = vld [vmem:[#allocation5 + $0x210] sm:$0xff]
    %v2054 = vld [vmem:[#allocation5 + $0x218] sm:$0xff]
    %v2055 = vld [vmem:[#allocation5 + $0x220] sm:$0xff]
    %v2056 = vld [vmem:[#allocation5 + $0x228] sm:$0xff]
    %v2057 = vld [vmem:[#allocation5 + $0x230] sm:$0xff]
    %v2058 = vld [vmem:[#allocation5 + $0x238] sm:$0xff]
    %v2059 = vld [vmem:[#allocation5 + $0x240] sm:$0xff]
    %v2060 = vld [vmem:[#allocation5 + $0x248] sm:$0xff]
    %v2061 = vld [vmem:[#allocation5 + $0x250] sm:$0xff]
    %v2062 = vld [vmem:[#allocation5 + $0x258] sm:$0xff]
    %v2063 = vld [vmem:[#allocation5 + $0x260] sm:$0xff]
    %v2064 = vld [vmem:[#allocation5 + $0x268] sm:$0xff]
    %v2065 = vld [vmem:[#allocation5 + $0x270] sm:$0xff]
    %v2066 = vld [vmem:[#allocation5 + $0x278] sm:$0xff]
    %v2067 = vld [vmem:[#allocation5 + $0x280] sm:$0xff]
    %v2068 = vld [vmem:[#allocation5 + $0x288] sm:$0xff]
    %v2069 = vld [vmem:[#allocation5 + $0x290] sm:$0xff]
    %v2070 = vld [vmem:[#allocation5 + $0x298] sm:$0xff]
    %v2071 = vld [vmem:[#allocation5 + $0x2a0] sm:$0xff]
    %v2072 = vld [vmem:[#allocation5 + $0x2a8] sm:$0xff]
    %v2073 = vld [vmem:[#allocation5 + $0x2b0] sm:$0xff]
    %v2074 = vld [vmem:[#allocation5 + $0x2b8] sm:$0xff]
    %v2075 = vld [vmem:[#allocation5 + $0x2c0] sm:$0xff]
    %v2076 = vld [vmem:[#allocation5 + $0x2c8] sm:$0xff]
    %v2077 = vld [vmem:[#allocation5 + $0x2d0] sm:$0xff]
    %v2078 = vld [vmem:[#allocation5 + $0x2d8] sm:$0xff]
    %v2079 = vld [vmem:[#allocation5 + $0x2e0] sm:$0xff]
    %v2080 = vld [vmem:[#allocation5 + $0x2e8] sm:$0xff]
    %v2081 = vld [vmem:[#allocation5 + $0x2f0] sm:$0xff]
    %v2082 = vld [vmem:[#allocation5 + $0x2f8] sm:$0xff]
    %v2083 = vld [vmem:[#allocation5 + $0x300] sm:$0xff]
    %v2084 = vld [vmem:[#allocation5 + $0x308] sm:$0xff]
    %v2085 = vld [vmem:[#allocation5 + $0x310] sm:$0xff]
    %v2086 = vld [vmem:[#allocation5 + $0x318] sm:$0xff]
    %v2087 = vld [vmem:[#allocation5 + $0x320] sm:$0xff]
    %v2088 = vld [vmem:[#allocation5 + $0x328] sm:$0xff]
    %v2089 = vld [vmem:[#allocation5 + $0x330] sm:$0xff]
    %v2090 = vld [vmem:[#allocation5 + $0x338] sm:$0xff]
    %v2091 = vld [vmem:[#allocation5 + $0x340] sm:$0xff]
    %v2092 = vld [vmem:[#allocation5 + $0x348] sm:$0xff]
    %v2093 = vld [vmem:[#allocation5 + $0x350] sm:$0xff]
    %v2094 = vld [vmem:[#allocation5 + $0x358] sm:$0xff]
    %v2095 = vld [vmem:[#allocation5 + $0x360] sm:$0xff]
    %v2096 = vld [vmem:[#allocation5 + $0x368] sm:$0xff]
    %v2097 = vld [vmem:[#allocation5 + $0x370] sm:$0xff]
    %v2098 = vld [vmem:[#allocation5 + $0x378] sm:$0xff]
    %v2099 = vld [vmem:[#allocation5 + $0x380] sm:$0xff]
    %v2100 = vld [vmem:[#allocation5 + $0x388] sm:$0xff]
    %v2101 = vld [vmem:[#allocation5 + $0x390] sm:$0xff]
    %v2102 = vld [vmem:[#allocation5 + $0x398] sm:$0xff]
    %v2103 = vld [vmem:[#allocation5 + $0x3a0] sm:$0xff]
    %v2104 = vld [vmem:[#allocation5 + $0x3a8] sm:$0xff]
    %v2105 = vld [vmem:[#allocation5 + $0x3b0] sm:$0xff]
    %v2106 = vld [vmem:[#allocation5 + $0x3b8] sm:$0xff]
    %v2107 = vld [vmem:[#allocation5 + $0x3c0] sm:$0xff]
    %v2108 = vld [vmem:[#allocation5 + $0x3c8] sm:$0xff]
    %v2109 = vld [vmem:[#allocation5 + $0x3d0] sm:$0xff]
    %v2110 = vld [vmem:[#allocation5 + $0x3d8] sm:$0xff]
    %v2111 = vld [vmem:[#allocation5 + $0x3e0] sm:$0xff]
    %v2112 = vld [vmem:[#allocation5 + $0x3e8] sm:$0xff]
    %v2113 = vld [vmem:[#allocation5 + $0x3f0] sm:$0xff]
    %v2114 = vld [vmem:[#allocation5 + $0x3f8] sm:$0xff]
    %v2243 = vunpack.c.l.b16 %v1987
    %v2244 = vunpack.c.h.b16 %v1987
    %v2245 = vunpack.c.l.b16 %v1988
    %v2246 = vunpack.c.h.b16 %v1988
    %v2247 = vunpack.c.l.b16 %v1989
    %v2248 = vunpack.c.h.b16 %v1989
    %v2249 = vunpack.c.l.b16 %v1990
    %v2250 = vunpack.c.h.b16 %v1990
    %v2251 = vunpack.c.l.b16 %v1991
    %v2252 = vunpack.c.h.b16 %v1991
    %v2253 = vunpack.c.l.b16 %v1992
    %v2254 = vunpack.c.h.b16 %v1992
    %v2255 = vunpack.c.l.b16 %v1993
    %v2256 = vunpack.c.h.b16 %v1993
    %v2257 = vunpack.c.l.b16 %v1994
    %v2258 = vunpack.c.h.b16 %v1994
    %v2259 = vunpack.c.l.b16 %v1995
    %v2260 = vunpack.c.h.b16 %v1995
    %v2261 = vunpack.c.l.b16 %v1996
    %v2262 = vunpack.c.h.b16 %v1996
    %v2263 = vunpack.c.l.b16 %v1997
    %v2264 = vunpack.c.h.b16 %v1997
    %v2265 = vunpack.c.l.b16 %v1998
    %v2266 = vunpack.c.h.b16 %v1998
    %v2267 = vunpack.c.l.b16 %v1999
    %v2268 = vunpack.c.h.b16 %v1999
    %v2269 = vunpack.c.l.b16 %v2000
    %v2270 = vunpack.c.h.b16 %v2000
    %v2271 = vunpack.c.l.b16 %v2001
    %v2272 = vunpack.c.h.b16 %v2001
    %v2273 = vunpack.c.l.b16 %v2002
    %v2274 = vunpack.c.h.b16 %v2002
    %v2275 = vunpack.c.l.b16 %v2003
    %v2276 = vunpack.c.h.b16 %v2003
    %v2277 = vunpack.c.l.b16 %v2004
    %v2278 = vunpack.c.h.b16 %v2004
    %v2279 = vunpack.c.l.b16 %v2005
    %v2280 = vunpack.c.h.b16 %v2005
    %v2281 = vunpack.c.l.b16 %v2006
    %v2282 = vunpack.c.h.b16 %v2006
    %v2283 = vunpack.c.l.b16 %v2007
    %v2284 = vunpack.c.h.b16 %v2007
    %v2285 = vunpack.c.l.b16 %v2008
    %v2286 = vunpack.c.h.b16 %v2008
    %v2287 = vunpack.c.l.b16 %v2009
    %v2288 = vunpack.c.h.b16 %v2009
    %v2289 = vunpack.c.l.b16 %v2010
    %v2290 = vunpack.c.h.b16 %v2010
    %v2291 = vunpack.c.l.b16 %v2011
    %v2292 = vunpack.c.h.b16 %v2011
    %v2293 = vunpack.c.l.b16 %v2012
    %v2294 = vunpack.c.h.b16 %v2012
    %v2295 = vunpack.c.l.b16 %v2013
    %v2296 = vunpack.c.h.b16 %v2013
    %v2297 = vunpack.c.l.b16 %v2014
    %v2298 = vunpack.c.h.b16 %v2014
    %v2299 = vunpack.c.l.b16 %v2015
    %v2300 = vunpack.c.h.b16 %v2015
    %v2301 = vunpack.c.l.b16 %v2016
    %v2302 = vunpack.c.h.b16 %v2016
    %v2303 = vunpack.c.l.b16 %v2017
    %v2304 = vunpack.c.h.b16 %v2017
    %v2305 = vunpack.c.l.b16 %v2018
    %v2306 = vunpack.c.h.b16 %v2018
    %v2307 = vunpack.c.l.b16 %v2019
    %v2308 = vunpack.c.h.b16 %v2019
    %v2309 = vunpack.c.l.b16 %v2020
    %v2310 = vunpack.c.h.b16 %v2020
    %v2311 = vunpack.c.l.b16 %v2021
    %v2312 = vunpack.c.h.b16 %v2021
    %v2313 = vunpack.c.l.b16 %v2022
    %v2314 = vunpack.c.h.b16 %v2022
    %v2315 = vunpack.c.l.b16 %v2023
    %v2316 = vunpack.c.h.b16 %v2023
    %v2317 = vunpack.c.l.b16 %v2024
    %v2318 = vunpack.c.h.b16 %v2024
    %v2319 = vunpack.c.l.b16 %v2025
    %v2320 = vunpack.c.h.b16 %v2025
    %v2321 = vunpack.c.l.b16 %v2026
    %v2322 = vunpack.c.h.b16 %v2026
    %v2323 = vunpack.c.l.b16 %v2027
    %v2324 = vunpack.c.h.b16 %v2027
    %v2325 = vunpack.c.l.b16 %v2028
    %v2326 = vunpack.c.h.b16 %v2028
    %v2327 = vunpack.c.l.b16 %v2029
    %v2328 = vunpack.c.h.b16 %v2029
    %v2329 = vunpack.c.l.b16 %v2030
    %v2330 = vunpack.c.h.b16 %v2030
    %v2331 = vunpack.c.l.b16 %v2031
    %v2332 = vunpack.c.h.b16 %v2031
    %v2333 = vunpack.c.l.b16 %v2032
    %v2334 = vunpack.c.h.b16 %v2032
    %v2335 = vunpack.c.l.b16 %v2033
    %v2336 = vunpack.c.h.b16 %v2033
    %v2337 = vunpack.c.l.b16 %v2034
    %v2338 = vunpack.c.h.b16 %v2034
    %v2339 = vunpack.c.l.b16 %v2035
    %v2340 = vunpack.c.h.b16 %v2035
    %v2341 = vunpack.c.l.b16 %v2036
    %v2342 = vunpack.c.h.b16 %v2036
    %v2343 = vunpack.c.l.b16 %v2037
    %v2344 = vunpack.c.h.b16 %v2037
    %v2345 = vunpack.c.l.b16 %v2038
    %v2346 = vunpack.c.h.b16 %v2038
    %v2347 = vunpack.c.l.b16 %v2039
    %v2348 = vunpack.c.h.b16 %v2039
    %v2349 = vunpack.c.l.b16 %v2040
    %v2350 = vunpack.c.h.b16 %v2040
    %v2351 = vunpack.c.l.b16 %v2041
    %v2352 = vunpack.c.h.b16 %v2041
    %v2353 = vunpack.c.l.b16 %v2042
    %v2354 = vunpack.c.h.b16 %v2042
    %v2355 = vunpack.c.l.b16 %v2043
    %v2356 = vunpack.c.h.b16 %v2043
    %v2357 = vunpack.c.l.b16 %v2044
    %v2358 = vunpack.c.h.b16 %v2044
    %v2359 = vunpack.c.l.b16 %v2045
    %v2360 = vunpack.c.h.b16 %v2045
    %v2361 = vunpack.c.l.b16 %v2046
    %v2362 = vunpack.c.h.b16 %v2046
    %v2363 = vunpack.c.l.b16 %v2047
    %v2364 = vunpack.c.h.b16 %v2047
    %v2365 = vunpack.c.l.b16 %v2048
    %v2366 = vunpack.c.h.b16 %v2048
    %v2367 = vunpack.c.l.b16 %v2049
    %v2368 = vunpack.c.h.b16 %v2049
    %v2369 = vunpack.c.l.b16 %v2050
    %v2370 = vunpack.c.h.b16 %v2050
    %v2371 = vunpack.c.l.b16 %v2051
    %v2372 = vunpack.c.h.b16 %v2051
    %v2373 = vunpack.c.l.b16 %v2052
    %v2374 = vunpack.c.h.b16 %v2052
    %v2375 = vunpack.c.l.b16 %v2053
    %v2376 = vunpack.c.h.b16 %v2053
    %v2377 = vunpack.c.l.b16 %v2054
    %v2378 = vunpack.c.h.b16 %v2054
    %v2379 = vunpack.c.l.b16 %v2055
    %v2380 = vunpack.c.h.b16 %v2055
    %v2381 = vunpack.c.l.b16 %v2056
    %v2382 = vunpack.c.h.b16 %v2056
    %v2383 = vunpack.c.l.b16 %v2057
    %v2384 = vunpack.c.h.b16 %v2057
    %v2385 = vunpack.c.l.b16 %v2058
    %v2386 = vunpack.c.h.b16 %v2058
    %v2387 = vunpack.c.l.b16 %v2059
    %v2388 = vunpack.c.h.b16 %v2059
    %v2389 = vunpack.c.l.b16 %v2060
    %v2390 = vunpack.c.h.b16 %v2060
    %v2391 = vunpack.c.l.b16 %v2061
    %v2392 = vunpack.c.h.b16 %v2061
    %v2393 = vunpack.c.l.b16 %v2062
    %v2394 = vunpack.c.h.b16 %v2062
    %v2395 = vunpack.c.l.b16 %v2063
    %v2396 = vunpack.c.h.b16 %v2063
    %v2397 = vunpack.c.l.b16 %v2064
    %v2398 = vunpack.c.h.b16 %v2064
    %v2399 = vunpack.c.l.b16 %v2065
    %v2400 = vunpack.c.h.b16 %v2065
    %v2401 = vunpack.c.l.b16 %v2066
    %v2402 = vunpack.c.h.b16 %v2066
    %v2403 = vunpack.c.l.b16 %v2067
    %v2404 = vunpack.c.h.b16 %v2067
    %v2405 = vunpack.c.l.b16 %v2068
    %v2406 = vunpack.c.h.b16 %v2068
    %v2407 = vunpack.c.l.b16 %v2069
    %v2408 = vunpack.c.h.b16 %v2069
    %v2409 = vunpack.c.l.b16 %v2070
    %v2410 = vunpack.c.h.b16 %v2070
    %v2411 = vunpack.c.l.b16 %v2071
    %v2412 = vunpack.c.h.b16 %v2071
    %v2413 = vunpack.c.l.b16 %v2072
    %v2414 = vunpack.c.h.b16 %v2072
    %v2415 = vunpack.c.l.b16 %v2073
    %v2416 = vunpack.c.h.b16 %v2073
    %v2417 = vunpack.c.l.b16 %v2074
    %v2418 = vunpack.c.h.b16 %v2074
    %v2419 = vunpack.c.l.b16 %v2075
    %v2420 = vunpack.c.h.b16 %v2075
    %v2421 = vunpack.c.l.b16 %v2076
    %v2422 = vunpack.c.h.b16 %v2076
    %v2423 = vunpack.c.l.b16 %v2077
    %v2424 = vunpack.c.h.b16 %v2077
    %v2425 = vunpack.c.l.b16 %v2078
    %v2426 = vunpack.c.h.b16 %v2078
    %v2427 = vunpack.c.l.b16 %v2079
    %v2428 = vunpack.c.h.b16 %v2079
    %v2429 = vunpack.c.l.b16 %v2080
    %v2430 = vunpack.c.h.b16 %v2080
    %v2431 = vunpack.c.l.b16 %v2081
    %v2432 = vunpack.c.h.b16 %v2081
    %v2433 = vunpack.c.l.b16 %v2082
    %v2434 = vunpack.c.h.b16 %v2082
    %v2435 = vunpack.c.l.b16 %v2083
    %v2436 = vunpack.c.h.b16 %v2083
    %v2437 = vunpack.c.l.b16 %v2084
    %v2438 = vunpack.c.h.b16 %v2084
    %v2439 = vunpack.c.l.b16 %v2085
    %v2440 = vunpack.c.h.b16 %v2085
    %v2441 = vunpack.c.l.b16 %v2086
    %v2442 = vunpack.c.h.b16 %v2086
    %v2443 = vunpack.c.l.b16 %v2087
    %v2444 = vunpack.c.h.b16 %v2087
    %v2445 = vunpack.c.l.b16 %v2088
    %v2446 = vunpack.c.h.b16 %v2088
    %v2447 = vunpack.c.l.b16 %v2089
    %v2448 = vunpack.c.h.b16 %v2089
    %v2449 = vunpack.c.l.b16 %v2090
    %v2450 = vunpack.c.h.b16 %v2090
    %v2451 = vunpack.c.l.b16 %v2091
    %v2452 = vunpack.c.h.b16 %v2091
    %v2453 = vunpack.c.l.b16 %v2092
    %v2454 = vunpack.c.h.b16 %v2092
    %v2455 = vunpack.c.l.b16 %v2093
    %v2456 = vunpack.c.h.b16 %v2093
    %v2457 = vunpack.c.l.b16 %v2094
    %v2458 = vunpack.c.h.b16 %v2094
    %v2459 = vunpack.c.l.b16 %v2095
    %v2460 = vunpack.c.h.b16 %v2095
    %v2461 = vunpack.c.l.b16 %v2096
    %v2462 = vunpack.c.h.b16 %v2096
    %v2463 = vunpack.c.l.b16 %v2097
    %v2464 = vunpack.c.h.b16 %v2097
    %v2465 = vunpack.c.l.b16 %v2098
    %v2466 = vunpack.c.h.b16 %v2098
    %v2467 = vunpack.c.l.b16 %v2099
    %v2468 = vunpack.c.h.b16 %v2099
    %v2469 = vunpack.c.l.b16 %v2100
    %v2470 = vunpack.c.h.b16 %v2100
    %v2471 = vunpack.c.l.b16 %v2101
    %v2472 = vunpack.c.h.b16 %v2101
    %v2473 = vunpack.c.l.b16 %v2102
    %v2474 = vunpack.c.h.b16 %v2102
    %v2475 = vunpack.c.l.b16 %v2103
    %v2476 = vunpack.c.h.b16 %v2103
    %v2477 = vunpack.c.l.b16 %v2104
    %v2478 = vunpack.c.h.b16 %v2104
    %v2479 = vunpack.c.l.b16 %v2105
    %v2480 = vunpack.c.h.b16 %v2105
    %v2481 = vunpack.c.l.b16 %v2106
    %v2482 = vunpack.c.h.b16 %v2106
    %v2483 = vunpack.c.l.b16 %v2107
    %v2484 = vunpack.c.h.b16 %v2107
    %v2485 = vunpack.c.l.b16 %v2108
    %v2486 = vunpack.c.h.b16 %v2108
    %v2487 = vunpack.c.l.b16 %v2109
    %v2488 = vunpack.c.h.b16 %v2109
    %v2489 = vunpack.c.l.b16 %v2110
    %v2490 = vunpack.c.h.b16 %v2110
    %v2491 = vunpack.c.l.b16 %v2111
    %v2492 = vunpack.c.h.b16 %v2111
    %v2493 = vunpack.c.l.b16 %v2112
    %v2494 = vunpack.c.h.b16 %v2112
    %v2495 = vunpack.c.l.b16 %v2113
    %v2496 = vunpack.c.h.b16 %v2113
    %v2497 = vunpack.c.l.b16 %v2114
    %v2498 = vunpack.c.h.b16 %v2114
    %v2499 = vpack.c.b16 %v2251, %v2243
    %v2500 = vpack.c.b16 %v2252, %v2244
    %v2501 = vpack.c.b16 %v2253, %v2245
    %v2502 = vpack.c.b16 %v2254, %v2246
    %v2503 = vpack.c.b16 %v2255, %v2247
    %v2504 = vpack.c.b16 %v2256, %v2248
    %v2505 = vpack.c.b16 %v2257, %v2249
    %v2506 = vpack.c.b16 %v2258, %v2250
    %v2507 = vpack.c.b16 %v2267, %v2259
    %v2508 = vpack.c.b16 %v2268, %v2260
    %v2509 = vpack.c.b16 %v2269, %v2261
    %v2510 = vpack.c.b16 %v2270, %v2262
    %v2511 = vpack.c.b16 %v2271, %v2263
    %v2512 = vpack.c.b16 %v2272, %v2264
    %v2513 = vpack.c.b16 %v2273, %v2265
    %v2514 = vpack.c.b16 %v2274, %v2266
    %v2515 = vpack.c.b16 %v2283, %v2275
    %v2516 = vpack.c.b16 %v2284, %v2276
    %v2517 = vpack.c.b16 %v2285, %v2277
    %v2518 = vpack.c.b16 %v2286, %v2278
    %v2519 = vpack.c.b16 %v2287, %v2279
    %v2520 = vpack.c.b16 %v2288, %v2280
    %v2521 = vpack.c.b16 %v2289, %v2281
    %v2522 = vpack.c.b16 %v2290, %v2282
    %v2523 = vpack.c.b16 %v2299, %v2291
    %v2524 = vpack.c.b16 %v2300, %v2292
    %v2525 = vpack.c.b16 %v2301, %v2293
    %v2526 = vpack.c.b16 %v2302, %v2294
    %v2527 = vpack.c.b16 %v2303, %v2295
    %v2528 = vpack.c.b16 %v2304, %v2296
    %v2529 = vpack.c.b16 %v2305, %v2297
    %v2530 = vpack.c.b16 %v2306, %v2298
    %v2531 = vpack.c.b16 %v2315, %v2307
    %v2532 = vpack.c.b16 %v2316, %v2308
    %v2533 = vpack.c.b16 %v2317, %v2309
    %v2534 = vpack.c.b16 %v2318, %v2310
    %v2535 = vpack.c.b16 %v2319, %v2311
    %v2536 = vpack.c.b16 %v2320, %v2312
    %v2537 = vpack.c.b16 %v2321, %v2313
    %v2538 = vpack.c.b16 %v2322, %v2314
    %v2539 = vpack.c.b16 %v2331, %v2323
    %v2540 = vpack.c.b16 %v2332, %v2324
    %v2541 = vpack.c.b16 %v2333, %v2325
    %v2542 = vpack.c.b16 %v2334, %v2326
    %v2543 = vpack.c.b16 %v2335, %v2327
    %v2544 = vpack.c.b16 %v2336, %v2328
    %v2545 = vpack.c.b16 %v2337, %v2329
    %v2546 = vpack.c.b16 %v2338, %v2330
    %v2547 = vpack.c.b16 %v2347, %v2339
    %v2548 = vpack.c.b16 %v2348, %v2340
    %v2549 = vpack.c.b16 %v2349, %v2341
    %v2550 = vpack.c.b16 %v2350, %v2342
    %v2551 = vpack.c.b16 %v2351, %v2343
    %v2552 = vpack.c.b16 %v2352, %v2344
    %v2553 = vpack.c.b16 %v2353, %v2345
    %v2554 = vpack.c.b16 %v2354, %v2346
    %v2555 = vpack.c.b16 %v2363, %v2355
    %v2556 = vpack.c.b16 %v2364, %v2356
    %v2557 = vpack.c.b16 %v2365, %v2357
    %v2558 = vpack.c.b16 %v2366, %v2358
    %v2559 = vpack.c.b16 %v2367, %v2359
    %v2560 = vpack.c.b16 %v2368, %v2360
    %v2561 = vpack.c.b16 %v2369, %v2361
    %v2562 = vpack.c.b16 %v2370, %v2362
    %v2563 = vpack.c.b16 %v2379, %v2371
    %v2564 = vpack.c.b16 %v2380, %v2372
    %v2565 = vpack.c.b16 %v2381, %v2373
    %v2566 = vpack.c.b16 %v2382, %v2374
    %v2567 = vpack.c.b16 %v2383, %v2375
    %v2568 = vpack.c.b16 %v2384, %v2376
    %v2569 = vpack.c.b16 %v2385, %v2377
    %v2570 = vpack.c.b16 %v2386, %v2378
    %v2571 = vpack.c.b16 %v2395, %v2387
    %v2572 = vpack.c.b16 %v2396, %v2388
    %v2573 = vpack.c.b16 %v2397, %v2389
    %v2574 = vpack.c.b16 %v2398, %v2390
    %v2575 = vpack.c.b16 %v2399, %v2391
    %v2576 = vpack.c.b16 %v2400, %v2392
    %v2577 = vpack.c.b16 %v2401, %v2393
    %v2578 = vpack.c.b16 %v2402, %v2394
    %v2579 = vpack.c.b16 %v2411, %v2403
    %v2580 = vpack.c.b16 %v2412, %v2404
    %v2581 = vpack.c.b16 %v2413, %v2405
    %v2582 = vpack.c.b16 %v2414, %v2406
    %v2583 = vpack.c.b16 %v2415, %v2407
    %v2584 = vpack.c.b16 %v2416, %v2408
    %v2585 = vpack.c.b16 %v2417, %v2409
    %v2586 = vpack.c.b16 %v2418, %v2410
    %v2587 = vpack.c.b16 %v2427, %v2419
    %v2588 = vpack.c.b16 %v2428, %v2420
    %v2589 = vpack.c.b16 %v2429, %v2421
    %v2590 = vpack.c.b16 %v2430, %v2422
    %v2591 = vpack.c.b16 %v2431, %v2423
    %v2592 = vpack.c.b16 %v2432, %v2424
    %v2593 = vpack.c.b16 %v2433, %v2425
    %v2594 = vpack.c.b16 %v2434, %v2426
    %v2595 = vpack.c.b16 %v2443, %v2435
    %v2596 = vpack.c.b16 %v2444, %v2436
    %v2597 = vpack.c.b16 %v2445, %v2437
    %v2598 = vpack.c.b16 %v2446, %v2438
    %v2599 = vpack.c.b16 %v2447, %v2439
    %v2600 = vpack.c.b16 %v2448, %v2440
    %v2601 = vpack.c.b16 %v2449, %v2441
    %v2602 = vpack.c.b16 %v2450, %v2442
    %v2603 = vpack.c.b16 %v2459, %v2451
    %v2604 = vpack.c.b16 %v2460, %v2452
    %v2605 = vpack.c.b16 %v2461, %v2453
    %v2606 = vpack.c.b16 %v2462, %v2454
    %v2607 = vpack.c.b16 %v2463, %v2455
    %v2608 = vpack.c.b16 %v2464, %v2456
    %v2609 = vpack.c.b16 %v2465, %v2457
    %v2610 = vpack.c.b16 %v2466, %v2458
    %v2611 = vpack.c.b16 %v2475, %v2467
    %v2612 = vpack.c.b16 %v2476, %v2468
    %v2613 = vpack.c.b16 %v2477, %v2469
    %v2614 = vpack.c.b16 %v2478, %v2470
    %v2615 = vpack.c.b16 %v2479, %v2471
    %v2616 = vpack.c.b16 %v2480, %v2472
    %v2617 = vpack.c.b16 %v2481, %v2473
    %v2618 = vpack.c.b16 %v2482, %v2474
    %v2619 = vpack.c.b16 %v2491, %v2483
    %v2620 = vpack.c.b16 %v2492, %v2484
    %v2621 = vpack.c.b16 %v2493, %v2485
    %v2622 = vpack.c.b16 %v2494, %v2486
    %v2623 = vpack.c.b16 %v2495, %v2487
    %v2624 = vpack.c.b16 %v2496, %v2488
    %v2625 = vpack.c.b16 %v2497, %v2489
    %v2626 = vpack.c.b16 %v2498, %v2490
    %2755 = vmatprep.subr.bf16.mxu0 %v2500
    %2756 = vmatpush1.bf16.msra.mxu0 %v2499
    %2757 = vmatprep.subr.bf16.mxu0 %v2508
    %2758 = vmatpush1.bf16.msra.mxu0 %v2507
    %2759 = vmatprep.subr.bf16.mxu0 %v2516
    %2760 = vmatpush1.bf16.msra.mxu0 %v2515
    %2761 = vmatprep.subr.bf16.mxu0 %v2524
    %2762 = vmatpush1.bf16.msra.mxu0 %v2523
    %2763 = vmatprep.subr.bf16.mxu0 %v2532
    %2764 = vmatpush1.bf16.msra.mxu0 %v2531
    %2765 = vmatprep.subr.bf16.mxu0 %v2540
    %2766 = vmatpush1.bf16.msra.mxu0 %v2539
    %2767 = vmatprep.subr.bf16.mxu0 %v2548
    %2768 = vmatpush1.bf16.msra.mxu0 %v2547
    %2769 = vmatprep.subr.bf16.mxu0 %v2556
    %2770 = vmatpush1.bf16.msra.mxu0 %v2555
    %2771 = vmatprep.subr.bf16.mxu0 %v2564
    %2772 = vmatpush1.bf16.msra.mxu0 %v2563
    %2773 = vmatprep.subr.bf16.mxu0 %v2572
    %2774 = vmatpush1.bf16.msra.mxu0 %v2571
    %2775 = vmatprep.subr.bf16.mxu0 %v2580
    %2776 = vmatpush1.bf16.msra.mxu0 %v2579
    %2777 = vmatprep.subr.bf16.mxu0 %v2588
    %2778 = vmatpush1.bf16.msra.mxu0 %v2587
    %2779 = vmatprep.subr.bf16.mxu0 %v2596
    %2780 = vmatpush1.bf16.msra.mxu0 %v2595
    %2781 = vmatprep.subr.bf16.mxu0 %v2604
    %2782 = vmatpush1.bf16.msra.mxu0 %v2603
    %2783 = vmatprep.subr.bf16.mxu0 %v2612
    %2784 = vmatpush1.bf16.msra.mxu0 %v2611
    %2785 = vmatprep.subr.bf16.mxu0 %v2620
    %2786 = vmatpush1.bf16.msra.mxu0 %v2619
    %2787 = vmatprep.mubr.bf16.mxu0 %v1986
    %2788 = vmatmul.mubr.bf16.gmra.mrb[0].mxu0 %v1985
    %v2789 = vpop.f32.mrb[0].mxu0
    %v2790 = vadd.f32 0.0, %v2789
    %v2791 = vpop.f32.mrb[0].mxu0
    %v2792 = vadd.f32 0.0, %v2791
    %v2793 = vpop.f32.mrb[0].mxu0
    %v2794 = vpop.f32.mrb[0].mxu0
    %2795 = vdwg.mxu0
    %2796 = vmatprep.subr.bf16.mxu0 %v2502
    %2797 = vmatpush1.bf16.msra.mxu0 %v2501
    %2798 = vmatprep.subr.bf16.mxu0 %v2510
    %2799 = vmatpush1.bf16.msra.mxu0 %v2509
    %2800 = vmatprep.subr.bf16.mxu0 %v2518
    %2801 = vmatpush1.bf16.msra.mxu0 %v2517
    %2802 = vmatprep.subr.bf16.mxu0 %v2526
    %2803 = vmatpush1.bf16.msra.mxu0 %v2525
    %2804 = vmatprep.subr.bf16.mxu0 %v2534
    %2805 = vmatpush1.bf16.msra.mxu0 %v2533
    %2806 = vmatprep.subr.bf16.mxu0 %v2542
    %2807 = vmatpush1.bf16.msra.mxu0 %v2541
    %2808 = vmatprep.subr.bf16.mxu0 %v2550
    %2809 = vmatpush1.bf16.msra.mxu0 %v2549
    %2810 = vmatprep.subr.bf16.mxu0 %v2558
    %2811 = vmatpush1.bf16.msra.mxu0 %v2557
    %2812 = vmatprep.subr.bf16.mxu0 %v2566
    %2813 = vmatpush1.bf16.msra.mxu0 %v2565
    %2814 = vmatprep.subr.bf16.mxu0 %v2574
    %2815 = vmatpush1.bf16.msra.mxu0 %v2573
    %2816 = vmatprep.subr.bf16.mxu0 %v2582
    %2817 = vmatpush1.bf16.msra.mxu0 %v2581
    %2818 = vmatprep.subr.bf16.mxu0 %v2590
    %2819 = vmatpush1.bf16.msra.mxu0 %v2589
    %2820 = vmatprep.subr.bf16.mxu0 %v2598
    %2821 = vmatpush1.bf16.msra.mxu0 %v2597
    %2822 = vmatprep.subr.bf16.mxu0 %v2606
    %2823 = vmatpush1.bf16.msra.mxu0 %v2605
    %2824 = vmatprep.subr.bf16.mxu0 %v2614
    %2825 = vmatpush1.bf16.msra.mxu0 %v2613
    %2826 = vmatprep.subr.bf16.mxu0 %v2622
    %2827 = vmatpush1.bf16.msra.mxu0 %v2621
    %2828 = vmatprep.mubr.bf16.mxu0 %v1986
    %2829 = vmatmul.mubr.bf16.gmra.mrb[0].mxu0 %v1985
    %v2830 = vpop.f32.mrb[0].mxu0
    %v2831 = vadd.f32 0.0, %v2830
    %v2832 = vpop.f32.mrb[0].mxu0
    %v2833 = vadd.f32 0.0, %v2832
    %v2834 = vpop.f32.mrb[0].mxu0
    %v2835 = vpop.f32.mrb[0].mxu0
    %2836 = vdwg.mxu0
    %2837 = vmatprep.subr.bf16.mxu0 %v2504
    %2838 = vmatpush1.bf16.msra.mxu0 %v2503
    %2839 = vmatprep.subr.bf16.mxu0 %v2512
    %2840 = vmatpush1.bf16.msra.mxu0 %v2511
    %2841 = vmatprep.subr.bf16.mxu0 %v2520
    %2842 = vmatpush1.bf16.msra.mxu0 %v2519
    %2843 = vmatprep.subr.bf16.mxu0 %v2528
    %2844 = vmatpush1.bf16.msra.mxu0 %v2527
    %2845 = vmatprep.subr.bf16.mxu0 %v2536
    %2846 = vmatpush1.bf16.msra.mxu0 %v2535
    %2847 = vmatprep.subr.bf16.mxu0 %v2544
    %2848 = vmatpush1.bf16.msra.mxu0 %v2543
    %2849 = vmatprep.subr.bf16.mxu0 %v2552
    %2850 = vmatpush1.bf16.msra.mxu0 %v2551
    %2851 = vmatprep.subr.bf16.mxu0 %v2560
    %2852 = vmatpush1.bf16.msra.mxu0 %v2559
    %2853 = vmatprep.subr.bf16.mxu0 %v2568
    %2854 = vmatpush1.bf16.msra.mxu0 %v2567
    %2855 = vmatprep.subr.bf16.mxu0 %v2576
    %2856 = vmatpush1.bf16.msra.mxu0 %v2575
    %2857 = vmatprep.subr.bf16.mxu0 %v2584
    %2858 = vmatpush1.bf16.msra.mxu0 %v2583
    %2859 = vmatprep.subr.bf16.mxu0 %v2592
    %2860 = vmatpush1.bf16.msra.mxu0 %v2591
    %2861 = vmatprep.subr.bf16.mxu0 %v2600
    %2862 = vmatpush1.bf16.msra.mxu0 %v2599
    %2863 = vmatprep.subr.bf16.mxu0 %v2608
    %2864 = vmatpush1.bf16.msra.mxu0 %v2607
    %2865 = vmatprep.subr.bf16.mxu0 %v2616
    %2866 = vmatpush1.bf16.msra.mxu0 %v2615
    %2867 = vmatprep.subr.bf16.mxu0 %v2624
    %2868 = vmatpush1.bf16.msra.mxu0 %v2623
    %2869 = vmatprep.mubr.bf16.mxu0 %v1986
    %2870 = vmatmul.mubr.bf16.gmra.mrb[0].mxu0 %v1985
    %v2871 = vpop.f32.mrb[0].mxu0
    %v2872 = vadd.f32 0.0, %v2871
    %v2873 = vpop.f32.mrb[0].mxu0
    %v2874 = vadd.f32 0.0, %v2873
    %v2875 = vpop.f32.mrb[0].mxu0
    %v2876 = vpop.f32.mrb[0].mxu0
    %2877 = vdwg.mxu0
    %2878 = vmatprep.subr.bf16.mxu0 %v2506
    %2879 = vmatpush1.bf16.msra.mxu0 %v2505
    %2880 = vmatprep.subr.bf16.mxu0 %v2514
    %2881 = vmatpush1.bf16.msra.mxu0 %v2513
    %2882 = vmatprep.subr.bf16.mxu0 %v2522
    %2883 = vmatpush1.bf16.msra.mxu0 %v2521
    %2884 = vmatprep.subr.bf16.mxu0 %v2530
    %2885 = vmatpush1.bf16.msra.mxu0 %v2529
    %2886 = vmatprep.subr.bf16.mxu0 %v2538
    %2887 = vmatpush1.bf16.msra.mxu0 %v2537
    %2888 = vmatprep.subr.bf16.mxu0 %v2546
    %2889 = vmatpush1.bf16.msra.mxu0 %v2545
    %2890 = vmatprep.subr.bf16.mxu0 %v2554
    %2891 = vmatpush1.bf16.msra.mxu0 %v2553
    %2892 = vmatprep.subr.bf16.mxu0 %v2562
    %2893 = vmatpush1.bf16.msra.mxu0 %v2561
    %2894 = vmatprep.subr.bf16.mxu0 %v2570
    %2895 = vmatpush1.bf16.msra.mxu0 %v2569
    %2896 = vmatprep.subr.bf16.mxu0 %v2578
    %2897 = vmatpush1.bf16.msra.mxu0 %v2577
    %2898 = vmatprep.subr.bf16.mxu0 %v2586
    %2899 = vmatpush1.bf16.msra.mxu0 %v2585
    %2900 = vmatprep.subr.bf16.mxu0 %v2594
    %2901 = vmatpush1.bf16.msra.mxu0 %v2593
    %2902 = vmatprep.subr.bf16.mxu0 %v2602
    %2903 = vmatpush1.bf16.msra.mxu0 %v2601
    %2904 = vmatprep.subr.bf16.mxu0 %v2610
    %2905 = vmatpush1.bf16.msra.mxu0 %v2609
    %2906 = vmatprep.subr.bf16.mxu0 %v2618
    %2907 = vmatpush1.bf16.msra.mxu0 %v2617
    %2908 = vmatprep.subr.bf16.mxu0 %v2626
    %2909 = vmatpush1.bf16.msra.mxu0 %v2625
    %2910 = vmatprep.mubr.bf16.mxu0 %v1986
    %2911 = vmatmul.mubr.bf16.gmra.mrb[0].mxu0 %v1985
    %v2912 = vpop.f32.mrb[0].mxu0
    %v2913 = vadd.f32 0.0, %v2912
    %v2914 = vpop.f32.mrb[0].mxu0
    %v2915 = vadd.f32 0.0, %v2914
    %v2916 = vpop.f32.mrb[0].mxu0
    %v2917 = vpop.f32.mrb[0].mxu0
    %2918 = vdwg.mxu0
    %v2919 = vadd.f32 %v2790, %v82
    %v2920 = vadd.f32 %v2792, %v86
    %v2921 = vadd.f32 %v2831, %v90
    %v2922 = vadd.f32 %v2833, %v94
    %v2923 = vld [vmem:[%s559] sm:$0xff]
    %v2925 = vcombine.high %v2923, %v2923
    %v2927 = vunpack.c.l.s4 1983009808
    %v2928 = vunpack.c.0.s8 %v2927
    %v2929 = vlaneseq
    %v2930 = vshrl.u32 %v2929, 7
    %v2931 = vsub.s32 %v2928, %v2930
    %v2932 = vrot.slane %v2923, %v2931
    %v2934 = vunpack.c.l.s4 1983009808
    %v2935 = vunpack.c.0.s8 %v2934
    %v2936 = vlaneseq
    %v2937 = vshrl.u32 %v2936, 7
    %v2938 = vsub.s32 %v2935, %v2937
    %v2939 = vrot.slane %v2925, %v2938
    %v2940 = vcombine.high %v2932, %v2932
    %v2941 = vcombine.high %v2939, %v2939
    %v2946 = vadd.f32 %v2872, %v2932
    %v2947 = vadd.f32 %v2874, %v2940
    %v2948 = vadd.f32 %v2913, %v2939
    %v2949 = vadd.f32 %v2915, %v2941
    %v2950 = vxor.u32 %v2919, 2147483648
    %v2951 = vmul.f32 %v2950, 1.442695
    %v2952 = vpow.pop %v2951
    %v2953 = vadd.f32 %v2952, 1.0
    %v2954 = vrcp.pop %v2953
    %v2955 = vmul.f32 1.0, %v2954
    %v2956 = vxor.u32 %v2920, 2147483648
    %v2957 = vmul.f32 %v2956, 1.442695
    %v2958 = vpow.pop %v2957
    %v2959 = vadd.f32 %v2958, 1.0
    %v2960 = vrcp.pop %v2959
    %v2961 = vmul.f32 1.0, %v2960
    %v2962 = vtanh.pop %v2921
    %v2963 = vxor.u32 %v2922, 2147483648
    %v2964 = vmul.f32 %v2963, 1.442695
    %v2965 = vpow.pop %v2964
    %v2966 = vadd.f32 %v2965, 1.0
    %v2967 = vrcp.pop %v2966
    %v2968 = vmul.f32 1.0, %v2967
    %v2969 = vmul.f32 %v2961, 0.0
    %v2970 = vmul.f32 %v2955, %v2962
    %v2971 = vadd.f32 %v2969, %v2970
    %v2972 = vtanh.pop %v2971
    %v2973 = vmul.f32 %v2968, %v2972
    %v2974 = vxor.u32 %v2946, 2147483648
    %v2975 = vmul.f32 %v2974, 1.442695
    %v2976 = vpow.pop %v2975
    %v2977 = vadd.f32 %v2976, 1.0
    %v2978 = vrcp.pop %v2977
    %v2979 = vmul.f32 1.0, %v2978
    %v2980 = vxor.u32 %v2947, 2147483648
    %v2981 = vmul.f32 %v2980, 1.442695
    %v2982 = vpow.pop %v2981
    %v2983 = vadd.f32 %v2982, 1.0
    %v2984 = vrcp.pop %v2983
    %v2985 = vmul.f32 1.0, %v2984
    %v2986 = vtanh.pop %v2948
    %v2987 = vxor.u32 %v2949, 2147483648
    %v2988 = vmul.f32 %v2987, 1.442695
    %v2989 = vpow.pop %v2988
    %v2990 = vadd.f32 %v2989, 1.0
    %v2991 = vrcp.pop %v2990
    %v2992 = vmul.f32 1.0, %v2991
    %v2993 = vmul.f32 %v2985, %v1982
    %v2994 = vmul.f32 %v2979, %v2986
    %v2995 = vadd.f32 %v2993, %v2994
    %v2996 = vtanh.pop %v2995
    %v2997 = vmul.f32 %v2992, %v2996
    %v2998 = vpack.c.bf16 %v2997, %v2997
    %v2999 = vpack.c.bf16 %v2973, %v2973
    %3000 = vmatprep.subr.bf16.mxu0 %v2500
    %3001 = vmatpush1.bf16.msra.mxu0 %v2499
    %3002 = vmatprep.subr.bf16.mxu0 %v2508
    %3003 = vmatpush1.bf16.msra.mxu0 %v2507
    %3004 = vmatprep.subr.bf16.mxu0 %v2516
    %3005 = vmatpush1.bf16.msra.mxu0 %v2515
    %3006 = vmatprep.subr.bf16.mxu0 %v2524
    %3007 = vmatpush1.bf16.msra.mxu0 %v2523
    %3008 = vmatprep.subr.bf16.mxu0 %v2532
    %3009 = vmatpush1.bf16.msra.mxu0 %v2531
    %3010 = vmatprep.subr.bf16.mxu0 %v2540
    %3011 = vmatpush1.bf16.msra.mxu0 %v2539
    %3012 = vmatprep.subr.bf16.mxu0 %v2548
    %3013 = vmatpush1.bf16.msra.mxu0 %v2547
    %3014 = vmatprep.subr.bf16.mxu0 %v2556
    %3015 = vmatpush1.bf16.msra.mxu0 %v2555
    %3016 = vmatprep.subr.bf16.mxu0 %v2564
    %3017 = vmatpush1.bf16.msra.mxu0 %v2563
    %3018 = vmatprep.subr.bf16.mxu0 %v2572
    %3019 = vmatpush1.bf16.msra.mxu0 %v2571
    %3020 = vmatprep.subr.bf16.mxu0 %v2580
    %3021 = vmatpush1.bf16.msra.mxu0 %v2579
    %3022 = vmatprep.subr.bf16.mxu0 %v2588
    %3023 = vmatpush1.bf16.msra.mxu0 %v2587
    %3024 = vmatprep.subr.bf16.mxu0 %v2596
    %3025 = vmatpush1.bf16.msra.mxu0 %v2595
    %3026 = vmatprep.subr.bf16.mxu0 %v2604
    %3027 = vmatpush1.bf16.msra.mxu0 %v2603
    %3028 = vmatprep.subr.bf16.mxu0 %v2612
    %3029 = vmatpush1.bf16.msra.mxu0 %v2611
    %3030 = vmatprep.subr.bf16.mxu0 %v2620
    %3031 = vmatpush1.bf16.msra.mxu0 %v2619
    %3032 = vmatprep.mubr.bf16.mxu0 %v2999
    %3033 = vmatmul.mubr.bf16.gmra.mrb[0].mxu0 %v2998
    %v3034 = vpop.f32.mrb[0].mxu0
    %v3035 = vadd.f32 0.0, %v3034
    %v3036 = vpop.f32.mrb[0].mxu0
    %v3037 = vadd.f32 0.0, %v3036
    %v3038 = vpop.f32.mrb[0].mxu0
    %v3039 = vpop.f32.mrb[0].mxu0
    %3040 = vdwg.mxu0
    %3041 = vmatprep.subr.bf16.mxu0 %v2502
    %3042 = vmatpush1.bf16.msra.mxu0 %v2501
    %3043 = vmatprep.subr.bf16.mxu0 %v2510
    %3044 = vmatpush1.bf16.msra.mxu0 %v2509
    %3045 = vmatprep.subr.bf16.mxu0 %v2518
    %3046 = vmatpush1.bf16.msra.mxu0 %v2517
    %3047 = vmatprep.subr.bf16.mxu0 %v2526
    %3048 = vmatpush1.bf16.msra.mxu0 %v2525
    %3049 = vmatprep.subr.bf16.mxu0 %v2534
    %3050 = vmatpush1.bf16.msra.mxu0 %v2533
    %3051 = vmatprep.subr.bf16.mxu0 %v2542
    %3052 = vmatpush1.bf16.msra.mxu0 %v2541
    %3053 = vmatprep.subr.bf16.mxu0 %v2550
    %3054 = vmatpush1.bf16.msra.mxu0 %v2549
    %3055 = vmatprep.subr.bf16.mxu0 %v2558
    %3056 = vmatpush1.bf16.msra.mxu0 %v2557
    %3057 = vmatprep.subr.bf16.mxu0 %v2566
    %3058 = vmatpush1.bf16.msra.mxu0 %v2565
    %3059 = vmatprep.subr.bf16.mxu0 %v2574
    %3060 = vmatpush1.bf16.msra.mxu0 %v2573
    %3061 = vmatprep.subr.bf16.mxu0 %v2582
    %3062 = vmatpush1.bf16.msra.mxu0 %v2581
    %3063 = vmatprep.subr.bf16.mxu0 %v2590
    %3064 = vmatpush1.bf16.msra.mxu0 %v2589
    %3065 = vmatprep.subr.bf16.mxu0 %v2598
    %3066 = vmatpush1.bf16.msra.mxu0 %v2597
    %3067 = vmatprep.subr.bf16.mxu0 %v2606
    %3068 = vmatpush1.bf16.msra.mxu0 %v2605
    %3069 = vmatprep.subr.bf16.mxu0 %v2614
    %3070 = vmatpush1.bf16.msra.mxu0 %v2613
    %3071 = vmatprep.subr.bf16.mxu0 %v2622
    %3072 = vmatpush1.bf16.msra.mxu0 %v2621
    %3073 = vmatprep.mubr.bf16.mxu0 %v2999
    %3074 = vmatmul.mubr.bf16.gmra.mrb[0].mxu0 %v2998
    %v3075 = vpop.f32.mrb[0].mxu0
    %v3076 = vadd.f32 0.0, %v3075
    %v3077 = vpop.f32.mrb[0].mxu0
    %v3078 = vadd.f32 0.0, %v3077
    %v3079 = vpop.f32.mrb[0].mxu0
    %v3080 = vpop.f32.mrb[0].mxu0
    %3081 = vdwg.mxu0
    %3082 = vmatprep.subr.bf16.mxu0 %v2504
    %3083 = vmatpush1.bf16.msra.mxu0 %v2503
    %3084 = vmatprep.subr.bf16.mxu0 %v2512
    %3085 = vmatpush1.bf16.msra.mxu0 %v2511
    %3086 = vmatprep.subr.bf16.mxu0 %v2520
    %3087 = vmatpush1.bf16.msra.mxu0 %v2519
    %3088 = vmatprep.subr.bf16.mxu0 %v2528
    %3089 = vmatpush1.bf16.msra.mxu0 %v2527
    %3090 = vmatprep.subr.bf16.mxu0 %v2536
    %3091 = vmatpush1.bf16.msra.mxu0 %v2535
    %3092 = vmatprep.subr.bf16.mxu0 %v2544
    %3093 = vmatpush1.bf16.msra.mxu0 %v2543
    %3094 = vmatprep.subr.bf16.mxu0 %v2552
    %3095 = vmatpush1.bf16.msra.mxu0 %v2551
    %3096 = vmatprep.subr.bf16.mxu0 %v2560
    %3097 = vmatpush1.bf16.msra.mxu0 %v2559
    %3098 = vmatprep.subr.bf16.mxu0 %v2568
    %3099 = vmatpush1.bf16.msra.mxu0 %v2567
    %3100 = vmatprep.subr.bf16.mxu0 %v2576
    %3101 = vmatpush1.bf16.msra.mxu0 %v2575
    %3102 = vmatprep.subr.bf16.mxu0 %v2584
    %3103 = vmatpush1.bf16.msra.mxu0 %v2583
    %3104 = vmatprep.subr.bf16.mxu0 %v2592
    %3105 = vmatpush1.bf16.msra.mxu0 %v2591
    %3106 = vmatprep.subr.bf16.mxu0 %v2600
    %3107 = vmatpush1.bf16.msra.mxu0 %v2599
    %3108 = vmatprep.subr.bf16.mxu0 %v2608
    %3109 = vmatpush1.bf16.msra.mxu0 %v2607
    %3110 = vmatprep.subr.bf16.mxu0 %v2616
    %3111 = vmatpush1.bf16.msra.mxu0 %v2615
    %3112 = vmatprep.subr.bf16.mxu0 %v2624
    %3113 = vmatpush1.bf16.msra.mxu0 %v2623
    %3114 = vmatprep.mubr.bf16.mxu0 %v2999
    %3115 = vmatmul.mubr.bf16.gmra.mrb[0].mxu0 %v2998
    %v3116 = vpop.f32.mrb[0].mxu0
    %v3117 = vadd.f32 0.0, %v3116
    %v3118 = vpop.f32.mrb[0].mxu0
    %v3119 = vadd.f32 0.0, %v3118
    %v3120 = vpop.f32.mrb[0].mxu0
    %v3121 = vpop.f32.mrb[0].mxu0
    %3122 = vdwg.mxu0
    %3123 = vmatprep.subr.bf16.mxu0 %v2506
    %3124 = vmatpush1.bf16.msra.mxu0 %v2505
    %3125 = vmatprep.subr.bf16.mxu0 %v2514
    %3126 = vmatpush1.bf16.msra.mxu0 %v2513
    %3127 = vmatprep.subr.bf16.mxu0 %v2522
    %3128 = vmatpush1.bf16.msra.mxu0 %v2521
    %3129 = vmatprep.subr.bf16.mxu0 %v2530
    %3130 = vmatpush1.bf16.msra.mxu0 %v2529
    %3131 = vmatprep.subr.bf16.mxu0 %v2538
    %3132 = vmatpush1.bf16.msra.mxu0 %v2537
    %3133 = vmatprep.subr.bf16.mxu0 %v2546
    %3134 = vmatpush1.bf16.msra.mxu0 %v2545
    %3135 = vmatprep.subr.bf16.mxu0 %v2554
    %3136 = vmatpush1.bf16.msra.mxu0 %v2553
    %3137 = vmatprep.subr.bf16.mxu0 %v2562
    %3138 = vmatpush1.bf16.msra.mxu0 %v2561
    %3139 = vmatprep.subr.bf16.mxu0 %v2570
    %3140 = vmatpush1.bf16.msra.mxu0 %v2569
    %3141 = vmatprep.subr.bf16.mxu0 %v2578
    %3142 = vmatpush1.bf16.msra.mxu0 %v2577
    %3143 = vmatprep.subr.bf16.mxu0 %v2586
    %3144 = vmatpush1.bf16.msra.mxu0 %v2585
    %3145 = vmatprep.subr.bf16.mxu0 %v2594
    %3146 = vmatpush1.bf16.msra.mxu0 %v2593
    %3147 = vmatprep.subr.bf16.mxu0 %v2602
    %3148 = vmatpush1.bf16.msra.mxu0 %v2601
    %3149 = vmatprep.subr.bf16.mxu0 %v2610
    %3150 = vmatpush1.bf16.msra.mxu0 %v2609
    %3151 = vmatprep.subr.bf16.mxu0 %v2618
    %3152 = vmatpush1.bf16.msra.mxu0 %v2617
    %3153 = vmatprep.subr.bf16.mxu0 %v2626
    %3154 = vmatpush1.bf16.msra.mxu0 %v2625
    %3155 = vmatprep.mubr.bf16.mxu0 %v2999
    %3156 = vmatmul.mubr.bf16.gmra.mrb[0].mxu0 %v2998
    %v3157 = vpop.f32.mrb[0].mxu0
    %v3158 = vadd.f32 0.0, %v3157
    %v3159 = vpop.f32.mrb[0].mxu0
    %v3160 = vadd.f32 0.0, %v3159
    %v3161 = vpop.f32.mrb[0].mxu0
    %v3162 = vpop.f32.mrb[0].mxu0
    %3163 = vdwg.mxu0
    %v3164 = vadd.f32 %v3035, %v82
    %v3165 = vadd.f32 %v3037, %v86
    %v3166 = vadd.f32 %v3076, %v90
    %v3167 = vadd.f32 %v3078, %v94
    %v3168 = vld [vmem:[%s791] sm:$0xff]
    %v3170 = vcombine.high %v3168, %v3168
    %v3172 = vunpack.c.l.s4 1983009808
    %v3173 = vunpack.c.0.s8 %v3172
    %v3174 = vlaneseq
    %v3175 = vshrl.u32 %v3174, 7
    %v3176 = vsub.s32 %v3173, %v3175
    %v3177 = vrot.slane %v3168, %v3176
    %v3179 = vunpack.c.l.s4 1983009808
    %v3180 = vunpack.c.0.s8 %v3179
    %v3181 = vlaneseq
    %v3182 = vshrl.u32 %v3181, 7
    %v3183 = vsub.s32 %v3180, %v3182
    %v3184 = vrot.slane %v3170, %v3183
    %v3185 = vcombine.high %v3177, %v3177
    %v3186 = vcombine.high %v3184, %v3184
    %v3191 = vadd.f32 %v3117, %v3177
    %v3192 = vadd.f32 %v3119, %v3185
    %v3193 = vadd.f32 %v3158, %v3184
    %v3194 = vadd.f32 %v3160, %v3186
    %v3195 = vxor.u32 %v3164, 2147483648
    %v3196 = vmul.f32 %v3195, 1.442695
    %v3197 = vpow.pop %v3196
    %v3198 = vadd.f32 %v3197, 1.0
    %v3199 = vrcp.pop %v3198
    %v3200 = vmul.f32 1.0, %v3199
    %v3201 = vxor.u32 %v3165, 2147483648
    %v3202 = vmul.f32 %v3201, 1.442695
    %v3203 = vpow.pop %v3202
    %v3204 = vadd.f32 %v3203, 1.0
    %v3205 = vrcp.pop %v3204
    %v3206 = vmul.f32 1.0, %v3205
    %v3207 = vtanh.pop %v3166
    %v3208 = vxor.u32 %v3167, 2147483648
    %v3209 = vmul.f32 %v3208, 1.442695
    %v3210 = vpow.pop %v3209
    %v3211 = vadd.f32 %v3210, 1.0
    %v3212 = vrcp.pop %v3211
    %v3213 = vmul.f32 1.0, %v3212
    %v3214 = vmul.f32 %v3206, %v2971
    %v3215 = vmul.f32 %v3200, %v3207
    %v3216 = vadd.f32 %v3214, %v3215
    %v3217 = vtanh.pop %v3216
    %v3218 = vmul.f32 %v3213, %v3217
    %v3219 = vxor.u32 %v3191, 2147483648
    %v3220 = vmul.f32 %v3219, 1.442695
    %v3221 = vpow.pop %v3220
    %v3222 = vadd.f32 %v3221, 1.0
    %v3223 = vrcp.pop %v3222
    %v3224 = vmul.f32 1.0, %v3223
    %v3225 = vxor.u32 %v3192, 2147483648
    %v3226 = vmul.f32 %v3225, 1.442695
    %v3227 = vpow.pop %v3226
    %v3228 = vadd.f32 %v3227, 1.0
    %v3229 = vrcp.pop %v3228
    %v3230 = vmul.f32 1.0, %v3229
    %v3231 = vtanh.pop %v3193
    %v3232 = vxor.u32 %v3194, 2147483648
    %v3233 = vmul.f32 %v3232, 1.442695
    %v3234 = vpow.pop %v3233
    %v3235 = vadd.f32 %v3234, 1.0
    %v3236 = vrcp.pop %v3235
    %v3237 = vmul.f32 1.0, %v3236
    %v3238 = vmul.f32 %v3230, %v2995
    %v3239 = vmul.f32 %v3224, %v3231
    %v3240 = vadd.f32 %v3238, %v3239
    %v3241 = vtanh.pop %v3240
    %v3242 = vmul.f32 %v3237, %v3241
    %v3243 = vpack.c.bf16 %v3242, %v3242
    %v3244 = vpack.c.bf16 %v3218, %v3218
    %3245 = vmatprep.subr.bf16.mxu0 %v2500
    %3246 = vmatpush1.bf16.msra.mxu0 %v2499
    %3247 = vmatprep.subr.bf16.mxu0 %v2508
    %3248 = vmatpush1.bf16.msra.mxu0 %v2507
    %3249 = vmatprep.subr.bf16.mxu0 %v2516
    %3250 = vmatpush1.bf16.msra.mxu0 %v2515
    %3251 = vmatprep.subr.bf16.mxu0 %v2524
    %3252 = vmatpush1.bf16.msra.mxu0 %v2523
    %3253 = vmatprep.subr.bf16.mxu0 %v2532
    %3254 = vmatpush1.bf16.msra.mxu0 %v2531
    %3255 = vmatprep.subr.bf16.mxu0 %v2540
    %3256 = vmatpush1.bf16.msra.mxu0 %v2539
    %3257 = vmatprep.subr.bf16.mxu0 %v2548
    %3258 = vmatpush1.bf16.msra.mxu0 %v2547
    %3259 = vmatprep.subr.bf16.mxu0 %v2556
    %3260 = vmatpush1.bf16.msra.mxu0 %v2555
    %3261 = vmatprep.subr.bf16.mxu0 %v2564
    %3262 = vmatpush1.bf16.msra.mxu0 %v2563
    %3263 = vmatprep.subr.bf16.mxu0 %v2572
    %3264 = vmatpush1.bf16.msra.mxu0 %v2571
    %3265 = vmatprep.subr.bf16.mxu0 %v2580
    %3266 = vmatpush1.bf16.msra.mxu0 %v2579
    %3267 = vmatprep.subr.bf16.mxu0 %v2588
    %3268 = vmatpush1.bf16.msra.mxu0 %v2587
    %3269 = vmatprep.subr.bf16.mxu0 %v2596
    %3270 = vmatpush1.bf16.msra.mxu0 %v2595
    %3271 = vmatprep.subr.bf16.mxu0 %v2604
    %3272 = vmatpush1.bf16.msra.mxu0 %v2603
    %3273 = vmatprep.subr.bf16.mxu0 %v2612
    %3274 = vmatpush1.bf16.msra.mxu0 %v2611
    %3275 = vmatprep.subr.bf16.mxu0 %v2620
    %3276 = vmatpush1.bf16.msra.mxu0 %v2619
    %3277 = vmatprep.mubr.bf16.mxu0 %v3244
    %3278 = vmatmul.mubr.bf16.gmra.mrb[0].mxu0 %v3243
    %v3279 = vpop.f32.mrb[0].mxu0
    %v3280 = vadd.f32 0.0, %v3279
    %v3281 = vpop.f32.mrb[0].mxu0
    %v3282 = vadd.f32 0.0, %v3281
    %v3283 = vpop.f32.mrb[0].mxu0
    %v3284 = vpop.f32.mrb[0].mxu0
    %3285 = vdwg.mxu0
    %3286 = vmatprep.subr.bf16.mxu0 %v2502
    %3287 = vmatpush1.bf16.msra.mxu0 %v2501
    %3288 = vmatprep.subr.bf16.mxu0 %v2510
    %3289 = vmatpush1.bf16.msra.mxu0 %v2509
    %3290 = vmatprep.subr.bf16.mxu0 %v2518
    %3291 = vmatpush1.bf16.msra.mxu0 %v2517
    %3292 = vmatprep.subr.bf16.mxu0 %v2526
    %3293 = vmatpush1.bf16.msra.mxu0 %v2525
    %3294 = vmatprep.subr.bf16.mxu0 %v2534
    %3295 = vmatpush1.bf16.msra.mxu0 %v2533
    %3296 = vmatprep.subr.bf16.mxu0 %v2542
    %3297 = vmatpush1.bf16.msra.mxu0 %v2541
    %3298 = vmatprep.subr.bf16.mxu0 %v2550
    %3299 = vmatpush1.bf16.msra.mxu0 %v2549
    %3300 = vmatprep.subr.bf16.mxu0 %v2558
    %3301 = vmatpush1.bf16.msra.mxu0 %v2557
    %3302 = vmatprep.subr.bf16.mxu0 %v2566
    %3303 = vmatpush1.bf16.msra.mxu0 %v2565
    %3304 = vmatprep.subr.bf16.mxu0 %v2574
    %3305 = vmatpush1.bf16.msra.mxu0 %v2573
    %3306 = vmatprep.subr.bf16.mxu0 %v2582
    %3307 = vmatpush1.bf16.msra.mxu0 %v2581
    %3308 = vmatprep.subr.bf16.mxu0 %v2590
    %3309 = vmatpush1.bf16.msra.mxu0 %v2589
    %3310 = vmatprep.subr.bf16.mxu0 %v2598
    %3311 = vmatpush1.bf16.msra.mxu0 %v2597
    %3312 = vmatprep.subr.bf16.mxu0 %v2606
    %3313 = vmatpush1.bf16.msra.mxu0 %v2605
    %3314 = vmatprep.subr.bf16.mxu0 %v2614
    %3315 = vmatpush1.bf16.msra.mxu0 %v2613
    %3316 = vmatprep.subr.bf16.mxu0 %v2622
    %3317 = vmatpush1.bf16.msra.mxu0 %v2621
    %3318 = vmatprep.mubr.bf16.mxu0 %v3244
    %3319 = vmatmul.mubr.bf16.gmra.mrb[0].mxu0 %v3243
    %v3320 = vpop.f32.mrb[0].mxu0
    %v3321 = vadd.f32 0.0, %v3320
    %v3322 = vpop.f32.mrb[0].mxu0
    %v3323 = vadd.f32 0.0, %v3322
    %v3324 = vpop.f32.mrb[0].mxu0
    %v3325 = vpop.f32.mrb[0].mxu0
    %3326 = vdwg.mxu0
    %3327 = vmatprep.subr.bf16.mxu0 %v2504
    %3328 = vmatpush1.bf16.msra.mxu0 %v2503
    %3329 = vmatprep.subr.bf16.mxu0 %v2512
    %3330 = vmatpush1.bf16.msra.mxu0 %v2511
    %3331 = vmatprep.subr.bf16.mxu0 %v2520
    %3332 = vmatpush1.bf16.msra.mxu0 %v2519
    %3333 = vmatprep.subr.bf16.mxu0 %v2528
    %3334 = vmatpush1.bf16.msra.mxu0 %v2527
    %3335 = vmatprep.subr.bf16.mxu0 %v2536
    %3336 = vmatpush1.bf16.msra.mxu0 %v2535
    %3337 = vmatprep.subr.bf16.mxu0 %v2544
    %3338 = vmatpush1.bf16.msra.mxu0 %v2543
    %3339 = vmatprep.subr.bf16.mxu0 %v2552
    %3340 = vmatpush1.bf16.msra.mxu0 %v2551
    %3341 = vmatprep.subr.bf16.mxu0 %v2560
    %3342 = vmatpush1.bf16.msra.mxu0 %v2559
    %3343 = vmatprep.subr.bf16.mxu0 %v2568
    %3344 = vmatpush1.bf16.msra.mxu0 %v2567
    %3345 = vmatprep.subr.bf16.mxu0 %v2576
    %3346 = vmatpush1.bf16.msra.mxu0 %v2575
    %3347 = vmatprep.subr.bf16.mxu0 %v2584
    %3348 = vmatpush1.bf16.msra.mxu0 %v2583
    %3349 = vmatprep.subr.bf16.mxu0 %v2592
    %3350 = vmatpush1.bf16.msra.mxu0 %v2591
    %3351 = vmatprep.subr.bf16.mxu0 %v2600
    %3352 = vmatpush1.bf16.msra.mxu0 %v2599
    %3353 = vmatprep.subr.bf16.mxu0 %v2608
    %3354 = vmatpush1.bf16.msra.mxu0 %v2607
    %3355 = vmatprep.subr.bf16.mxu0 %v2616
    %3356 = vmatpush1.bf16.msra.mxu0 %v2615
    %3357 = vmatprep.subr.bf16.mxu0 %v2624
    %3358 = vmatpush1.bf16.msra.mxu0 %v2623
    %3359 = vmatprep.mubr.bf16.mxu0 %v3244
    %3360 = vmatmul.mubr.bf16.gmra.mrb[0].mxu0 %v3243
    %v3361 = vpop.f32.mrb[0].mxu0
    %v3362 = vadd.f32 0.0, %v3361
    %v3363 = vpop.f32.mrb[0].mxu0
    %v3364 = vadd.f32 0.0, %v3363
    %v3365 = vpop.f32.mrb[0].mxu0
    %v3366 = vpop.f32.mrb[0].mxu0
    %3367 = vdwg.mxu0
    %3368 = vmatprep.subr.bf16.mxu0 %v2506
    %3369 = vmatpush1.bf16.msra.mxu0 %v2505
    %3370 = vmatprep.subr.bf16.mxu0 %v2514
    %3371 = vmatpush1.bf16.msra.mxu0 %v2513
    %3372 = vmatprep.subr.bf16.mxu0 %v2522
    %3373 = vmatpush1.bf16.msra.mxu0 %v2521
    %3374 = vmatprep.subr.bf16.mxu0 %v2530
    %3375 = vmatpush1.bf16.msra.mxu0 %v2529
    %3376 = vmatprep.subr.bf16.mxu0 %v2538
    %3377 = vmatpush1.bf16.msra.mxu0 %v2537
    %3378 = vmatprep.subr.bf16.mxu0 %v2546
    %3379 = vmatpush1.bf16.msra.mxu0 %v2545
    %3380 = vmatprep.subr.bf16.mxu0 %v2554
    %3381 = vmatpush1.bf16.msra.mxu0 %v2553
    %3382 = vmatprep.subr.bf16.mxu0 %v2562
    %3383 = vmatpush1.bf16.msra.mxu0 %v2561
    %3384 = vmatprep.subr.bf16.mxu0 %v2570
    %3385 = vmatpush1.bf16.msra.mxu0 %v2569
    %3386 = vmatprep.subr.bf16.mxu0 %v2578
    %3387 = vmatpush1.bf16.msra.mxu0 %v2577
    %3388 = vmatprep.subr.bf16.mxu0 %v2586
    %3389 = vmatpush1.bf16.msra.mxu0 %v2585
    %3390 = vmatprep.subr.bf16.mxu0 %v2594
    %3391 = vmatpush1.bf16.msra.mxu0 %v2593
    %3392 = vmatprep.subr.bf16.mxu0 %v2602
    %3393 = vmatpush1.bf16.msra.mxu0 %v2601
    %3394 = vmatprep.subr.bf16.mxu0 %v2610
    %3395 = vmatpush1.bf16.msra.mxu0 %v2609
    %3396 = vmatprep.subr.bf16.mxu0 %v2618
    %3397 = vmatpush1.bf16.msra.mxu0 %v2617
    %3398 = vmatprep.subr.bf16.mxu0 %v2626
    %3399 = vmatpush1.bf16.msra.mxu0 %v2625
    %3400 = vmatprep.mubr.bf16.mxu0 %v3244
    %3401 = vmatmul.mubr.bf16.gmra.mrb[0].mxu0 %v3243
    %v3402 = vpop.f32.mrb[0].mxu0
    %v3403 = vadd.f32 0.0, %v3402
    %v3404 = vpop.f32.mrb[0].mxu0
    %v3405 = vadd.f32 0.0, %v3404
    %v3406 = vpop.f32.mrb[0].mxu0
    %v3407 = vpop.f32.mrb[0].mxu0
    %3408 = vdwg.mxu0
    %v3409 = vadd.f32 %v3280, %v82
    %v3410 = vadd.f32 %v3282, %v86
    %v3411 = vadd.f32 %v3321, %v90
    %v3412 = vadd.f32 %v3323, %v94
    %v3413 = vld [vmem:[%s1023] sm:$0xff]
    %v3415 = vcombine.high %v3413, %v3413
    %v3417 = vunpack.c.l.s4 1983009808
    %v3418 = vunpack.c.0.s8 %v3417
    %v3419 = vlaneseq
    %v3420 = vshrl.u32 %v3419, 7
    %v3421 = vsub.s32 %v3418, %v3420
    %v3422 = vrot.slane %v3413, %v3421
    %v3424 = vunpack.c.l.s4 1983009808
    %v3425 = vunpack.c.0.s8 %v3424
    %v3426 = vlaneseq
    %v3427 = vshrl.u32 %v3426, 7
    %v3428 = vsub.s32 %v3425, %v3427
    %v3429 = vrot.slane %v3415, %v3428
    %v3430 = vcombine.high %v3422, %v3422
    %v3431 = vcombine.high %v3429, %v3429
    %v3436 = vadd.f32 %v3362, %v3422
    %v3437 = vadd.f32 %v3364, %v3430
    %v3438 = vadd.f32 %v3403, %v3429
    %v3439 = vadd.f32 %v3405, %v3431
    %v3440 = vxor.u32 %v3409, 2147483648
    %v3441 = vmul.f32 %v3440, 1.442695
    %v3442 = vpow.pop %v3441
    %v3443 = vadd.f32 %v3442, 1.0
    %v3444 = vrcp.pop %v3443
    %v3445 = vmul.f32 1.0, %v3444
    %v3446 = vxor.u32 %v3410, 2147483648
    %v3447 = vmul.f32 %v3446, 1.442695
    %v3448 = vpow.pop %v3447
    %v3449 = vadd.f32 %v3448, 1.0
    %v3450 = vrcp.pop %v3449
    %v3451 = vmul.f32 1.0, %v3450
    %v3452 = vtanh.pop %v3411
    %v3453 = vxor.u32 %v3412, 2147483648
    %v3454 = vmul.f32 %v3453, 1.442695
    %v3455 = vpow.pop %v3454
    %v3456 = vadd.f32 %v3455, 1.0
    %v3457 = vrcp.pop %v3456
    %v3458 = vmul.f32 1.0, %v3457
    %v3459 = vmul.f32 %v3451, %v3216
    %v3460 = vmul.f32 %v3445, %v3452
    %v3461 = vadd.f32 %v3459, %v3460
    %v3462 = vtanh.pop %v3461
    %v3463 = vmul.f32 %v3458, %v3462
    %v3464 = vxor.u32 %v3436, 2147483648
    %v3465 = vmul.f32 %v3464, 1.442695
    %v3466 = vpow.pop %v3465
    %v3467 = vadd.f32 %v3466, 1.0
    %v3468 = vrcp.pop %v3467
    %v3469 = vmul.f32 1.0, %v3468
    %v3470 = vxor.u32 %v3437, 2147483648
    %v3471 = vmul.f32 %v3470, 1.442695
    %v3472 = vpow.pop %v3471
    %v3473 = vadd.f32 %v3472, 1.0
    %v3474 = vrcp.pop %v3473
    %v3475 = vmul.f32 1.0, %v3474
    %v3476 = vtanh.pop %v3438
    %v3477 = vxor.u32 %v3439, 2147483648
    %v3478 = vmul.f32 %v3477, 1.442695
    %v3479 = vpow.pop %v3478
    %v3480 = vadd.f32 %v3479, 1.0
    %v3481 = vrcp.pop %v3480
    %v3482 = vmul.f32 1.0, %v3481
    %v3483 = vmul.f32 %v3475, %v3240
    %v3484 = vmul.f32 %v3469, %v3476
    %v3485 = vadd.f32 %v3483, %v3484
    %v3486 = vtanh.pop %v3485
    %v3487 = vmul.f32 %v3482, %v3486
    %v3488 = vpack.c.bf16 %v3487, %v3487
    %v3489 = vpack.c.bf16 %v3463, %v3463
    %3490 = vmatprep.subr.bf16.mxu0 %v2500
    %3491 = vmatpush1.bf16.msra.mxu0 %v2499
    %3492 = vmatprep.subr.bf16.mxu0 %v2508
    %3493 = vmatpush1.bf16.msra.mxu0 %v2507
    %3494 = vmatprep.subr.bf16.mxu0 %v2516
    %3495 = vmatpush1.bf16.msra.mxu0 %v2515
    %3496 = vmatprep.subr.bf16.mxu0 %v2524
    %3497 = vmatpush1.bf16.msra.mxu0 %v2523
    %3498 = vmatprep.subr.bf16.mxu0 %v2532
    %3499 = vmatpush1.bf16.msra.mxu0 %v2531
    %3500 = vmatprep.subr.bf16.mxu0 %v2540
    %3501 = vmatpush1.bf16.msra.mxu0 %v2539
    %3502 = vmatprep.subr.bf16.mxu0 %v2548
    %3503 = vmatpush1.bf16.msra.mxu0 %v2547
    %3504 = vmatprep.subr.bf16.mxu0 %v2556
    %3505 = vmatpush1.bf16.msra.mxu0 %v2555
    %3506 = vmatprep.subr.bf16.mxu0 %v2564
    %3507 = vmatpush1.bf16.msra.mxu0 %v2563
    %3508 = vmatprep.subr.bf16.mxu0 %v2572
    %3509 = vmatpush1.bf16.msra.mxu0 %v2571
    %3510 = vmatprep.subr.bf16.mxu0 %v2580
    %3511 = vmatpush1.bf16.msra.mxu0 %v2579
    %3512 = vmatprep.subr.bf16.mxu0 %v2588
    %3513 = vmatpush1.bf16.msra.mxu0 %v2587
    %3514 = vmatprep.subr.bf16.mxu0 %v2596
    %3515 = vmatpush1.bf16.msra.mxu0 %v2595
    %3516 = vmatprep.subr.bf16.mxu0 %v2604
    %3517 = vmatpush1.bf16.msra.mxu0 %v2603
    %3518 = vmatprep.subr.bf16.mxu0 %v2612
    %3519 = vmatpush1.bf16.msra.mxu0 %v2611
    %3520 = vmatprep.subr.bf16.mxu0 %v2620
    %3521 = vmatpush1.bf16.msra.mxu0 %v2619
    %3522 = vmatprep.mubr.bf16.mxu0 %v3489
    %3523 = vmatmul.mubr.bf16.gmra.mrb[0].mxu0 %v3488
    %v3524 = vpop.f32.mrb[0].mxu0
    %v3525 = vadd.f32 0.0, %v3524
    %v3526 = vpop.f32.mrb[0].mxu0
    %v3527 = vadd.f32 0.0, %v3526
    %v3528 = vpop.f32.mrb[0].mxu0
    %v3529 = vpop.f32.mrb[0].mxu0
    %3530 = vdwg.mxu0
    %3531 = vmatprep.subr.bf16.mxu0 %v2502
    %3532 = vmatpush1.bf16.msra.mxu0 %v2501
    %3533 = vmatprep.subr.bf16.mxu0 %v2510
    %3534 = vmatpush1.bf16.msra.mxu0 %v2509
    %3535 = vmatprep.subr.bf16.mxu0 %v2518
    %3536 = vmatpush1.bf16.msra.mxu0 %v2517
    %3537 = vmatprep.subr.bf16.mxu0 %v2526
    %3538 = vmatpush1.bf16.msra.mxu0 %v2525
    %3539 = vmatprep.subr.bf16.mxu0 %v2534
    %3540 = vmatpush1.bf16.msra.mxu0 %v2533
    %3541 = vmatprep.subr.bf16.mxu0 %v2542
    %3542 = vmatpush1.bf16.msra.mxu0 %v2541
    %3543 = vmatprep.subr.bf16.mxu0 %v2550
    %3544 = vmatpush1.bf16.msra.mxu0 %v2549
    %3545 = vmatprep.subr.bf16.mxu0 %v2558
    %3546 = vmatpush1.bf16.msra.mxu0 %v2557
    %3547 = vmatprep.subr.bf16.mxu0 %v2566
    %3548 = vmatpush1.bf16.msra.mxu0 %v2565
    %3549 = vmatprep.subr.bf16.mxu0 %v2574
    %3550 = vmatpush1.bf16.msra.mxu0 %v2573
    %3551 = vmatprep.subr.bf16.mxu0 %v2582
    %3552 = vmatpush1.bf16.msra.mxu0 %v2581
    %3553 = vmatprep.subr.bf16.mxu0 %v2590
    %3554 = vmatpush1.bf16.msra.mxu0 %v2589
    %3555 = vmatprep.subr.bf16.mxu0 %v2598
    %3556 = vmatpush1.bf16.msra.mxu0 %v2597
    %3557 = vmatprep.subr.bf16.mxu0 %v2606
    %3558 = vmatpush1.bf16.msra.mxu0 %v2605
    %3559 = vmatprep.subr.bf16.mxu0 %v2614
    %3560 = vmatpush1.bf16.msra.mxu0 %v2613
    %3561 = vmatprep.subr.bf16.mxu0 %v2622
    %3562 = vmatpush1.bf16.msra.mxu0 %v2621
    %3563 = vmatprep.mubr.bf16.mxu0 %v3489
    %3564 = vmatmul.mubr.bf16.gmra.mrb[0].mxu0 %v3488
    %v3565 = vpop.f32.mrb[0].mxu0
    %v3566 = vadd.f32 0.0, %v3565
    %v3567 = vpop.f32.mrb[0].mxu0
    %v3568 = vadd.f32 0.0, %v3567
    %v3569 = vpop.f32.mrb[0].mxu0
    %v3570 = vpop.f32.mrb[0].mxu0
    %3571 = vdwg.mxu0
    %3572 = vmatprep.subr.bf16.mxu0 %v2504
    %3573 = vmatpush1.bf16.msra.mxu0 %v2503
    %3574 = vmatprep.subr.bf16.mxu0 %v2512
    %3575 = vmatpush1.bf16.msra.mxu0 %v2511
    %3576 = vmatprep.subr.bf16.mxu0 %v2520
    %3577 = vmatpush1.bf16.msra.mxu0 %v2519
    %3578 = vmatprep.subr.bf16.mxu0 %v2528
    %3579 = vmatpush1.bf16.msra.mxu0 %v2527
    %3580 = vmatprep.subr.bf16.mxu0 %v2536
    %3581 = vmatpush1.bf16.msra.mxu0 %v2535
    %3582 = vmatprep.subr.bf16.mxu0 %v2544
    %3583 = vmatpush1.bf16.msra.mxu0 %v2543
    %3584 = vmatprep.subr.bf16.mxu0 %v2552
    %3585 = vmatpush1.bf16.msra.mxu0 %v2551
    %3586 = vmatprep.subr.bf16.mxu0 %v2560
    %3587 = vmatpush1.bf16.msra.mxu0 %v2559
    %3588 = vmatprep.subr.bf16.mxu0 %v2568
    %3589 = vmatpush1.bf16.msra.mxu0 %v2567
    %3590 = vmatprep.subr.bf16.mxu0 %v2576
    %3591 = vmatpush1.bf16.msra.mxu0 %v2575
    %3592 = vmatprep.subr.bf16.mxu0 %v2584
    %3593 = vmatpush1.bf16.msra.mxu0 %v2583
    %3594 = vmatprep.subr.bf16.mxu0 %v2592
    %3595 = vmatpush1.bf16.msra.mxu0 %v2591
    %3596 = vmatprep.subr.bf16.mxu0 %v2600
    %3597 = vmatpush1.bf16.msra.mxu0 %v2599
    %3598 = vmatprep.subr.bf16.mxu0 %v2608
    %3599 = vmatpush1.bf16.msra.mxu0 %v2607
    %3600 = vmatprep.subr.bf16.mxu0 %v2616
    %3601 = vmatpush1.bf16.msra.mxu0 %v2615
    %3602 = vmatprep.subr.bf16.mxu0 %v2624
    %3603 = vmatpush1.bf16.msra.mxu0 %v2623
    %3604 = vmatprep.mubr.bf16.mxu0 %v3489
    %3605 = vmatmul.mubr.bf16.gmra.mrb[0].mxu0 %v3488
    %v3606 = vpop.f32.mrb[0].mxu0
    %v3607 = vadd.f32 0.0, %v3606
    %v3608 = vpop.f32.mrb[0].mxu0
    %v3609 = vadd.f32 0.0, %v3608
    %v3610 = vpop.f32.mrb[0].mxu0
    %v3611 = vpop.f32.mrb[0].mxu0
    %3612 = vdwg.mxu0
    %3613 = vmatprep.subr.bf16.mxu0 %v2506
    %3614 = vmatpush1.bf16.msra.mxu0 %v2505
    %3615 = vmatprep.subr.bf16.mxu0 %v2514
    %3616 = vmatpush1.bf16.msra.mxu0 %v2513
    %3617 = vmatprep.subr.bf16.mxu0 %v2522
    %3618 = vmatpush1.bf16.msra.mxu0 %v2521
    %3619 = vmatprep.subr.bf16.mxu0 %v2530
    %3620 = vmatpush1.bf16.msra.mxu0 %v2529
    %3621 = vmatprep.subr.bf16.mxu0 %v2538
    %3622 = vmatpush1.bf16.msra.mxu0 %v2537
    %3623 = vmatprep.subr.bf16.mxu0 %v2546
    %3624 = vmatpush1.bf16.msra.mxu0 %v2545
    %3625 = vmatprep.subr.bf16.mxu0 %v2554
    %3626 = vmatpush1.bf16.msra.mxu0 %v2553
    %3627 = vmatprep.subr.bf16.mxu0 %v2562
    %3628 = vmatpush1.bf16.msra.mxu0 %v2561
    %3629 = vmatprep.subr.bf16.mxu0 %v2570
    %3630 = vmatpush1.bf16.msra.mxu0 %v2569
    %3631 = vmatprep.subr.bf16.mxu0 %v2578
    %3632 = vmatpush1.bf16.msra.mxu0 %v2577
    %3633 = vmatprep.subr.bf16.mxu0 %v2586
    %3634 = vmatpush1.bf16.msra.mxu0 %v2585
    %3635 = vmatprep.subr.bf16.mxu0 %v2594
    %3636 = vmatpush1.bf16.msra.mxu0 %v2593
    %3637 = vmatprep.subr.bf16.mxu0 %v2602
    %3638 = vmatpush1.bf16.msra.mxu0 %v2601
    %3639 = vmatprep.subr.bf16.mxu0 %v2610
    %3640 = vmatpush1.bf16.msra.mxu0 %v2609
    %3641 = vmatprep.subr.bf16.mxu0 %v2618
    %3642 = vmatpush1.bf16.msra.mxu0 %v2617
    %3643 = vmatprep.subr.bf16.mxu0 %v2626
    %3644 = vmatpush1.bf16.msra.mxu0 %v2625
    %3645 = vmatprep.mubr.bf16.mxu0 %v3489
    %3646 = vmatmul.mubr.bf16.gmra.mrb[0].mxu0 %v3488
    %v3647 = vpop.f32.mrb[0].mxu0
    %v3648 = vadd.f32 0.0, %v3647
    %v3649 = vpop.f32.mrb[0].mxu0
    %v3650 = vadd.f32 0.0, %v3649
    %v3651 = vpop.f32.mrb[0].mxu0
    %v3652 = vpop.f32.mrb[0].mxu0
    %3653 = vdwg.mxu0
    %v3654 = vadd.f32 %v3525, %v82
    %v3655 = vadd.f32 %v3527, %v86
    %v3656 = vadd.f32 %v3566, %v90
    %v3657 = vadd.f32 %v3568, %v94
    %v3658 = vld [vmem:[%s1255] sm:$0xff]
    %v3660 = vcombine.high %v3658, %v3658
    %v3662 = vunpack.c.l.s4 1983009808
    %v3663 = vunpack.c.0.s8 %v3662
    %v3664 = vlaneseq
    %v3665 = vshrl.u32 %v3664, 7
    %v3666 = vsub.s32 %v3663, %v3665
    %v3667 = vrot.slane %v3658, %v3666
    %v3669 = vunpack.c.l.s4 1983009808
    %v3670 = vunpack.c.0.s8 %v3669
    %v3671 = vlaneseq
    %v3672 = vshrl.u32 %v3671, 7
    %v3673 = vsub.s32 %v3670, %v3672
    %v3674 = vrot.slane %v3660, %v3673
    %v3675 = vcombine.high %v3667, %v3667
    %v3676 = vcombine.high %v3674, %v3674
    %v3681 = vadd.f32 %v3607, %v3667
    %v3682 = vadd.f32 %v3609, %v3675
    %v3683 = vadd.f32 %v3648, %v3674
    %v3684 = vadd.f32 %v3650, %v3676
    %v3685 = vxor.u32 %v3654, 2147483648
    %v3686 = vmul.f32 %v3685, 1.442695
    %v3687 = vpow.pop %v3686
    %v3688 = vadd.f32 %v3687, 1.0
    %v3689 = vrcp.pop %v3688
    %v3690 = vmul.f32 1.0, %v3689
    %v3691 = vxor.u32 %v3655, 2147483648
    %v3692 = vmul.f32 %v3691, 1.442695
    %v3693 = vpow.pop %v3692
    %v3694 = vadd.f32 %v3693, 1.0
    %v3695 = vrcp.pop %v3694
    %v3696 = vmul.f32 1.0, %v3695
    %v3697 = vtanh.pop %v3656
    %v3698 = vxor.u32 %v3657, 2147483648
    %v3699 = vmul.f32 %v3698, 1.442695
    %v3700 = vpow.pop %v3699
    %v3701 = vadd.f32 %v3700, 1.0
    %v3702 = vrcp.pop %v3701
    %v3703 = vmul.f32 1.0, %v3702
    %v3704 = vmul.f32 %v3696, %v3461
    %v3705 = vmul.f32 %v3690, %v3697
    %v3706 = vadd.f32 %v3704, %v3705
    %v3707 = vtanh.pop %v3706
    %v3708 = vmul.f32 %v3703, %v3707
    %v3709 = vxor.u32 %v3681, 2147483648
    %v3710 = vmul.f32 %v3709, 1.442695
    %v3711 = vpow.pop %v3710
    %v3712 = vadd.f32 %v3711, 1.0
    %v3713 = vrcp.pop %v3712
    %v3714 = vmul.f32 1.0, %v3713
    %v3715 = vxor.u32 %v3682, 2147483648
    %v3716 = vmul.f32 %v3715, 1.442695
    %v3717 = vpow.pop %v3716
    %v3718 = vadd.f32 %v3717, 1.0
    %v3719 = vrcp.pop %v3718
    %v3720 = vmul.f32 1.0, %v3719
    %v3721 = vtanh.pop %v3683
    %v3722 = vxor.u32 %v3684, 2147483648
    %v3723 = vmul.f32 %v3722, 1.442695
    %v3724 = vpow.pop %v3723
    %v3725 = vadd.f32 %v3724, 1.0
    %v3726 = vrcp.pop %v3725
    %v3727 = vmul.f32 1.0, %v3726
    %v3728 = vmul.f32 %v3720, %v3485
    %v3729 = vmul.f32 %v3714, %v3721
    %v3730 = vadd.f32 %v3728, %v3729
    %v3731 = vtanh.pop %v3730
    %v3732 = vmul.f32 %v3727, %v3731
    %v3733 = vpack.c.bf16 %v3732, %v3732
    %v3734 = vpack.c.bf16 %v3708, %v3708
    %3735 = vmatprep.subr.bf16.mxu0 %v2500
    %3736 = vmatpush1.bf16.msra.mxu0 %v2499
    %3737 = vmatprep.subr.bf16.mxu0 %v2508
    %3738 = vmatpush1.bf16.msra.mxu0 %v2507
    %3739 = vmatprep.subr.bf16.mxu0 %v2516
    %3740 = vmatpush1.bf16.msra.mxu0 %v2515
    %3741 = vmatprep.subr.bf16.mxu0 %v2524
    %3742 = vmatpush1.bf16.msra.mxu0 %v2523
    %3743 = vmatprep.subr.bf16.mxu0 %v2532
    %3744 = vmatpush1.bf16.msra.mxu0 %v2531
    %3745 = vmatprep.subr.bf16.mxu0 %v2540
    %3746 = vmatpush1.bf16.msra.mxu0 %v2539
    %3747 = vmatprep.subr.bf16.mxu0 %v2548
    %3748 = vmatpush1.bf16.msra.mxu0 %v2547
    %3749 = vmatprep.subr.bf16.mxu0 %v2556
    %3750 = vmatpush1.bf16.msra.mxu0 %v2555
    %3751 = vmatprep.subr.bf16.mxu0 %v2564
    %3752 = vmatpush1.bf16.msra.mxu0 %v2563
    %3753 = vmatprep.subr.bf16.mxu0 %v2572
    %3754 = vmatpush1.bf16.msra.mxu0 %v2571
    %3755 = vmatprep.subr.bf16.mxu0 %v2580
    %3756 = vmatpush1.bf16.msra.mxu0 %v2579
    %3757 = vmatprep.subr.bf16.mxu0 %v2588
    %3758 = vmatpush1.bf16.msra.mxu0 %v2587
    %3759 = vmatprep.subr.bf16.mxu0 %v2596
    %3760 = vmatpush1.bf16.msra.mxu0 %v2595
    %3761 = vmatprep.subr.bf16.mxu0 %v2604
    %3762 = vmatpush1.bf16.msra.mxu0 %v2603
    %3763 = vmatprep.subr.bf16.mxu0 %v2612
    %3764 = vmatpush1.bf16.msra.mxu0 %v2611
    %3765 = vmatprep.subr.bf16.mxu0 %v2620
    %3766 = vmatpush1.bf16.msra.mxu0 %v2619
    %3767 = vmatprep.mubr.bf16.mxu0 %v3734
    %3768 = vmatmul.mubr.bf16.gmra.mrb[0].mxu0 %v3733
    %v3769 = vpop.f32.mrb[0].mxu0
    %v3770 = vadd.f32 0.0, %v3769
    %v3771 = vpop.f32.mrb[0].mxu0
    %v3772 = vadd.f32 0.0, %v3771
    %v3773 = vpop.f32.mrb[0].mxu0
    %v3774 = vpop.f32.mrb[0].mxu0
    %3775 = vdwg.mxu0
    %3776 = vmatprep.subr.bf16.mxu0 %v2502
    %3777 = vmatpush1.bf16.msra.mxu0 %v2501
    %3778 = vmatprep.subr.bf16.mxu0 %v2510
    %3779 = vmatpush1.bf16.msra.mxu0 %v2509
    %3780 = vmatprep.subr.bf16.mxu0 %v2518
    %3781 = vmatpush1.bf16.msra.mxu0 %v2517
    %3782 = vmatprep.subr.bf16.mxu0 %v2526
    %3783 = vmatpush1.bf16.msra.mxu0 %v2525
    %3784 = vmatprep.subr.bf16.mxu0 %v2534
    %3785 = vmatpush1.bf16.msra.mxu0 %v2533
    %3786 = vmatprep.subr.bf16.mxu0 %v2542
    %3787 = vmatpush1.bf16.msra.mxu0 %v2541
    %3788 = vmatprep.subr.bf16.mxu0 %v2550
    %3789 = vmatpush1.bf16.msra.mxu0 %v2549
    %3790 = vmatprep.subr.bf16.mxu0 %v2558
    %3791 = vmatpush1.bf16.msra.mxu0 %v2557
    %3792 = vmatprep.subr.bf16.mxu0 %v2566
    %3793 = vmatpush1.bf16.msra.mxu0 %v2565
    %3794 = vmatprep.subr.bf16.mxu0 %v2574
    %3795 = vmatpush1.bf16.msra.mxu0 %v2573
    %3796 = vmatprep.subr.bf16.mxu0 %v2582
    %3797 = vmatpush1.bf16.msra.mxu0 %v2581
    %3798 = vmatprep.subr.bf16.mxu0 %v2590
    %3799 = vmatpush1.bf16.msra.mxu0 %v2589
    %3800 = vmatprep.subr.bf16.mxu0 %v2598
    %3801 = vmatpush1.bf16.msra.mxu0 %v2597
    %3802 = vmatprep.subr.bf16.mxu0 %v2606
    %3803 = vmatpush1.bf16.msra.mxu0 %v2605
    %3804 = vmatprep.subr.bf16.mxu0 %v2614
    %3805 = vmatpush1.bf16.msra.mxu0 %v2613
    %3806 = vmatprep.subr.bf16.mxu0 %v2622
    %3807 = vmatpush1.bf16.msra.mxu0 %v2621
    %3808 = vmatprep.mubr.bf16.mxu0 %v3734
    %3809 = vmatmul.mubr.bf16.gmra.mrb[0].mxu0 %v3733
    %v3810 = vpop.f32.mrb[0].mxu0
    %v3811 = vadd.f32 0.0, %v3810
    %v3812 = vpop.f32.mrb[0].mxu0
    %v3813 = vadd.f32 0.0, %v3812
    %v3814 = vpop.f32.mrb[0].mxu0
    %v3815 = vpop.f32.mrb[0].mxu0
    %3816 = vdwg.mxu0
    %3817 = vmatprep.subr.bf16.mxu0 %v2504
    %3818 = vmatpush1.bf16.msra.mxu0 %v2503
    %3819 = vmatprep.subr.bf16.mxu0 %v2512
    %3820 = vmatpush1.bf16.msra.mxu0 %v2511
    %3821 = vmatprep.subr.bf16.mxu0 %v2520
    %3822 = vmatpush1.bf16.msra.mxu0 %v2519
    %3823 = vmatprep.subr.bf16.mxu0 %v2528
    %3824 = vmatpush1.bf16.msra.mxu0 %v2527
    %3825 = vmatprep.subr.bf16.mxu0 %v2536
    %3826 = vmatpush1.bf16.msra.mxu0 %v2535
    %3827 = vmatprep.subr.bf16.mxu0 %v2544
    %3828 = vmatpush1.bf16.msra.mxu0 %v2543
    %3829 = vmatprep.subr.bf16.mxu0 %v2552
    %3830 = vmatpush1.bf16.msra.mxu0 %v2551
    %3831 = vmatprep.subr.bf16.mxu0 %v2560
    %3832 = vmatpush1.bf16.msra.mxu0 %v2559
    %3833 = vmatprep.subr.bf16.mxu0 %v2568
    %3834 = vmatpush1.bf16.msra.mxu0 %v2567
    %3835 = vmatprep.subr.bf16.mxu0 %v2576
    %3836 = vmatpush1.bf16.msra.mxu0 %v2575
    %3837 = vmatprep.subr.bf16.mxu0 %v2584
    %3838 = vmatpush1.bf16.msra.mxu0 %v2583
    %3839 = vmatprep.subr.bf16.mxu0 %v2592
    %3840 = vmatpush1.bf16.msra.mxu0 %v2591
    %3841 = vmatprep.subr.bf16.mxu0 %v2600
    %3842 = vmatpush1.bf16.msra.mxu0 %v2599
    %3843 = vmatprep.subr.bf16.mxu0 %v2608
    %3844 = vmatpush1.bf16.msra.mxu0 %v2607
    %3845 = vmatprep.subr.bf16.mxu0 %v2616
    %3846 = vmatpush1.bf16.msra.mxu0 %v2615
    %3847 = vmatprep.subr.bf16.mxu0 %v2624
    %3848 = vmatpush1.bf16.msra.mxu0 %v2623
    %3849 = vmatprep.mubr.bf16.mxu0 %v3734
    %3850 = vmatmul.mubr.bf16.gmra.mrb[0].mxu0 %v3733
    %v3851 = vpop.f32.mrb[0].mxu0
    %v3852 = vadd.f32 0.0, %v3851
    %v3853 = vpop.f32.mrb[0].mxu0
    %v3854 = vadd.f32 0.0, %v3853
    %v3855 = vpop.f32.mrb[0].mxu0
    %v3856 = vpop.f32.mrb[0].mxu0
    %3857 = vdwg.mxu0
    %3858 = vmatprep.subr.bf16.mxu0 %v2506
    %3859 = vmatpush1.bf16.msra.mxu0 %v2505
    %3860 = vmatprep.subr.bf16.mxu0 %v2514
    %3861 = vmatpush1.bf16.msra.mxu0 %v2513
    %3862 = vmatprep.subr.bf16.mxu0 %v2522
    %3863 = vmatpush1.bf16.msra.mxu0 %v2521
    %3864 = vmatprep.subr.bf16.mxu0 %v2530
    %3865 = vmatpush1.bf16.msra.mxu0 %v2529
    %3866 = vmatprep.subr.bf16.mxu0 %v2538
    %3867 = vmatpush1.bf16.msra.mxu0 %v2537
    %3868 = vmatprep.subr.bf16.mxu0 %v2546
    %3869 = vmatpush1.bf16.msra.mxu0 %v2545
    %3870 = vmatprep.subr.bf16.mxu0 %v2554
    %3871 = vmatpush1.bf16.msra.mxu0 %v2553
    %3872 = vmatprep.subr.bf16.mxu0 %v2562
    %3873 = vmatpush1.bf16.msra.mxu0 %v2561
    %3874 = vmatprep.subr.bf16.mxu0 %v2570
    %3875 = vmatpush1.bf16.msra.mxu0 %v2569
    %3876 = vmatprep.subr.bf16.mxu0 %v2578
    %3877 = vmatpush1.bf16.msra.mxu0 %v2577
    %3878 = vmatprep.subr.bf16.mxu0 %v2586
    %3879 = vmatpush1.bf16.msra.mxu0 %v2585
    %3880 = vmatprep.subr.bf16.mxu0 %v2594
    %3881 = vmatpush1.bf16.msra.mxu0 %v2593
    %3882 = vmatprep.subr.bf16.mxu0 %v2602
    %3883 = vmatpush1.bf16.msra.mxu0 %v2601
    %3884 = vmatprep.subr.bf16.mxu0 %v2610
    %3885 = vmatpush1.bf16.msra.mxu0 %v2609
    %3886 = vmatprep.subr.bf16.mxu0 %v2618
    %3887 = vmatpush1.bf16.msra.mxu0 %v2617
    %3888 = vmatprep.subr.bf16.mxu0 %v2626
    %3889 = vmatpush1.bf16.msra.mxu0 %v2625
    %3890 = vmatprep.mubr.bf16.mxu0 %v3734
    %3891 = vmatmul.mubr.bf16.gmra.mrb[0].mxu0 %v3733
    %v3892 = vpop.f32.mrb[0].mxu0
    %v3893 = vadd.f32 0.0, %v3892
    %v3894 = vpop.f32.mrb[0].mxu0
    %v3895 = vadd.f32 0.0, %v3894
    %v3896 = vpop.f32.mrb[0].mxu0
    %v3897 = vpop.f32.mrb[0].mxu0
    %3898 = vdwg.mxu0
    %v3899 = vadd.f32 %v3770, %v82
    %v3900 = vadd.f32 %v3772, %v86
    %v3901 = vadd.f32 %v3811, %v90
    %v3902 = vadd.f32 %v3813, %v94
    %v3903 = vld [vmem:[%s1487] sm:$0xff]
    %v3905 = vcombine.high %v3903, %v3903
    %v3907 = vunpack.c.l.s4 1983009808
    %v3908 = vunpack.c.0.s8 %v3907
    %v3909 = vlaneseq
    %v3910 = vshrl.u32 %v3909, 7
    %v3911 = vsub.s32 %v3908, %v3910
    %v3912 = vrot.slane %v3903, %v3911
    %v3914 = vunpack.c.l.s4 1983009808
    %v3915 = vunpack.c.0.s8 %v3914
    %v3916 = vlaneseq
    %v3917 = vshrl.u32 %v3916, 7
    %v3918 = vsub.s32 %v3915, %v3917
    %v3919 = vrot.slane %v3905, %v3918
    %v3920 = vcombine.high %v3912, %v3912
    %v3921 = vcombine.high %v3919, %v3919
    %v3926 = vadd.f32 %v3852, %v3912
    %v3927 = vadd.f32 %v3854, %v3920
    %v3928 = vadd.f32 %v3893, %v3919
    %v3929 = vadd.f32 %v3895, %v3921
    %v3930 = vxor.u32 %v3899, 2147483648
    %v3931 = vmul.f32 %v3930, 1.442695
    %v3932 = vpow.pop %v3931
    %v3933 = vadd.f32 %v3932, 1.0
    %v3934 = vrcp.pop %v3933
    %v3935 = vmul.f32 1.0, %v3934
    %v3936 = vxor.u32 %v3900, 2147483648
    %v3937 = vmul.f32 %v3936, 1.442695
    %v3938 = vpow.pop %v3937
    %v3939 = vadd.f32 %v3938, 1.0
    %v3940 = vrcp.pop %v3939
    %v3941 = vmul.f32 1.0, %v3940
    %v3942 = vtanh.pop %v3901
    %v3943 = vxor.u32 %v3902, 2147483648
    %v3944 = vmul.f32 %v3943, 1.442695
    %v3945 = vpow.pop %v3944
    %v3946 = vadd.f32 %v3945, 1.0
    %v3947 = vrcp.pop %v3946
    %v3948 = vmul.f32 1.0, %v3947
    %v3949 = vmul.f32 %v3941, %v3706
    %v3950 = vmul.f32 %v3935, %v3942
    %v3951 = vadd.f32 %v3949, %v3950
    %v3952 = vtanh.pop %v3951
    %v3953 = vmul.f32 %v3948, %v3952
    %v3954 = vxor.u32 %v3926, 2147483648
    %v3955 = vmul.f32 %v3954, 1.442695
    %v3956 = vpow.pop %v3955
    %v3957 = vadd.f32 %v3956, 1.0
    %v3958 = vrcp.pop %v3957
    %v3959 = vmul.f32 1.0, %v3958
    %v3960 = vxor.u32 %v3927, 2147483648
    %v3961 = vmul.f32 %v3960, 1.442695
    %v3962 = vpow.pop %v3961
    %v3963 = vadd.f32 %v3962, 1.0
    %v3964 = vrcp.pop %v3963
    %v3965 = vmul.f32 1.0, %v3964
    %v3966 = vtanh.pop %v3928
    %v3967 = vxor.u32 %v3929, 2147483648
    %v3968 = vmul.f32 %v3967, 1.442695
    %v3969 = vpow.pop %v3968
    %v3970 = vadd.f32 %v3969, 1.0
    %v3971 = vrcp.pop %v3970
    %v3972 = vmul.f32 1.0, %v3971
    %v3973 = vmul.f32 %v3965, %v3730
    %v3974 = vmul.f32 %v3959, %v3966
    %v3975 = vadd.f32 %v3973, %v3974
    %v3976 = vtanh.pop %v3975
    %v3977 = vmul.f32 %v3972, %v3976
    %v3978 = vpack.c.bf16 %v3977, %v3977
    %v3979 = vpack.c.bf16 %v3953, %v3953
    %3980 = vmatprep.subr.bf16.mxu0 %v2500
    %3981 = vmatpush1.bf16.msra.mxu0 %v2499
    %3982 = vmatprep.subr.bf16.mxu0 %v2508
    %3983 = vmatpush1.bf16.msra.mxu0 %v2507
    %3984 = vmatprep.subr.bf16.mxu0 %v2516
    %3985 = vmatpush1.bf16.msra.mxu0 %v2515
    %3986 = vmatprep.subr.bf16.mxu0 %v2524
    %3987 = vmatpush1.bf16.msra.mxu0 %v2523
    %3988 = vmatprep.subr.bf16.mxu0 %v2532
    %3989 = vmatpush1.bf16.msra.mxu0 %v2531
    %3990 = vmatprep.subr.bf16.mxu0 %v2540
    %3991 = vmatpush1.bf16.msra.mxu0 %v2539
    %3992 = vmatprep.subr.bf16.mxu0 %v2548
    %3993 = vmatpush1.bf16.msra.mxu0 %v2547
    %3994 = vmatprep.subr.bf16.mxu0 %v2556
    %3995 = vmatpush1.bf16.msra.mxu0 %v2555
    %3996 = vmatprep.subr.bf16.mxu0 %v2564
    %3997 = vmatpush1.bf16.msra.mxu0 %v2563
    %3998 = vmatprep.subr.bf16.mxu0 %v2572
    %3999 = vmatpush1.bf16.msra.mxu0 %v2571
    %4000 = vmatprep.subr.bf16.mxu0 %v2580
    %4001 = vmatpush1.bf16.msra.mxu0 %v2579
    %4002 = vmatprep.subr.bf16.mxu0 %v2588
    %4003 = vmatpush1.bf16.msra.mxu0 %v2587
    %4004 = vmatprep.subr.bf16.mxu0 %v2596
    %4005 = vmatpush1.bf16.msra.mxu0 %v2595
    %4006 = vmatprep.subr.bf16.mxu0 %v2604
    %4007 = vmatpush1.bf16.msra.mxu0 %v2603
    %4008 = vmatprep.subr.bf16.mxu0 %v2612
    %4009 = vmatpush1.bf16.msra.mxu0 %v2611
    %4010 = vmatprep.subr.bf16.mxu0 %v2620
    %4011 = vmatpush1.bf16.msra.mxu0 %v2619
    %4012 = vmatprep.mubr.bf16.mxu0 %v3979
    %4013 = vmatmul.mubr.bf16.gmra.mrb[0].mxu0 %v3978
    %v4014 = vpop.f32.mrb[0].mxu0
    %v4015 = vadd.f32 0.0, %v4014
    %v4016 = vpop.f32.mrb[0].mxu0
    %v4017 = vadd.f32 0.0, %v4016
    %v4018 = vpop.f32.mrb[0].mxu0
    %v4019 = vpop.f32.mrb[0].mxu0
    %4020 = vdwg.mxu0
    %4021 = vmatprep.subr.bf16.mxu0 %v2502
    %4022 = vmatpush1.bf16.msra.mxu0 %v2501
    %4023 = vmatprep.subr.bf16.mxu0 %v2510
    %4024 = vmatpush1.bf16.msra.mxu0 %v2509
    %4025 = vmatprep.subr.bf16.mxu0 %v2518
    %4026 = vmatpush1.bf16.msra.mxu0 %v2517
    %4027 = vmatprep.subr.bf16.mxu0 %v2526
    %4028 = vmatpush1.bf16.msra.mxu0 %v2525
    %4029 = vmatprep.subr.bf16.mxu0 %v2534
    %4030 = vmatpush1.bf16.msra.mxu0 %v2533
    %4031 = vmatprep.subr.bf16.mxu0 %v2542
    %4032 = vmatpush1.bf16.msra.mxu0 %v2541
    %4033 = vmatprep.subr.bf16.mxu0 %v2550
    %4034 = vmatpush1.bf16.msra.mxu0 %v2549
    %4035 = vmatprep.subr.bf16.mxu0 %v2558
    %4036 = vmatpush1.bf16.msra.mxu0 %v2557
    %4037 = vmatprep.subr.bf16.mxu0 %v2566
    %4038 = vmatpush1.bf16.msra.mxu0 %v2565
    %4039 = vmatprep.subr.bf16.mxu0 %v2574
    %4040 = vmatpush1.bf16.msra.mxu0 %v2573
    %4041 = vmatprep.subr.bf16.mxu0 %v2582
    %4042 = vmatpush1.bf16.msra.mxu0 %v2581
    %4043 = vmatprep.subr.bf16.mxu0 %v2590
    %4044 = vmatpush1.bf16.msra.mxu0 %v2589
    %4045 = vmatprep.subr.bf16.mxu0 %v2598
    %4046 = vmatpush1.bf16.msra.mxu0 %v2597
    %4047 = vmatprep.subr.bf16.mxu0 %v2606
    %4048 = vmatpush1.bf16.msra.mxu0 %v2605
    %4049 = vmatprep.subr.bf16.mxu0 %v2614
    %4050 = vmatpush1.bf16.msra.mxu0 %v2613
    %4051 = vmatprep.subr.bf16.mxu0 %v2622
    %4052 = vmatpush1.bf16.msra.mxu0 %v2621
    %4053 = vmatprep.mubr.bf16.mxu0 %v3979
    %4054 = vmatmul.mubr.bf16.gmra.mrb[0].mxu0 %v3978
    %v4055 = vpop.f32.mrb[0].mxu0
    %v4056 = vadd.f32 0.0, %v4055
    %v4057 = vpop.f32.mrb[0].mxu0
    %v4058 = vadd.f32 0.0, %v4057
    %v4059 = vpop.f32.mrb[0].mxu0
    %v4060 = vpop.f32.mrb[0].mxu0
    %4061 = vdwg.mxu0
    %4062 = vmatprep.subr.bf16.mxu0 %v2504
    %4063 = vmatpush1.bf16.msra.mxu0 %v2503
    %4064 = vmatprep.subr.bf16.mxu0 %v2512
    %4065 = vmatpush1.bf16.msra.mxu0 %v2511
    %4066 = vmatprep.subr.bf16.mxu0 %v2520
    %4067 = vmatpush1.bf16.msra.mxu0 %v2519
    %4068 = vmatprep.subr.bf16.mxu0 %v2528
    %4069 = vmatpush1.bf16.msra.mxu0 %v2527
    %4070 = vmatprep.subr.bf16.mxu0 %v2536
    %4071 = vmatpush1.bf16.msra.mxu0 %v2535
    %4072 = vmatprep.subr.bf16.mxu0 %v2544
    %4073 = vmatpush1.bf16.msra.mxu0 %v2543
    %4074 = vmatprep.subr.bf16.mxu0 %v2552
    %4075 = vmatpush1.bf16.msra.mxu0 %v2551
    %4076 = vmatprep.subr.bf16.mxu0 %v2560
    %4077 = vmatpush1.bf16.msra.mxu0 %v2559
    %4078 = vmatprep.subr.bf16.mxu0 %v2568
    %4079 = vmatpush1.bf16.msra.mxu0 %v2567
    %4080 = vmatprep.subr.bf16.mxu0 %v2576
    %4081 = vmatpush1.bf16.msra.mxu0 %v2575
    %4082 = vmatprep.subr.bf16.mxu0 %v2584
    %4083 = vmatpush1.bf16.msra.mxu0 %v2583
    %4084 = vmatprep.subr.bf16.mxu0 %v2592
    %4085 = vmatpush1.bf16.msra.mxu0 %v2591
    %4086 = vmatprep.subr.bf16.mxu0 %v2600
    %4087 = vmatpush1.bf16.msra.mxu0 %v2599
    %4088 = vmatprep.subr.bf16.mxu0 %v2608
    %4089 = vmatpush1.bf16.msra.mxu0 %v2607
    %4090 = vmatprep.subr.bf16.mxu0 %v2616
    %4091 = vmatpush1.bf16.msra.mxu0 %v2615
    %4092 = vmatprep.subr.bf16.mxu0 %v2624
    %4093 = vmatpush1.bf16.msra.mxu0 %v2623
    %4094 = vmatprep.mubr.bf16.mxu0 %v3979
    %4095 = vmatmul.mubr.bf16.gmra.mrb[0].mxu0 %v3978
    %v4096 = vpop.f32.mrb[0].mxu0
    %v4097 = vadd.f32 0.0, %v4096
    %v4098 = vpop.f32.mrb[0].mxu0
    %v4099 = vadd.f32 0.0, %v4098
    %v4100 = vpop.f32.mrb[0].mxu0
    %v4101 = vpop.f32.mrb[0].mxu0
    %4102 = vdwg.mxu0
    %4103 = vmatprep.subr.bf16.mxu0 %v2506
    %4104 = vmatpush1.bf16.msra.mxu0 %v2505
    %4105 = vmatprep.subr.bf16.mxu0 %v2514
    %4106 = vmatpush1.bf16.msra.mxu0 %v2513
    %4107 = vmatprep.subr.bf16.mxu0 %v2522
    %4108 = vmatpush1.bf16.msra.mxu0 %v2521
    %4109 = vmatprep.subr.bf16.mxu0 %v2530
    %4110 = vmatpush1.bf16.msra.mxu0 %v2529
    %4111 = vmatprep.subr.bf16.mxu0 %v2538
    %4112 = vmatpush1.bf16.msra.mxu0 %v2537
    %4113 = vmatprep.subr.bf16.mxu0 %v2546
    %4114 = vmatpush1.bf16.msra.mxu0 %v2545
    %4115 = vmatprep.subr.bf16.mxu0 %v2554
    %4116 = vmatpush1.bf16.msra.mxu0 %v2553
    %4117 = vmatprep.subr.bf16.mxu0 %v2562
    %4118 = vmatpush1.bf16.msra.mxu0 %v2561
    %4119 = vmatprep.subr.bf16.mxu0 %v2570
    %4120 = vmatpush1.bf16.msra.mxu0 %v2569
    %4121 = vmatprep.subr.bf16.mxu0 %v2578
    %4122 = vmatpush1.bf16.msra.mxu0 %v2577
    %4123 = vmatprep.subr.bf16.mxu0 %v2586
    %4124 = vmatpush1.bf16.msra.mxu0 %v2585
    %4125 = vmatprep.subr.bf16.mxu0 %v2594
    %4126 = vmatpush1.bf16.msra.mxu0 %v2593
    %4127 = vmatprep.subr.bf16.mxu0 %v2602
    %4128 = vmatpush1.bf16.msra.mxu0 %v2601
    %4129 = vmatprep.subr.bf16.mxu0 %v2610
    %4130 = vmatpush1.bf16.msra.mxu0 %v2609
    %4131 = vmatprep.subr.bf16.mxu0 %v2618
    %4132 = vmatpush1.bf16.msra.mxu0 %v2617
    %4133 = vmatprep.subr.bf16.mxu0 %v2626
    %4134 = vmatpush1.bf16.msra.mxu0 %v2625
    %4135 = vmatprep.mubr.bf16.mxu0 %v3979
    %4136 = vmatmul.mubr.bf16.gmra.mrb[0].mxu0 %v3978
    %v4137 = vpop.f32.mrb[0].mxu0
    %v4138 = vadd.f32 0.0, %v4137
    %v4139 = vpop.f32.mrb[0].mxu0
    %v4140 = vadd.f32 0.0, %v4139
    %v4141 = vpop.f32.mrb[0].mxu0
    %v4142 = vpop.f32.mrb[0].mxu0
    %4143 = vdwg.mxu0
    %v4144 = vadd.f32 %v4015, %v82
    %v4145 = vadd.f32 %v4017, %v86
    %v4146 = vadd.f32 %v4056, %v90
    %v4147 = vadd.f32 %v4058, %v94
    %v4148 = vld [vmem:[%s1719] sm:$0xff]
    %v4150 = vcombine.high %v4148, %v4148
    %v4152 = vunpack.c.l.s4 1983009808
    %v4153 = vunpack.c.0.s8 %v4152
    %v4154 = vlaneseq
    %v4155 = vshrl.u32 %v4154, 7
    %v4156 = vsub.s32 %v4153, %v4155
    %v4157 = vrot.slane %v4148, %v4156
    %v4159 = vunpack.c.l.s4 1983009808
    %v4160 = vunpack.c.0.s8 %v4159
    %v4161 = vlaneseq
    %v4162 = vshrl.u32 %v4161, 7
    %v4163 = vsub.s32 %v4160, %v4162
    %v4164 = vrot.slane %v4150, %v4163
    %v4165 = vcombine.high %v4157, %v4157
    %v4166 = vcombine.high %v4164, %v4164
    %v4171 = vadd.f32 %v4097, %v4157
    %v4172 = vadd.f32 %v4099, %v4165
    %v4173 = vadd.f32 %v4138, %v4164
    %v4174 = vadd.f32 %v4140, %v4166
    %v4175 = vxor.u32 %v4144, 2147483648
    %v4176 = vmul.f32 %v4175, 1.442695
    %v4177 = vpow.pop %v4176
    %v4178 = vadd.f32 %v4177, 1.0
    %v4179 = vrcp.pop %v4178
    %v4180 = vmul.f32 1.0, %v4179
    %v4181 = vxor.u32 %v4145, 2147483648
    %v4182 = vmul.f32 %v4181, 1.442695
    %v4183 = vpow.pop %v4182
    %v4184 = vadd.f32 %v4183, 1.0
    %v4185 = vrcp.pop %v4184
    %v4186 = vmul.f32 1.0, %v4185
    %v4187 = vtanh.pop %v4146
    %v4188 = vxor.u32 %v4147, 2147483648
    %v4189 = vmul.f32 %v4188, 1.442695
    %v4190 = vpow.pop %v4189
    %v4191 = vadd.f32 %v4190, 1.0
    %v4192 = vrcp.pop %v4191
    %v4193 = vmul.f32 1.0, %v4192
    %v4194 = vmul.f32 %v4186, %v3951
    %v4195 = vmul.f32 %v4180, %v4187
    %v4196 = vadd.f32 %v4194, %v4195
    %v4197 = vtanh.pop %v4196
    %v4198 = vmul.f32 %v4193, %v4197
    %v4199 = vxor.u32 %v4171, 2147483648
    %v4200 = vmul.f32 %v4199, 1.442695
    %v4201 = vpow.pop %v4200
    %v4202 = vadd.f32 %v4201, 1.0
    %v4203 = vrcp.pop %v4202
    %v4204 = vmul.f32 1.0, %v4203
    %v4205 = vxor.u32 %v4172, 2147483648
    %v4206 = vmul.f32 %v4205, 1.442695
    %v4207 = vpow.pop %v4206
    %v4208 = vadd.f32 %v4207, 1.0
    %v4209 = vrcp.pop %v4208
    %v4210 = vmul.f32 1.0, %v4209
    %v4211 = vtanh.pop %v4173
    %v4212 = vxor.u32 %v4174, 2147483648
    %v4213 = vmul.f32 %v4212, 1.442695
    %v4214 = vpow.pop %v4213
    %v4215 = vadd.f32 %v4214, 1.0
    %v4216 = vrcp.pop %v4215
    %v4217 = vmul.f32 1.0, %v4216
    %v4218 = vmul.f32 %v4210, %v3975
    %v4219 = vmul.f32 %v4204, %v4211
    %v4220 = vadd.f32 %v4218, %v4219
    %v4221 = vtanh.pop %v4220
    %v4222 = vmul.f32 %v4217, %v4221
    %v4223 = vpack.c.bf16 %v4222, %v4222
    %v4224 = vpack.c.bf16 %v4198, %v4198
    %4225 = vmatprep.subr.bf16.mxu0 %v2500
    %4226 = vmatpush1.bf16.msra.mxu0 %v2499
    %4227 = vmatprep.subr.bf16.mxu0 %v2508
    %4228 = vmatpush1.bf16.msra.mxu0 %v2507
    %4229 = vmatprep.subr.bf16.mxu0 %v2516
    %4230 = vmatpush1.bf16.msra.mxu0 %v2515
    %4231 = vmatprep.subr.bf16.mxu0 %v2524
    %4232 = vmatpush1.bf16.msra.mxu0 %v2523
    %4233 = vmatprep.subr.bf16.mxu0 %v2532
    %4234 = vmatpush1.bf16.msra.mxu0 %v2531
    %4235 = vmatprep.subr.bf16.mxu0 %v2540
    %4236 = vmatpush1.bf16.msra.mxu0 %v2539
    %4237 = vmatprep.subr.bf16.mxu0 %v2548
    %4238 = vmatpush1.bf16.msra.mxu0 %v2547
    %4239 = vmatprep.subr.bf16.mxu0 %v2556
    %4240 = vmatpush1.bf16.msra.mxu0 %v2555
    %4241 = vmatprep.subr.bf16.mxu0 %v2564
    %4242 = vmatpush1.bf16.msra.mxu0 %v2563
    %4243 = vmatprep.subr.bf16.mxu0 %v2572
    %4244 = vmatpush1.bf16.msra.mxu0 %v2571
    %4245 = vmatprep.subr.bf16.mxu0 %v2580
    %4246 = vmatpush1.bf16.msra.mxu0 %v2579
    %4247 = vmatprep.subr.bf16.mxu0 %v2588
    %4248 = vmatpush1.bf16.msra.mxu0 %v2587
    %4249 = vmatprep.subr.bf16.mxu0 %v2596
    %4250 = vmatpush1.bf16.msra.mxu0 %v2595
    %4251 = vmatprep.subr.bf16.mxu0 %v2604
    %4252 = vmatpush1.bf16.msra.mxu0 %v2603
    %4253 = vmatprep.subr.bf16.mxu0 %v2612
    %4254 = vmatpush1.bf16.msra.mxu0 %v2611
    %4255 = vmatprep.subr.bf16.mxu0 %v2620
    %4256 = vmatpush1.bf16.msra.mxu0 %v2619
    %4257 = vmatprep.mubr.bf16.mxu0 %v4224
    %4258 = vmatmul.mubr.bf16.gmra.mrb[0].mxu0 %v4223
    %v4259 = vpop.f32.mrb[0].mxu0
    %v4260 = vadd.f32 0.0, %v4259
    %v4261 = vpop.f32.mrb[0].mxu0
    %v4262 = vadd.f32 0.0, %v4261
    %v4263 = vpop.f32.mrb[0].mxu0
    %v4264 = vpop.f32.mrb[0].mxu0
    %4265 = vdwg.mxu0
    %4266 = vmatprep.subr.bf16.mxu0 %v2502
    %4267 = vmatpush1.bf16.msra.mxu0 %v2501
    %4268 = vmatprep.subr.bf16.mxu0 %v2510
    %4269 = vmatpush1.bf16.msra.mxu0 %v2509
    %4270 = vmatprep.subr.bf16.mxu0 %v2518
    %4271 = vmatpush1.bf16.msra.mxu0 %v2517
    %4272 = vmatprep.subr.bf16.mxu0 %v2526
    %4273 = vmatpush1.bf16.msra.mxu0 %v2525
    %4274 = vmatprep.subr.bf16.mxu0 %v2534
    %4275 = vmatpush1.bf16.msra.mxu0 %v2533
    %4276 = vmatprep.subr.bf16.mxu0 %v2542
    %4277 = vmatpush1.bf16.msra.mxu0 %v2541
    %4278 = vmatprep.subr.bf16.mxu0 %v2550
    %4279 = vmatpush1.bf16.msra.mxu0 %v2549
    %4280 = vmatprep.subr.bf16.mxu0 %v2558
    %4281 = vmatpush1.bf16.msra.mxu0 %v2557
    %4282 = vmatprep.subr.bf16.mxu0 %v2566
    %4283 = vmatpush1.bf16.msra.mxu0 %v2565
    %4284 = vmatprep.subr.bf16.mxu0 %v2574
    %4285 = vmatpush1.bf16.msra.mxu0 %v2573
    %4286 = vmatprep.subr.bf16.mxu0 %v2582
    %4287 = vmatpush1.bf16.msra.mxu0 %v2581
    %4288 = vmatprep.subr.bf16.mxu0 %v2590
    %4289 = vmatpush1.bf16.msra.mxu0 %v2589
    %4290 = vmatprep.subr.bf16.mxu0 %v2598
    %4291 = vmatpush1.bf16.msra.mxu0 %v2597
    %4292 = vmatprep.subr.bf16.mxu0 %v2606
    %4293 = vmatpush1.bf16.msra.mxu0 %v2605
    %4294 = vmatprep.subr.bf16.mxu0 %v2614
    %4295 = vmatpush1.bf16.msra.mxu0 %v2613
    %4296 = vmatprep.subr.bf16.mxu0 %v2622
    %4297 = vmatpush1.bf16.msra.mxu0 %v2621
    %4298 = vmatprep.mubr.bf16.mxu0 %v4224
    %4299 = vmatmul.mubr.bf16.gmra.mrb[0].mxu0 %v4223
    %v4300 = vpop.f32.mrb[0].mxu0
    %v4301 = vadd.f32 0.0, %v4300
    %v4302 = vpop.f32.mrb[0].mxu0
    %v4303 = vadd.f32 0.0, %v4302
    %v4304 = vpop.f32.mrb[0].mxu0
    %v4305 = vpop.f32.mrb[0].mxu0
    %4306 = vdwg.mxu0
    %4307 = vmatprep.subr.bf16.mxu0 %v2504
    %4308 = vmatpush1.bf16.msra.mxu0 %v2503
    %4309 = vmatprep.subr.bf16.mxu0 %v2512
    %4310 = vmatpush1.bf16.msra.mxu0 %v2511
    %4311 = vmatprep.subr.bf16.mxu0 %v2520
    %4312 = vmatpush1.bf16.msra.mxu0 %v2519
    %4313 = vmatprep.subr.bf16.mxu0 %v2528
    %4314 = vmatpush1.bf16.msra.mxu0 %v2527
    %4315 = vmatprep.subr.bf16.mxu0 %v2536
    %4316 = vmatpush1.bf16.msra.mxu0 %v2535
    %4317 = vmatprep.subr.bf16.mxu0 %v2544
    %4318 = vmatpush1.bf16.msra.mxu0 %v2543
    %4319 = vmatprep.subr.bf16.mxu0 %v2552
    %4320 = vmatpush1.bf16.msra.mxu0 %v2551
    %4321 = vmatprep.subr.bf16.mxu0 %v2560
    %4322 = vmatpush1.bf16.msra.mxu0 %v2559
    %4323 = vmatprep.subr.bf16.mxu0 %v2568
    %4324 = vmatpush1.bf16.msra.mxu0 %v2567
    %4325 = vmatprep.subr.bf16.mxu0 %v2576
    %4326 = vmatpush1.bf16.msra.mxu0 %v2575
    %4327 = vmatprep.subr.bf16.mxu0 %v2584
    %4328 = vmatpush1.bf16.msra.mxu0 %v2583
    %4329 = vmatprep.subr.bf16.mxu0 %v2592
    %4330 = vmatpush1.bf16.msra.mxu0 %v2591
    %4331 = vmatprep.subr.bf16.mxu0 %v2600
    %4332 = vmatpush1.bf16.msra.mxu0 %v2599
    %4333 = vmatprep.subr.bf16.mxu0 %v2608
    %4334 = vmatpush1.bf16.msra.mxu0 %v2607
    %4335 = vmatprep.subr.bf16.mxu0 %v2616
    %4336 = vmatpush1.bf16.msra.mxu0 %v2615
    %4337 = vmatprep.subr.bf16.mxu0 %v2624
    %4338 = vmatpush1.bf16.msra.mxu0 %v2623
    %4339 = vmatprep.mubr.bf16.mxu0 %v4224
    %4340 = vmatmul.mubr.bf16.gmra.mrb[0].mxu0 %v4223
    %v4341 = vpop.f32.mrb[0].mxu0
    %v4342 = vadd.f32 0.0, %v4341
    %v4343 = vpop.f32.mrb[0].mxu0
    %v4344 = vadd.f32 0.0, %v4343
    %v4345 = vpop.f32.mrb[0].mxu0
    %v4346 = vpop.f32.mrb[0].mxu0
    %4347 = vdwg.mxu0
    %4348 = vmatprep.subr.bf16.mxu0 %v2506
    %4349 = vmatpush1.bf16.msra.mxu0 %v2505
    %4350 = vmatprep.subr.bf16.mxu0 %v2514
    %4351 = vmatpush1.bf16.msra.mxu0 %v2513
    %4352 = vmatprep.subr.bf16.mxu0 %v2522
    %4353 = vmatpush1.bf16.msra.mxu0 %v2521
    %4354 = vmatprep.subr.bf16.mxu0 %v2530
    %4355 = vmatpush1.bf16.msra.mxu0 %v2529
    %4356 = vmatprep.subr.bf16.mxu0 %v2538
    %4357 = vmatpush1.bf16.msra.mxu0 %v2537
    %4358 = vmatprep.subr.bf16.mxu0 %v2546
    %4359 = vmatpush1.bf16.msra.mxu0 %v2545
    %4360 = vmatprep.subr.bf16.mxu0 %v2554
    %4361 = vmatpush1.bf16.msra.mxu0 %v2553
    %4362 = vmatprep.subr.bf16.mxu0 %v2562
    %4363 = vmatpush1.bf16.msra.mxu0 %v2561
    %4364 = vmatprep.subr.bf16.mxu0 %v2570
    %4365 = vmatpush1.bf16.msra.mxu0 %v2569
    %4366 = vmatprep.subr.bf16.mxu0 %v2578
    %4367 = vmatpush1.bf16.msra.mxu0 %v2577
    %4368 = vmatprep.subr.bf16.mxu0 %v2586
    %4369 = vmatpush1.bf16.msra.mxu0 %v2585
    %4370 = vmatprep.subr.bf16.mxu0 %v2594
    %4371 = vmatpush1.bf16.msra.mxu0 %v2593
    %4372 = vmatprep.subr.bf16.mxu0 %v2602
    %4373 = vmatpush1.bf16.msra.mxu0 %v2601
    %4374 = vmatprep.subr.bf16.mxu0 %v2610
    %4375 = vmatpush1.bf16.msra.mxu0 %v2609
    %4376 = vmatprep.subr.bf16.mxu0 %v2618
    %4377 = vmatpush1.bf16.msra.mxu0 %v2617
    %4378 = vmatprep.subr.bf16.mxu0 %v2626
    %4379 = vmatpush1.bf16.msra.mxu0 %v2625
    %4380 = vmatprep.mubr.bf16.mxu0 %v4224
    %4381 = vmatmul.mubr.bf16.gmra.mrb[0].mxu0 %v4223
    %v4382 = vpop.f32.mrb[0].mxu0
    %v4383 = vadd.f32 0.0, %v4382
    %v4384 = vpop.f32.mrb[0].mxu0
    %v4385 = vadd.f32 0.0, %v4384
    %v4386 = vpop.f32.mrb[0].mxu0
    %v4387 = vpop.f32.mrb[0].mxu0
    %4388 = vdwg.mxu0
    %v4389 = vadd.f32 %v4260, %v82
    %v4390 = vadd.f32 %v4262, %v86
    %v4391 = vadd.f32 %v4301, %v90
    %v4392 = vadd.f32 %v4303, %v94
    %v4393 = vld [vmem:[%s1951] sm:$0xff]
    %v4395 = vcombine.high %v4393, %v4393
    %v4397 = vunpack.c.l.s4 1983009808
    %v4398 = vunpack.c.0.s8 %v4397
    %v4399 = vlaneseq
    %v4400 = vshrl.u32 %v4399, 7
    %v4401 = vsub.s32 %v4398, %v4400
    %v4402 = vrot.slane %v4393, %v4401
    %v4404 = vunpack.c.l.s4 1983009808
    %v4405 = vunpack.c.0.s8 %v4404
    %v4406 = vlaneseq
    %v4407 = vshrl.u32 %v4406, 7
    %v4408 = vsub.s32 %v4405, %v4407
    %v4409 = vrot.slane %v4395, %v4408
    %v4410 = vcombine.high %v4402, %v4402
    %v4411 = vcombine.high %v4409, %v4409
    %v4416 = vadd.f32 %v4342, %v4402
    %v4417 = vadd.f32 %v4344, %v4410
    %v4418 = vadd.f32 %v4383, %v4409
    %v4419 = vadd.f32 %v4385, %v4411
    %v4420 = vxor.u32 %v4389, 2147483648
    %v4421 = vmul.f32 %v4420, 1.442695
    %v4422 = vpow.pop %v4421
    %v4423 = vadd.f32 %v4422, 1.0
    %v4424 = vrcp.pop %v4423
    %v4425 = vmul.f32 1.0, %v4424
    %v4426 = vxor.u32 %v4390, 2147483648
    %v4427 = vmul.f32 %v4426, 1.442695
    %v4428 = vpow.pop %v4427
    %v4429 = vadd.f32 %v4428, 1.0
    %v4430 = vrcp.pop %v4429
    %v4431 = vmul.f32 1.0, %v4430
    %v4432 = vtanh.pop %v4391
    %v4433 = vxor.u32 %v4392, 2147483648
    %v4434 = vmul.f32 %v4433, 1.442695
    %v4435 = vpow.pop %v4434
    %v4436 = vadd.f32 %v4435, 1.0
    %v4437 = vrcp.pop %v4436
    %v4438 = vmul.f32 1.0, %v4437
    %v4439 = vmul.f32 %v4431, %v4196
    %v4440 = vmul.f32 %v4425, %v4432
    %v4441 = vadd.f32 %v4439, %v4440
    %v4442 = vtanh.pop %v4441
    %v4443 = vmul.f32 %v4438, %v4442
    %v4444 = vxor.u32 %v4416, 2147483648
    %v4445 = vmul.f32 %v4444, 1.442695
    %v4446 = vpow.pop %v4445
    %v4447 = vadd.f32 %v4446, 1.0
    %v4448 = vrcp.pop %v4447
    %v4449 = vmul.f32 1.0, %v4448
    %v4450 = vxor.u32 %v4417, 2147483648
    %v4451 = vmul.f32 %v4450, 1.442695
    %v4452 = vpow.pop %v4451
    %v4453 = vadd.f32 %v4452, 1.0
    %v4454 = vrcp.pop %v4453
    %v4455 = vmul.f32 1.0, %v4454
    %v4456 = vtanh.pop %v4418
    %v4457 = vxor.u32 %v4419, 2147483648
    %v4458 = vmul.f32 %v4457, 1.442695
    %v4459 = vpow.pop %v4458
    %v4460 = vadd.f32 %v4459, 1.0
    %v4461 = vrcp.pop %v4460
    %v4462 = vmul.f32 1.0, %v4461
    %v4463 = vmul.f32 %v4455, %v4220
    %v4464 = vmul.f32 %v4449, %v4456
    %v4465 = vadd.f32 %v4463, %v4464
    %v4466 = vtanh.pop %v4465
    %v4467 = vmul.f32 %v4462, %v4466
    %v4468 = vpack.c.bf16 %v4467, %v4467
    %v4469 = vpack.c.bf16 %v4443, %v4443
    %v4470 = vld [vmem:[#allocation5] sm:$0xff]
    %v4471 = vld [vmem:[#allocation5 + $0x8] sm:$0xff]
    %v4472 = vld [vmem:[#allocation5 + $0x20] sm:$0xff]
    %v4473 = vld [vmem:[#allocation5 + $0x28] sm:$0xff]
    %v4474 = vld [vmem:[#allocation5 + $0x40] sm:$0xff]
    %v4475 = vld [vmem:[#allocation5 + $0x48] sm:$0xff]
    %v4476 = vld [vmem:[#allocation5 + $0x60] sm:$0xff]
    %v4477 = vld [vmem:[#allocation5 + $0x68] sm:$0xff]
    %v4478 = vld [vmem:[#allocation5 + $0x80] sm:$0xff]
    %v4479 = vld [vmem:[#allocation5 + $0x88] sm:$0xff]
    %v4480 = vld [vmem:[#allocation5 + $0xa0] sm:$0xff]
    %v4481 = vld [vmem:[#allocation5 + $0xa8] sm:$0xff]
    %v4482 = vld [vmem:[#allocation5 + $0xc0] sm:$0xff]
    %v4483 = vld [vmem:[#allocation5 + $0xc8] sm:$0xff]
    %v4484 = vld [vmem:[#allocation5 + $0xe0] sm:$0xff]
    %v4485 = vld [vmem:[#allocation5 + $0xe8] sm:$0xff]
    %v4486 = vld [vmem:[#allocation5 + $0x100] sm:$0xff]
    %v4487 = vld [vmem:[#allocation5 + $0x108] sm:$0xff]
    %v4488 = vld [vmem:[#allocation5 + $0x120] sm:$0xff]
    %v4489 = vld [vmem:[#allocation5 + $0x128] sm:$0xff]
    %v4490 = vld [vmem:[#allocation5 + $0x140] sm:$0xff]
    %v4491 = vld [vmem:[#allocation5 + $0x148] sm:$0xff]
    %v4492 = vld [vmem:[#allocation5 + $0x160] sm:$0xff]
    %v4493 = vld [vmem:[#allocation5 + $0x168] sm:$0xff]
    %v4494 = vld [vmem:[#allocation5 + $0x180] sm:$0xff]
    %v4495 = vld [vmem:[#allocation5 + $0x188] sm:$0xff]
    %v4496 = vld [vmem:[#allocation5 + $0x1a0] sm:$0xff]
    %v4497 = vld [vmem:[#allocation5 + $0x1a8] sm:$0xff]
    %v4498 = vld [vmem:[#allocation5 + $0x1c0] sm:$0xff]
    %v4499 = vld [vmem:[#allocation5 + $0x1c8] sm:$0xff]
    %v4500 = vld [vmem:[#allocation5 + $0x1e0] sm:$0xff]
    %v4501 = vld [vmem:[#allocation5 + $0x1e8] sm:$0xff]
    %v4502 = vld [vmem:[#allocation5 + $0x200] sm:$0xff]
    %v4503 = vld [vmem:[#allocation5 + $0x208] sm:$0xff]
    %v4504 = vld [vmem:[#allocation5 + $0x220] sm:$0xff]
    %v4505 = vld [vmem:[#allocation5 + $0x228] sm:$0xff]
    %v4506 = vld [vmem:[#allocation5 + $0x240] sm:$0xff]
    %v4507 = vld [vmem:[#allocation5 + $0x248] sm:$0xff]
    %v4508 = vld [vmem:[#allocation5 + $0x260] sm:$0xff]
    %v4509 = vld [vmem:[#allocation5 + $0x268] sm:$0xff]
    %v4510 = vld [vmem:[#allocation5 + $0x280] sm:$0xff]
    %v4511 = vld [vmem:[#allocation5 + $0x288] sm:$0xff]
    %v4512 = vld [vmem:[#allocation5 + $0x2a0] sm:$0xff]
    %v4513 = vld [vmem:[#allocation5 + $0x2a8] sm:$0xff]
    %v4514 = vld [vmem:[#allocation5 + $0x2c0] sm:$0xff]
    %v4515 = vld [vmem:[#allocation5 + $0x2c8] sm:$0xff]
    %v4516 = vld [vmem:[#allocation5 + $0x2e0] sm:$0xff]
    %v4517 = vld [vmem:[#allocation5 + $0x2e8] sm:$0xff]
    %v4518 = vld [vmem:[#allocation5 + $0x300] sm:$0xff]
    %v4519 = vld [vmem:[#allocation5 + $0x308] sm:$0xff]
    %v4520 = vld [vmem:[#allocation5 + $0x320] sm:$0xff]
    %v4521 = vld [vmem:[#allocation5 + $0x328] sm:$0xff]
    %v4522 = vld [vmem:[#allocation5 + $0x340] sm:$0xff]
    %v4523 = vld [vmem:[#allocation5 + $0x348] sm:$0xff]
    %v4524 = vld [vmem:[#allocation5 + $0x360] sm:$0xff]
    %v4525 = vld [vmem:[#allocation5 + $0x368] sm:$0xff]
    %v4526 = vld [vmem:[#allocation5 + $0x380] sm:$0xff]
    %v4527 = vld [vmem:[#allocation5 + $0x388] sm:$0xff]
    %v4528 = vld [vmem:[#allocation5 + $0x3a0] sm:$0xff]
    %v4529 = vld [vmem:[#allocation5 + $0x3a8] sm:$0xff]
    %v4530 = vld [vmem:[#allocation5 + $0x3c0] sm:$0xff]
    %v4531 = vld [vmem:[#allocation5 + $0x3c8] sm:$0xff]
    %v4532 = vld [vmem:[#allocation5 + $0x3e0] sm:$0xff]
    %v4533 = vld [vmem:[#allocation5 + $0x3e8] sm:$0xff]
    %v4598 = vunpack.c.l.b16 %v4470
    %v4599 = vunpack.c.h.b16 %v4470
    %v4600 = vunpack.c.l.b16 %v4471
    %v4601 = vunpack.c.h.b16 %v4471
    %v4602 = vunpack.c.l.b16 %v4472
    %v4603 = vunpack.c.h.b16 %v4472
    %v4604 = vunpack.c.l.b16 %v4473
    %v4605 = vunpack.c.h.b16 %v4473
    %v4606 = vunpack.c.l.b16 %v4474
    %v4607 = vunpack.c.h.b16 %v4474
    %v4608 = vunpack.c.l.b16 %v4475
    %v4609 = vunpack.c.h.b16 %v4475
    %v4610 = vunpack.c.l.b16 %v4476
    %v4611 = vunpack.c.h.b16 %v4476
    %v4612 = vunpack.c.l.b16 %v4477
    %v4613 = vunpack.c.h.b16 %v4477
    %v4614 = vunpack.c.l.b16 %v4478
    %v4615 = vunpack.c.h.b16 %v4478
    %v4616 = vunpack.c.l.b16 %v4479
    %v4617 = vunpack.c.h.b16 %v4479
    %v4618 = vunpack.c.l.b16 %v4480
    %v4619 = vunpack.c.h.b16 %v4480
    %v4620 = vunpack.c.l.b16 %v4481
    %v4621 = vunpack.c.h.b16 %v4481
    %v4622 = vunpack.c.l.b16 %v4482
    %v4623 = vunpack.c.h.b16 %v4482
    %v4624 = vunpack.c.l.b16 %v4483
    %v4625 = vunpack.c.h.b16 %v4483
    %v4626 = vunpack.c.l.b16 %v4484
    %v4627 = vunpack.c.h.b16 %v4484
    %v4628 = vunpack.c.l.b16 %v4485
    %v4629 = vunpack.c.h.b16 %v4485
    %v4630 = vunpack.c.l.b16 %v4486
    %v4631 = vunpack.c.h.b16 %v4486
    %v4632 = vunpack.c.l.b16 %v4487
    %v4633 = vunpack.c.h.b16 %v4487
    %v4634 = vunpack.c.l.b16 %v4488
    %v4635 = vunpack.c.h.b16 %v4488
    %v4636 = vunpack.c.l.b16 %v4489
    %v4637 = vunpack.c.h.b16 %v4489
    %v4638 = vunpack.c.l.b16 %v4490
    %v4639 = vunpack.c.h.b16 %v4490
    %v4640 = vunpack.c.l.b16 %v4491
    %v4641 = vunpack.c.h.b16 %v4491
    %v4642 = vunpack.c.l.b16 %v4492
    %v4643 = vunpack.c.h.b16 %v4492
    %v4644 = vunpack.c.l.b16 %v4493
    %v4645 = vunpack.c.h.b16 %v4493
    %v4646 = vunpack.c.l.b16 %v4494
    %v4647 = vunpack.c.h.b16 %v4494
    %v4648 = vunpack.c.l.b16 %v4495
    %v4649 = vunpack.c.h.b16 %v4495
    %v4650 = vunpack.c.l.b16 %v4496
    %v4651 = vunpack.c.h.b16 %v4496
    %v4652 = vunpack.c.l.b16 %v4497
    %v4653 = vunpack.c.h.b16 %v4497
    %v4654 = vunpack.c.l.b16 %v4498
    %v4655 = vunpack.c.h.b16 %v4498
    %v4656 = vunpack.c.l.b16 %v4499
    %v4657 = vunpack.c.h.b16 %v4499
    %v4658 = vunpack.c.l.b16 %v4500
    %v4659 = vunpack.c.h.b16 %v4500
    %v4660 = vunpack.c.l.b16 %v4501
    %v4661 = vunpack.c.h.b16 %v4501
    %v4662 = vunpack.c.l.b16 %v4502
    %v4663 = vunpack.c.h.b16 %v4502
    %v4664 = vunpack.c.l.b16 %v4503
    %v4665 = vunpack.c.h.b16 %v4503
    %v4666 = vunpack.c.l.b16 %v4504
    %v4667 = vunpack.c.h.b16 %v4504
    %v4668 = vunpack.c.l.b16 %v4505
    %v4669 = vunpack.c.h.b16 %v4505
    %v4670 = vunpack.c.l.b16 %v4506
    %v4671 = vunpack.c.h.b16 %v4506
    %v4672 = vunpack.c.l.b16 %v4507
    %v4673 = vunpack.c.h.b16 %v4507
    %v4674 = vunpack.c.l.b16 %v4508
    %v4675 = vunpack.c.h.b16 %v4508
    %v4676 = vunpack.c.l.b16 %v4509
    %v4677 = vunpack.c.h.b16 %v4509
    %v4678 = vunpack.c.l.b16 %v4510
    %v4679 = vunpack.c.h.b16 %v4510
    %v4680 = vunpack.c.l.b16 %v4511
    %v4681 = vunpack.c.h.b16 %v4511
    %v4682 = vunpack.c.l.b16 %v4512
    %v4683 = vunpack.c.h.b16 %v4512
    %v4684 = vunpack.c.l.b16 %v4513
    %v4685 = vunpack.c.h.b16 %v4513
    %v4686 = vunpack.c.l.b16 %v4514
    %v4687 = vunpack.c.h.b16 %v4514
    %v4688 = vunpack.c.l.b16 %v4515
    %v4689 = vunpack.c.h.b16 %v4515
    %v4690 = vunpack.c.l.b16 %v4516
    %v4691 = vunpack.c.h.b16 %v4516
    %v4692 = vunpack.c.l.b16 %v4517
    %v4693 = vunpack.c.h.b16 %v4517
    %v4694 = vunpack.c.l.b16 %v4518
    %v4695 = vunpack.c.h.b16 %v4518
    %v4696 = vunpack.c.l.b16 %v4519
    %v4697 = vunpack.c.h.b16 %v4519
    %v4698 = vunpack.c.l.b16 %v4520
    %v4699 = vunpack.c.h.b16 %v4520
    %v4700 = vunpack.c.l.b16 %v4521
    %v4701 = vunpack.c.h.b16 %v4521
    %v4702 = vunpack.c.l.b16 %v4522
    %v4703 = vunpack.c.h.b16 %v4522
    %v4704 = vunpack.c.l.b16 %v4523
    %v4705 = vunpack.c.h.b16 %v4523
    %v4706 = vunpack.c.l.b16 %v4524
    %v4707 = vunpack.c.h.b16 %v4524
    %v4708 = vunpack.c.l.b16 %v4525
    %v4709 = vunpack.c.h.b16 %v4525
    %v4710 = vunpack.c.l.b16 %v4526
    %v4711 = vunpack.c.h.b16 %v4526
    %v4712 = vunpack.c.l.b16 %v4527
    %v4713 = vunpack.c.h.b16 %v4527
    %v4714 = vunpack.c.l.b16 %v4528
    %v4715 = vunpack.c.h.b16 %v4528
    %v4716 = vunpack.c.l.b16 %v4529
    %v4717 = vunpack.c.h.b16 %v4529
    %v4718 = vunpack.c.l.b16 %v4530
    %v4719 = vunpack.c.h.b16 %v4530
    %v4720 = vunpack.c.l.b16 %v4531
    %v4721 = vunpack.c.h.b16 %v4531
    %v4722 = vunpack.c.l.b16 %v4532
    %v4723 = vunpack.c.h.b16 %v4532
    %v4724 = vunpack.c.l.b16 %v4533
    %v4725 = vunpack.c.h.b16 %v4533
    %v4726 = vpack.c.b16 %v4602, %v4598
    %v4727 = vpack.c.b16 %v4603, %v4599
    %v4728 = vpack.c.b16 %v4604, %v4600
    %v4729 = vpack.c.b16 %v4605, %v4601
    %v4730 = vpack.c.b16 %v4610, %v4606
    %v4731 = vpack.c.b16 %v4611, %v4607
    %v4732 = vpack.c.b16 %v4612, %v4608
    %v4733 = vpack.c.b16 %v4613, %v4609
    %v4734 = vpack.c.b16 %v4618, %v4614
    %v4735 = vpack.c.b16 %v4619, %v4615
    %v4736 = vpack.c.b16 %v4620, %v4616
    %v4737 = vpack.c.b16 %v4621, %v4617
    %v4738 = vpack.c.b16 %v4626, %v4622
    %v4739 = vpack.c.b16 %v4627, %v4623
    %v4740 = vpack.c.b16 %v4628, %v4624
    %v4741 = vpack.c.b16 %v4629, %v4625
    %v4742 = vpack.c.b16 %v4634, %v4630
    %v4743 = vpack.c.b16 %v4635, %v4631
    %v4744 = vpack.c.b16 %v4636, %v4632
    %v4745 = vpack.c.b16 %v4637, %v4633
    %v4746 = vpack.c.b16 %v4642, %v4638
    %v4747 = vpack.c.b16 %v4643, %v4639
    %v4748 = vpack.c.b16 %v4644, %v4640
    %v4749 = vpack.c.b16 %v4645, %v4641
    %v4750 = vpack.c.b16 %v4650, %v4646
    %v4751 = vpack.c.b16 %v4651, %v4647
    %v4752 = vpack.c.b16 %v4652, %v4648
    %v4753 = vpack.c.b16 %v4653, %v4649
    %v4754 = vpack.c.b16 %v4658, %v4654
    %v4755 = vpack.c.b16 %v4659, %v4655
    %v4756 = vpack.c.b16 %v4660, %v4656
    %v4757 = vpack.c.b16 %v4661, %v4657
    %v4758 = vpack.c.b16 %v4666, %v4662
    %v4759 = vpack.c.b16 %v4667, %v4663
    %v4760 = vpack.c.b16 %v4668, %v4664
    %v4761 = vpack.c.b16 %v4669, %v4665
    %v4762 = vpack.c.b16 %v4674, %v4670
    %v4763 = vpack.c.b16 %v4675, %v4671
    %v4764 = vpack.c.b16 %v4676, %v4672
    %v4765 = vpack.c.b16 %v4677, %v4673
    %v4766 = vpack.c.b16 %v4682, %v4678
    %v4767 = vpack.c.b16 %v4683, %v4679
    %v4768 = vpack.c.b16 %v4684, %v4680
    %v4769 = vpack.c.b16 %v4685, %v4681
    %v4770 = vpack.c.b16 %v4690, %v4686
    %v4771 = vpack.c.b16 %v4691, %v4687
    %v4772 = vpack.c.b16 %v4692, %v4688
    %v4773 = vpack.c.b16 %v4693, %v4689
    %v4774 = vpack.c.b16 %v4698, %v4694
    %v4775 = vpack.c.b16 %v4699, %v4695
    %v4776 = vpack.c.b16 %v4700, %v4696
    %v4777 = vpack.c.b16 %v4701, %v4697
    %v4778 = vpack.c.b16 %v4706, %v4702
    %v4779 = vpack.c.b16 %v4707, %v4703
    %v4780 = vpack.c.b16 %v4708, %v4704
    %v4781 = vpack.c.b16 %v4709, %v4705
    %v4782 = vpack.c.b16 %v4714, %v4710
    %v4783 = vpack.c.b16 %v4715, %v4711
    %v4784 = vpack.c.b16 %v4716, %v4712
    %v4785 = vpack.c.b16 %v4717, %v4713
    %v4786 = vpack.c.b16 %v4722, %v4718
    %v4787 = vpack.c.b16 %v4723, %v4719
    %v4788 = vpack.c.b16 %v4724, %v4720
    %v4789 = vpack.c.b16 %v4725, %v4721
    %4854 = vmatprep.subr.bf16.mxu0 %v4727
    %4855 = vmatpush1.bf16.msra.mxu0 %v4726
    %4856 = vmatprep.subr.bf16.mxu0 %v4731
    %4857 = vmatpush1.bf16.msra.mxu0 %v4730
    %4858 = vmatprep.subr.bf16.mxu0 %v4735
    %4859 = vmatpush1.bf16.msra.mxu0 %v4734
    %4860 = vmatprep.subr.bf16.mxu0 %v4739
    %4861 = vmatpush1.bf16.msra.mxu0 %v4738
    %4862 = vmatprep.subr.bf16.mxu0 %v4743
    %4863 = vmatpush1.bf16.msra.mxu0 %v4742
    %4864 = vmatprep.subr.bf16.mxu0 %v4747
    %4865 = vmatpush1.bf16.msra.mxu0 %v4746
    %4866 = vmatprep.subr.bf16.mxu0 %v4751
    %4867 = vmatpush1.bf16.msra.mxu0 %v4750
    %4868 = vmatprep.subr.bf16.mxu0 %v4755
    %4869 = vmatpush1.bf16.msra.mxu0 %v4754
    %4870 = vmatprep.subr.bf16.mxu0 %v4759
    %4871 = vmatpush1.bf16.msra.mxu0 %v4758
    %4872 = vmatprep.subr.bf16.mxu0 %v4763
    %4873 = vmatpush1.bf16.msra.mxu0 %v4762
    %4874 = vmatprep.subr.bf16.mxu0 %v4767
    %4875 = vmatpush1.bf16.msra.mxu0 %v4766
    %4876 = vmatprep.subr.bf16.mxu0 %v4771
    %4877 = vmatpush1.bf16.msra.mxu0 %v4770
    %4878 = vmatprep.subr.bf16.mxu0 %v4775
    %4879 = vmatpush1.bf16.msra.mxu0 %v4774
    %4880 = vmatprep.subr.bf16.mxu0 %v4779
    %4881 = vmatpush1.bf16.msra.mxu0 %v4778
    %4882 = vmatprep.subr.bf16.mxu0 %v4783
    %4883 = vmatpush1.bf16.msra.mxu0 %v4782
    %4884 = vmatprep.subr.bf16.mxu0 %v4787
    %4885 = vmatpush1.bf16.msra.mxu0 %v4786
    %4886 = vmatprep.mubr.bf16.mxu0 %v4469
    %4887 = vmatmul.mubr.bf16.gmra.mrb[0].mxu0 %v4468
    %v4888 = vpop.f32.mrb[0].mxu0
    %v4889 = vadd.f32 %v82, %v4888
    %v4890 = vpop.f32.mrb[0].mxu0
    %v4891 = vadd.f32 %v86, %v4890
    %v4892 = vpop.f32.mrb[0].mxu0
    %v4893 = vpop.f32.mrb[0].mxu0
    %4894 = vdwg.mxu0
    %4895 = vmatprep.subr.bf16.mxu0 %v4729
    %4896 = vmatpush1.bf16.msra.mxu0 %v4728
    %4897 = vmatprep.subr.bf16.mxu0 %v4733
    %4898 = vmatpush1.bf16.msra.mxu0 %v4732
    %4899 = vmatprep.subr.bf16.mxu0 %v4737
    %4900 = vmatpush1.bf16.msra.mxu0 %v4736
    %4901 = vmatprep.subr.bf16.mxu0 %v4741
    %4902 = vmatpush1.bf16.msra.mxu0 %v4740
    %4903 = vmatprep.subr.bf16.mxu0 %v4745
    %4904 = vmatpush1.bf16.msra.mxu0 %v4744
    %4905 = vmatprep.subr.bf16.mxu0 %v4749
    %4906 = vmatpush1.bf16.msra.mxu0 %v4748
    %4907 = vmatprep.subr.bf16.mxu0 %v4753
    %4908 = vmatpush1.bf16.msra.mxu0 %v4752
    %4909 = vmatprep.subr.bf16.mxu0 %v4757
    %4910 = vmatpush1.bf16.msra.mxu0 %v4756
    %4911 = vmatprep.subr.bf16.mxu0 %v4761
    %4912 = vmatpush1.bf16.msra.mxu0 %v4760
    %4913 = vmatprep.subr.bf16.mxu0 %v4765
    %4914 = vmatpush1.bf16.msra.mxu0 %v4764
    %4915 = vmatprep.subr.bf16.mxu0 %v4769
    %4916 = vmatpush1.bf16.msra.mxu0 %v4768
    %4917 = vmatprep.subr.bf16.mxu0 %v4773
    %4918 = vmatpush1.bf16.msra.mxu0 %v4772
    %4919 = vmatprep.subr.bf16.mxu0 %v4777
    %4920 = vmatpush1.bf16.msra.mxu0 %v4776
    %4921 = vmatprep.subr.bf16.mxu0 %v4781
    %4922 = vmatpush1.bf16.msra.mxu0 %v4780
    %4923 = vmatprep.subr.bf16.mxu0 %v4785
    %4924 = vmatpush1.bf16.msra.mxu0 %v4784
    %4925 = vmatprep.subr.bf16.mxu0 %v4789
    %4926 = vmatpush1.bf16.msra.mxu0 %v4788
    %4927 = vmatprep.mubr.bf16.mxu0 %v4469
    %4928 = vmatmul.mubr.bf16.gmra.mrb[0].mxu0 %v4468
    %v4929 = vpop.f32.mrb[0].mxu0
    %v4930 = vadd.f32 %v90, %v4929
    %v4931 = vpop.f32.mrb[0].mxu0
    %v4932 = vadd.f32 %v94, %v4931
    %v4933 = vpop.f32.mrb[0].mxu0
    %v4934 = vpop.f32.mrb[0].mxu0
    %4935 = vdwg.mxu0
    %v4936 = vxor.u32 %v4889, 2147483648
    %v4937 = vmul.f32 %v4936, 1.442695
    %v4938 = vpow.pop %v4937
    %v4939 = vadd.f32 %v4938, 1.0
    %v4940 = vrcp.pop %v4939
    %v4941 = vmul.f32 1.0, %v4940
    %v4942 = vxor.u32 %v4891, 2147483648
    %v4943 = vmul.f32 %v4942, 1.442695
    %v4944 = vpow.pop %v4943
    %v4945 = vadd.f32 %v4944, 1.0
    %v4946 = vrcp.pop %v4945
    %v4947 = vmul.f32 1.0, %v4946
    %v4948 = vtanh.pop %v4930
    %v4949 = vxor.u32 %v4932, 2147483648
    %v4950 = vmul.f32 %v4949, 1.442695
    %v4951 = vpow.pop %v4950
    %v4952 = vadd.f32 %v4951, 1.0
    %v4953 = vrcp.pop %v4952
    %v4954 = vmul.f32 1.0, %v4953
    %v4955 = vmul.f32 %v4947, %v4441
    %v4956 = vmul.f32 %v4941, %v4948
    %v4957 = vadd.f32 %v4955, %v4956
    %v4958 = vtanh.pop %v4957
    %v4959 = vmul.f32 %v4954, %v4958
    %v4960 = vpack.c.bf16 %v4959, %v4959
    %v4961 = vld [vmem:[%s5] sm:$0xf]
    %v4962 = vld [vmem:[%s5 + $0x4] sm:$0xf]
    %v4963 = vld [vmem:[%s5 + $0x8] sm:$0xf]
    %v4964 = vld [vmem:[%s5 + $0xc] sm:$0xf]
    %v4965 = vld [vmem:[%s5 + $0x10] sm:$0xf]
    %v4966 = vld [vmem:[%s5 + $0x14] sm:$0xf]
    %v4967 = vld [vmem:[%s5 + $0x18] sm:$0xf]
    %v4968 = vld [vmem:[%s5 + $0x1c] sm:$0xf]
    %v4969 = vld [vmem:[%s5 + $0x20] sm:$0xf]
    %v4970 = vld [vmem:[%s5 + $0x24] sm:$0xf]
    %v4971 = vld [vmem:[%s5 + $0x28] sm:$0xf]
    %v4972 = vld [vmem:[%s5 + $0x2c] sm:$0xf]
    %v4973 = vld [vmem:[%s5 + $0x30] sm:$0xf]
    %v4974 = vld [vmem:[%s5 + $0x34] sm:$0xf]
    %v4975 = vld [vmem:[%s5 + $0x38] sm:$0xf]
    %v4976 = vld [vmem:[%s5 + $0x3c] sm:$0xf]
    %v4977 = vld [vmem:[%s6] sm:$0x1]
    %v4979 = vlaneseq
    %v4980 = vshrl.u32 %v4979, 7
    %v4981 = vsub.s32 0, %v4980
    %v4982 = vrot.slane %v4977, %v4981
    %v5000 = vunpack.c.l.b16 %v4961
    %v5001 = vunpack.c.l.b16 %v4962
    %v5002 = vunpack.c.l.b16 %v4963
    %v5003 = vunpack.c.l.b16 %v4964
    %v5004 = vunpack.c.l.b16 %v4965
    %v5005 = vunpack.c.l.b16 %v4966
    %v5006 = vunpack.c.l.b16 %v4967
    %v5007 = vunpack.c.l.b16 %v4968
    %v5008 = vunpack.c.l.b16 %v4969
    %v5009 = vunpack.c.l.b16 %v4970
    %v5010 = vunpack.c.l.b16 %v4971
    %v5011 = vunpack.c.l.b16 %v4972
    %v5012 = vunpack.c.l.b16 %v4973
    %v5013 = vunpack.c.l.b16 %v4974
    %v5014 = vunpack.c.l.b16 %v4975
    %v5015 = vunpack.c.l.b16 %v4976
    %v5016 = vpack.c.b16 %v5001, %v5000
    %v5017 = vpack.c.b16 %v5003, %v5002
    %v5018 = vpack.c.b16 %v5005, %v5004
    %v5019 = vpack.c.b16 %v5007, %v5006
    %v5020 = vpack.c.b16 %v5009, %v5008
    %v5021 = vpack.c.b16 %v5011, %v5010
    %v5022 = vpack.c.b16 %v5013, %v5012
    %v5023 = vpack.c.b16 %v5015, %v5014
    %5032 = vmatprep.subr.bf16.mxu0 0
    %5033 = vmatpush1.bf16.msra.mxu0 %v5016
    %5034 = vmatprep.subr.bf16.mxu0 0
    %5035 = vmatpush1.bf16.msra.mxu0 %v5017
    %5036 = vmatprep.subr.bf16.mxu0 0
    %5037 = vmatpush1.bf16.msra.mxu0 %v5018
    %5038 = vmatprep.subr.bf16.mxu0 0
    %5039 = vmatpush1.bf16.msra.mxu0 %v5019
    %5040 = vmatprep.subr.bf16.mxu0 0
    %5041 = vmatpush1.bf16.msra.mxu0 %v5020
    %5042 = vmatprep.subr.bf16.mxu0 0
    %5043 = vmatpush1.bf16.msra.mxu0 %v5021
    %5044 = vmatprep.subr.bf16.mxu0 0
    %5045 = vmatpush1.bf16.msra.mxu0 %v5022
    %5046 = vmatprep.subr.bf16.mxu0 0
    %5047 = vmatpush1.bf16.msra.mxu0 %v5023
    %5048 = vmatprep.subr.bf16.mxu0 0
    %5049 = vmatpush1.bf16.msra.mxu0 0
    %5050 = vmatprep.subr.bf16.mxu0 0
    %5051 = vmatpush1.bf16.msra.mxu0 0
    %5052 = vmatprep.subr.bf16.mxu0 0
    %5053 = vmatpush1.bf16.msra.mxu0 0
    %5054 = vmatprep.subr.bf16.mxu0 0
    %5055 = vmatpush1.bf16.msra.mxu0 0
    %5056 = vmatprep.subr.bf16.mxu0 0
    %5057 = vmatpush1.bf16.msra.mxu0 0
    %5058 = vmatprep.subr.bf16.mxu0 0
    %5059 = vmatpush1.bf16.msra.mxu0 0
    %5060 = vmatprep.subr.bf16.mxu0 0
    %5061 = vmatpush1.bf16.msra.mxu0 0
    %5062 = vmatprep.subr.bf16.mxu0 0
    %5063 = vmatpush1.bf16.msra.mxu0 0
    %5064 = vmatprep.mubr.bf16.mxu0 0
    %5065 = vmatmul.mubr.bf16.gmra.mrb[0].mxu0 %v4960
    %v5066 = vpop.f32.mrb[0].mxu0
    %v5067 = vadd.f32 %v4982, %v5066
    %v5068 = vpop.f32.mrb[0].mxu0
    %v5069 = vpop.f32.mrb[0].mxu0
    %v5070 = vpop.f32.mrb[0].mxu0
    %5071 = vdwg.mxu0
    %5072 = vst [vmem:[%s7] sm:$0x3] %v5067
    // Predicated region
    $region38: #{lstm_model_forward.1} parent=1 // pred_check
      _
    $region39: #{lstm_model_forward.1} parent=1 // pred_check_branch
      %5074 = sbr.rel (0) target = $region41
    $region40: #{lstm_model_forward.1} parent=1 // pred_region
      _
    $region41: #{lstm_model_forward.1} parent=1 // pred_fallthru
      _
    // Predicated region
    $region42: #{lstm_model_forward.1} parent=1 // pred_check
      _
    $region43: #{lstm_model_forward.1} parent=1 // pred_check_branch
      %5076 = sbr.rel (0) target = $region45
    $region44: #{lstm_model_forward.1} parent=1 // pred_region
      _
    $region45: #{lstm_model_forward.1} parent=1 // pred_fallthru
      _
    %5077 = vsyncpa [#allocation4], 1
    %5078 = vsyncpa [#allocation6], 1

</llo_original>
